<compile_context>
chip_gen: v7x
topology: tpu7x:2x2x1
jax: 0.10.0
libtpu: 0.0.40
codegen_flags: <defaults>
</compile_context>

<pallas_src>
import jax
import jax.numpy as jnp
from jax import lax
from jax.experimental import pallas as pl
from jax.experimental.pallas import tpu as pltpu

N_AGENTS = 4
STATE_DIM = 32
ACTION_DIM = 8
HIDDEN = 64
TILE_B = 512          # batch tile = MXU M dim; multiple of 8, >= 128

# Order in which the packed weights are passed to the kernel.
_WEIGHT_ORDER = ("w_h", "b_h", "w2bd", "b2a", "w_m1", "b_m1",
                 "w_b1", "b_b1", "w_w2", "b_w2", "w_b2", "b_b2",
                 "e_agent", "e_rep", "f_fold")


def _round_up(x, m):
    return (x + m - 1) // m * m


def _block_diag(blocks):
    """(A, R, C) -> (A*R, A*C) block-diagonal (host-side, one time)."""
    a, r, c = blocks.shape
    out = jnp.zeros((a * r, a * c), blocks.dtype)
    for i in range(a):
        out = out.at[i * r:(i + 1) * r, i * c:(i + 1) * c].set(blocks[i])
    return out


def qmix_kernel(sflat_ref, act_ref,
                w_h_ref, b_h_ref, w2bd_ref, b2a_ref,
                w_m1_ref, b_m1_ref,
                w_b1_ref, b_b1_ref, w_w2_ref, b_w2_ref, w_b2_ref, b_b2_ref,
                e_agent_ref, e_rep_ref, f_fold_ref,
                out_ref):
    f32, bf16 = jnp.float32, jnp.bfloat16
    tb = sflat_ref.shape[0]
    aa = e_agent_ref.shape[1]            # n_agents * action_dim

    flat = sflat_ref[...]                # (TB, A*S) bf16

    # --- agent layer-1 (block-diagonal) + ReLU: one bf16 MXU dot, f32 acc ---
    h = jnp.maximum(
        jnp.dot(flat, w_h_ref[...], preferred_element_type=f32) + b_h_ref[...],
        0.0)                                                       # (TB, A*H) f32

    # --- agent layer-2 (block-diagonal): every agent's action values --------
    q_all = (jnp.dot(h.astype(bf16), w2bd_ref[...], preferred_element_type=f32)
             + b2a_ref[...])                                       # (TB, A*ACT) f32

    # --- vectorized action gather (kept exact: f32 small-int lane ids) ------
    act_lane = jnp.dot(act_ref[...], e_agent_ref[...], preferred_element_type=f32)
    lane = lax.broadcasted_iota(jnp.int32, (tb, aa), 1).astype(f32)
    q_sel = jnp.where(act_lane == lane, q_all, 0.0)                # (TB, A*ACT)

    # --- replicate each agent's selected Q over its H mixing columns --------
    q_rep = jnp.dot(q_sel.astype(bf16), e_rep_ref[...],
                    preferred_element_type=f32)                    # (TB, A*H)

    # --- hyper-net w1 (per-sample mixing weights) ----------------------------
    w1h = (jnp.dot(flat, w_m1_ref[...], preferred_element_type=f32)
           + b_m1_ref[...])                                        # (TB, A*H)

    # --- fold over agents: mix[b,k] = sum_a q[b,a] * w1[b,a,k] ---------------
    mix = jnp.dot((q_rep * w1h).astype(bf16), f_fold_ref[...],
                  preferred_element_type=f32)                      # (TB, H)

    # --- hyper-net b1 / w2 / b2: small per-segment dots (no lane slicing) ----
    b1h = jnp.dot(flat, w_b1_ref[...], preferred_element_type=f32) + b_b1_ref[...]
    w2h = jnp.dot(flat, w_w2_ref[...], preferred_element_type=f32) + b_w2_ref[...]
    b2h = jnp.dot(flat, w_b2_ref[...], preferred_element_type=f32) + b_b2_ref[...]

    t = jnp.tanh(mix + b1h)                                        # (TB, H) f32
    out_ref[...] = jnp.sum(t * w2h, axis=1, keepdims=True) + b2h   # (TB, 1) f32


def pack_params(params, n_agents, state_dim, action_dim, hidden):
    """One-time host-side re-packing of the module parameters for the kernel."""
    (w1a, b1a, w2a, b2a, wh1, bh1, whb1, bhb1, wh2, bh2, whb2, bhb2) = params
    f32, bf16 = jnp.float32, jnp.bfloat16
    ah, aa = n_agents * hidden, n_agents * action_dim

    eye_a = jnp.eye(n_agents, dtype=f32)
    return dict(
        # agent nets (block-diagonalized so all agents run in one dot)
        w_h=_block_diag(w1a).astype(bf16),                 # (A*S, A*H)
        b_h=b1a.reshape(1, ah).astype(f32),
        w2bd=_block_diag(w2a).astype(bf16),                # (A*H, A*ACT)
        b2a=b2a.reshape(1, aa).astype(f32),
        # hyper nets
        w_m1=wh1.astype(bf16), b_m1=bh1.reshape(1, ah).astype(f32),
        w_b1=whb1.astype(bf16), b_b1=bhb1.reshape(1, hidden).astype(f32),
        w_w2=wh2.astype(bf16), b_w2=bh2.reshape(1, hidden).astype(f32),
        w_b2=whb2.astype(bf16), b_b2=bhb2.reshape(1, 1).astype(f32),
        # gather / replication / fold helper matrices
        e_agent=jnp.repeat(eye_a, action_dim, axis=1),                       # (A, A*ACT) f32 (exact)
        e_rep=jnp.repeat(jnp.repeat(eye_a, action_dim, axis=0),
                         hidden, axis=1).astype(bf16),                       # (A*ACT, A*H)
        f_fold=jnp.tile(jnp.eye(hidden, dtype=f32), (n_agents, 1)).astype(bf16),  # (A*H, H)
    )


def qmix_forward(states, actions, packed, *, tile_b=TILE_B):
    """states: (B, A, S) f32, actions: (B, A) int -> q_tot (B,) f32."""
    b, n_agents, state_dim = states.shape
    action_dim = packed["b2a"].shape[1] // n_agents
    a_s = n_agents * state_dim

    sflat = states.reshape(b, a_s).astype(jnp.bfloat16)
    act_idx = (actions.astype(jnp.int32)
               + jnp.arange(n_agents, dtype=jnp.int32)[None, :] * action_dim
               ).astype(jnp.float32)                               # flat action ids (exact in f32)

    bp = _round_up(b, tile_b)
    if bp != b:
        sflat = jnp.pad(sflat, ((0, bp - b), (0, 0)))
        act_idx = jnp.pad(act_idx, ((0, bp - b), (0, 0)))

    weights = [packed[k] for k in _WEIGHT_ORDER]

    def tiled(shape):
        return pl.BlockSpec(shape, lambda i: (i, 0))

    def resident(arr):
        # Constant index_map -> weight stays resident in VMEM across the grid.
        return pl.BlockSpec(arr.shape, lambda i: (0, 0))

    out = pl.pallas_call(
        qmix_kernel,
        out_shape=jax.ShapeDtypeStruct((bp, 1), jnp.float32),
        grid=(bp // tile_b,),
        in_specs=[
            tiled((tile_b, a_s)),               # per-tile flattened states (bf16)
            tiled((tile_b, n_agents)),          # per-tile flat action ids (f32)
        ] + [resident(w) for w in weights],
        out_specs=tiled((tile_b, 1)),
        compiler_params=pltpu.CompilerParams(
            dimension_semantics=("parallel",)),  # batch axis -> both TCs on v7x
    )(sflat, act_idx, *weights)

    return out[:b, 0]


def init_params(key, n_agents, state_dim, action_dim, hidden=64):
    ks = jax.random.split(key, 12)

    def lin(k, fan_in, shape):
        bound = 1.0 / float(fan_in) ** 0.5
        return jax.random.uniform(k, shape, jnp.float32, -bound, bound)

    flat_dim = n_agents * state_dim
    w1a = lin(ks[0], state_dim, (n_agents, state_dim, hidden))
    b1a = lin(ks[1], state_dim, (n_agents, hidden))
    w2a = lin(ks[2], hidden, (n_agents, hidden, action_dim))
    b2a = lin(ks[3], hidden, (n_agents, action_dim))
    wh1 = lin(ks[4], flat_dim, (flat_dim, n_agents * hidden))
    bh1 = lin(ks[5], flat_dim, (1, n_agents * hidden))
    whb1 = lin(ks[6], flat_dim, (flat_dim, hidden))
    bhb1 = lin(ks[7], flat_dim, (1, hidden))
    wh2 = lin(ks[8], flat_dim, (flat_dim, hidden))
    bh2 = lin(ks[9], flat_dim, (1, hidden))
    whb2 = lin(ks[10], flat_dim, (flat_dim, 1))
    bhb2 = lin(ks[11], flat_dim, (1, 1))
    return (w1a, b1a, w2a, b2a, wh1, bh1, whb1, bhb1, wh2, bh2, whb2, bhb2)


def qmix_reference(states, actions, params):
    """Pure-JAX f32 batched reference (canonical QMIX mixing)."""
    w1a, b1a, w2a, b2a, wh1, bh1, whb1, bhb1, wh2, bh2, whb2, bhb2 = params
    b, n_agents, _ = states.shape
    hidden = b1a.shape[1]
    h = jnp.maximum(jnp.einsum('bas,ash->bah', states, w1a) + b1a[None], 0.0)
    q_all = jnp.einsum('bah,aho->bao', h, w2a) + b2a[None]
    q_vec = jnp.take_along_axis(q_all, actions[..., None], axis=2)[..., 0]   # (B, A)
    flat = states.reshape(b, -1)
    w1 = (flat @ wh1 + bh1).reshape(b, n_agents, hidden)
    b1 = flat @ whb1 + bhb1
    w2 = flat @ wh2 + bh2
    b2 = flat @ whb2 + bhb2
    mix = jnp.einsum('ba,bah->bh', q_vec, w1) + b1
    return jnp.sum(w2 * jnp.tanh(mix), axis=1) + b2[:, 0]                    # (B,)


if __name__ == "__main__":
    key = jax.random.PRNGKey(0)
    k_par, k_s, k_a = jax.random.split(key, 3)
    B = 1024   # 2 grid steps of TILE_B=512 -> both TensorCores used on v7x

    params = init_params(k_par, N_AGENTS, STATE_DIM, ACTION_DIM, HIDDEN)
    packed = pack_params(params, N_AGENTS, STATE_DIM, ACTION_DIM, HIDDEN)
    states = jax.random.normal(k_s, (B, N_AGENTS, STATE_DIM), jnp.float32)
    actions = jax.random.randint(k_a, (B, N_AGENTS), 0, ACTION_DIM, dtype=jnp.int32)

    out = qmix_forward(states, actions, packed)
    jax.block_until_ready(out)

    ref = qmix_reference(states, actions, params)
    max_abs = float(jnp.max(jnp.abs(out - ref)))
    rel_norm = float(jnp.linalg.norm(out - ref) / jnp.linalg.norm(ref))
    # bf16 matmul operands with f32 accumulation vs. a pure-f32 reference:
    # expected max abs error ~1e-1 on outputs of magnitude O(1)-O(5).
    assert jnp.allclose(out, ref, atol=2e-1, rtol=2e-2), (max_abs, rel_norm)
    assert rel_norm < 5e-2, rel_norm
    print("KERNEL_OK")
</pallas_src>

<mosaic_0001>
module attributes {stable_mosaic.version = 11 : i64} {
  func.func @qmix_kernel(%arg0: i32, %arg1: memref<512x128xbf16, #tpu.memory_space<vmem>>, %arg2: memref<512x4xf32, #tpu.memory_space<vmem>>, %arg3: memref<128x256xbf16, #tpu.memory_space<vmem>>, %arg4: memref<1x256xf32, #tpu.memory_space<vmem>>, %arg5: memref<256x32xbf16, #tpu.memory_space<vmem>>, %arg6: memref<1x32xf32, #tpu.memory_space<vmem>>, %arg7: memref<128x256xbf16, #tpu.memory_space<vmem>>, %arg8: memref<1x256xf32, #tpu.memory_space<vmem>>, %arg9: memref<128x64xbf16, #tpu.memory_space<vmem>>, %arg10: memref<1x64xf32, #tpu.memory_space<vmem>>, %arg11: memref<128x64xbf16, #tpu.memory_space<vmem>>, %arg12: memref<1x64xf32, #tpu.memory_space<vmem>>, %arg13: memref<128x1xbf16, #tpu.memory_space<vmem>>, %arg14: memref<1x1xf32, #tpu.memory_space<vmem>>, %arg15: memref<4x32xf32, #tpu.memory_space<vmem>>, %arg16: memref<32x256xbf16, #tpu.memory_space<vmem>>, %arg17: memref<256x64xbf16, #tpu.memory_space<vmem>>, %arg18: memref<512x1xf32, #tpu.memory_space<vmem>>) attributes {dimension_semantics = [#tpu.dimension_semantics<parallel>], iteration_bounds = array<i64: 2>, scalar_prefetch = 0 : i64, scratch_operands = 0 : i64, tpu.core_type = #tpu.core_type<tc>, window_params = [{transform_indices = @transform_0, window_bounds = array<i64: 512, 128>}, {transform_indices = @transform_1, window_bounds = array<i64: 512, 4>}, {pipeline_mode = #tpu.pipeline_mode<synchronous>, transform_indices = @transform_2, window_bounds = array<i64: 128, 256>}, {pipeline_mode = #tpu.pipeline_mode<synchronous>, transform_indices = @transform_3, window_bounds = array<i64: 1, 256>}, {pipeline_mode = #tpu.pipeline_mode<synchronous>, transform_indices = @transform_4, window_bounds = array<i64: 256, 32>}, {pipeline_mode = #tpu.pipeline_mode<synchronous>, transform_indices = @transform_5, window_bounds = array<i64: 1, 32>}, {pipeline_mode = #tpu.pipeline_mode<synchronous>, transform_indices = @transform_6, window_bounds = array<i64: 128, 256>}, {pipeline_mode = #tpu.pipeline_mode<synchronous>, transform_indices = @transform_7, window_bounds = array<i64: 1, 256>}, {pipeline_mode = #tpu.pipeline_mode<synchronous>, transform_indices = @transform_8, window_bounds = array<i64: 128, 64>}, {pipeline_mode = #tpu.pipeline_mode<synchronous>, transform_indices = @transform_9, window_bounds = array<i64: 1, 64>}, {pipeline_mode = #tpu.pipeline_mode<synchronous>, transform_indices = @transform_10, window_bounds = array<i64: 128, 64>}, {pipeline_mode = #tpu.pipeline_mode<synchronous>, transform_indices = @transform_11, window_bounds = array<i64: 1, 64>}, {pipeline_mode = #tpu.pipeline_mode<synchronous>, transform_indices = @transform_12, window_bounds = array<i64: 128, 1>}, {pipeline_mode = #tpu.pipeline_mode<synchronous>, transform_indices = @transform_13, window_bounds = array<i64: 1, 1>}, {pipeline_mode = #tpu.pipeline_mode<synchronous>, transform_indices = @transform_14, window_bounds = array<i64: 4, 32>}, {pipeline_mode = #tpu.pipeline_mode<synchronous>, transform_indices = @transform_15, window_bounds = array<i64: 32, 256>}, {pipeline_mode = #tpu.pipeline_mode<synchronous>, transform_indices = @transform_16, window_bounds = array<i64: 256, 64>}, {transform_indices = @transform_17, window_bounds = array<i64: 512, 1>}]} {
    %c0 = arith.constant 0 : index
    %c0_0 = arith.constant 0 : index
    %0 = vector.load %arg1[%c0, %c0_0] : memref<512x128xbf16, #tpu.memory_space<vmem>>, vector<512x128xbf16>
    %c0_1 = arith.constant 0 : index
    %c0_2 = arith.constant 0 : index
    %1 = vector.load %arg3[%c0_1, %c0_2] : memref<128x256xbf16, #tpu.memory_space<vmem>>, vector<128x256xbf16>
    %cst = arith.constant dense<0.000000e+00> : vector<512x256xf32>
    %2 = tpu.matmul %0, %1, %cst {dimension_numbers = #tpu.dot_dimension_numbers<[1], [0], [0], [1], [0, 0, 1, 1], [], []>} : vector<512x128xbf16>, vector<128x256xbf16>, vector<512x256xf32> -> vector<512x256xf32>
    %c0_3 = arith.constant 0 : index
    %c0_4 = arith.constant 0 : index
    %3 = vector.load %arg4[%c0_3, %c0_4] : memref<1x256xf32, #tpu.memory_space<vmem>>, vector<1x256xf32>
    %4 = vector.broadcast %3 : vector<1x256xf32> to vector<512x256xf32>
    %5 = arith.addf %2, %4 : vector<512x256xf32>
    %cst_5 = arith.constant 0.000000e+00 : f32
    %6 = vector.broadcast %cst_5 : f32 to vector<512x256xf32>
    %7 = arith.maximumf %5, %6 : vector<512x256xf32>
    %8 = arith.truncf %7 : vector<512x256xf32> to vector<512x256xbf16>
    %c0_6 = arith.constant 0 : index
    %c0_7 = arith.constant 0 : index
    %9 = vector.load %arg5[%c0_6, %c0_7] : memref<256x32xbf16, #tpu.memory_space<vmem>>, vector<256x32xbf16>
    %cst_8 = arith.constant dense<0.000000e+00> : vector<512x32xf32>
    %10 = tpu.matmul %8, %9, %cst_8 {dimension_numbers = #tpu.dot_dimension_numbers<[1], [0], [0], [1], [0, 0, 1, 1], [], []>} : vector<512x256xbf16>, vector<256x32xbf16>, vector<512x32xf32> -> vector<512x32xf32>
    %c0_9 = arith.constant 0 : index
    %c0_10 = arith.constant 0 : index
    %11 = vector.load %arg6[%c0_9, %c0_10] : memref<1x32xf32, #tpu.memory_space<vmem>>, vector<1x32xf32>
    %12 = vector.broadcast %11 : vector<1x32xf32> to vector<512x32xf32>
    %13 = arith.addf %10, %12 : vector<512x32xf32>
    %c0_11 = arith.constant 0 : index
    %c0_12 = arith.constant 0 : index
    %14 = vector.load %arg2[%c0_11, %c0_12] : memref<512x4xf32, #tpu.memory_space<vmem>>, vector<512x4xf32>
    %c0_13 = arith.constant 0 : index
    %c0_14 = arith.constant 0 : index
    %15 = vector.load %arg15[%c0_13, %c0_14] : memref<4x32xf32, #tpu.memory_space<vmem>>, vector<4x32xf32>
    %cst_15 = arith.constant dense<0.000000e+00> : vector<512x32xf32>
    %16 = tpu.matmul %14, %15, %cst_15 {dimension_numbers = #tpu.dot_dimension_numbers<[1], [0], [0], [1], [0, 0, 1, 1], [], []>} : vector<512x4xf32>, vector<4x32xf32>, vector<512x32xf32> -> vector<512x32xf32>
    %17 = tpu.iota {dimensions = array<i32: 1>} : vector<512x32xi32>
    %18 = arith.sitofp %17 : vector<512x32xi32> to vector<512x32xf32>
    %19 = arith.cmpf oeq, %16, %18 : vector<512x32xf32>
    %cst_16 = arith.constant 0.000000e+00 : f32
    %20 = vector.broadcast %cst_16 : f32 to vector<512x32xf32>
    %21 = arith.select %19, %13, %20 : vector<512x32xi1>, vector<512x32xf32>
    %22 = arith.truncf %21 : vector<512x32xf32> to vector<512x32xbf16>
    %c0_17 = arith.constant 0 : index
    %c0_18 = arith.constant 0 : index
    %23 = vector.load %arg16[%c0_17, %c0_18] : memref<32x256xbf16, #tpu.memory_space<vmem>>, vector<32x256xbf16>
    %cst_19 = arith.constant dense<0.000000e+00> : vector<512x256xf32>
    %24 = tpu.matmul %22, %23, %cst_19 {dimension_numbers = #tpu.dot_dimension_numbers<[1], [0], [0], [1], [0, 0, 1, 1], [], []>} : vector<512x32xbf16>, vector<32x256xbf16>, vector<512x256xf32> -> vector<512x256xf32>
    %c0_20 = arith.constant 0 : index
    %c0_21 = arith.constant 0 : index
    %25 = vector.load %arg7[%c0_20, %c0_21] : memref<128x256xbf16, #tpu.memory_space<vmem>>, vector<128x256xbf16>
    %cst_22 = arith.constant dense<0.000000e+00> : vector<512x256xf32>
    %26 = tpu.matmul %0, %25, %cst_22 {dimension_numbers = #tpu.dot_dimension_numbers<[1], [0], [0], [1], [0, 0, 1, 1], [], []>} : vector<512x128xbf16>, vector<128x256xbf16>, vector<512x256xf32> -> vector<512x256xf32>
    %c0_23 = arith.constant 0 : index
    %c0_24 = arith.constant 0 : index
    %27 = vector.load %arg8[%c0_23, %c0_24] : memref<1x256xf32, #tpu.memory_space<vmem>>, vector<1x256xf32>
    %28 = vector.broadcast %27 : vector<1x256xf32> to vector<512x256xf32>
    %29 = arith.addf %26, %28 : vector<512x256xf32>
    %30 = arith.mulf %24, %29 : vector<512x256xf32>
    %31 = arith.truncf %30 : vector<512x256xf32> to vector<512x256xbf16>
    %c0_25 = arith.constant 0 : index
    %c0_26 = arith.constant 0 : index
    %32 = vector.load %arg17[%c0_25, %c0_26] : memref<256x64xbf16, #tpu.memory_space<vmem>>, vector<256x64xbf16>
    %cst_27 = arith.constant dense<0.000000e+00> : vector<512x64xf32>
    %33 = tpu.matmul %31, %32, %cst_27 {dimension_numbers = #tpu.dot_dimension_numbers<[1], [0], [0], [1], [0, 0, 1, 1], [], []>} : vector<512x256xbf16>, vector<256x64xbf16>, vector<512x64xf32> -> vector<512x64xf32>
    %c0_28 = arith.constant 0 : index
    %c0_29 = arith.constant 0 : index
    %34 = vector.load %arg9[%c0_28, %c0_29] : memref<128x64xbf16, #tpu.memory_space<vmem>>, vector<128x64xbf16>
    %cst_30 = arith.constant dense<0.000000e+00> : vector<512x64xf32>
    %35 = tpu.matmul %0, %34, %cst_30 {dimension_numbers = #tpu.dot_dimension_numbers<[1], [0], [0], [1], [0, 0, 1, 1], [], []>} : vector<512x128xbf16>, vector<128x64xbf16>, vector<512x64xf32> -> vector<512x64xf32>
    %c0_31 = arith.constant 0 : index
    %c0_32 = arith.constant 0 : index
    %36 = vector.load %arg10[%c0_31, %c0_32] : memref<1x64xf32, #tpu.memory_space<vmem>>, vector<1x64xf32>
    %37 = vector.broadcast %36 : vector<1x64xf32> to vector<512x64xf32>
    %38 = arith.addf %35, %37 : vector<512x64xf32>
    %c0_33 = arith.constant 0 : index
    %c0_34 = arith.constant 0 : index
    %39 = vector.load %arg11[%c0_33, %c0_34] : memref<128x64xbf16, #tpu.memory_space<vmem>>, vector<128x64xbf16>
    %cst_35 = arith.constant dense<0.000000e+00> : vector<512x64xf32>
    %40 = tpu.matmul %0, %39, %cst_35 {dimension_numbers = #tpu.dot_dimension_numbers<[1], [0], [0], [1], [0, 0, 1, 1], [], []>} : vector<512x128xbf16>, vector<128x64xbf16>, vector<512x64xf32> -> vector<512x64xf32>
    %c0_36 = arith.constant 0 : index
    %c0_37 = arith.constant 0 : index
    %41 = vector.load %arg12[%c0_36, %c0_37] : memref<1x64xf32, #tpu.memory_space<vmem>>, vector<1x64xf32>
    %42 = vector.broadcast %41 : vector<1x64xf32> to vector<512x64xf32>
    %43 = arith.addf %40, %42 : vector<512x64xf32>
    %c0_38 = arith.constant 0 : index
    %c0_39 = arith.constant 0 : index
    %44 = vector.load %arg13[%c0_38, %c0_39] : memref<128x1xbf16, #tpu.memory_space<vmem>>, vector<128x1xbf16>
    %cst_40 = arith.constant dense<0.000000e+00> : vector<512x1xf32>
    %45 = tpu.matmul %0, %44, %cst_40 {dimension_numbers = #tpu.dot_dimension_numbers<[1], [0], [0], [1], [0, 0, 1, 1], [], []>} : vector<512x128xbf16>, vector<128x1xbf16>, vector<512x1xf32> -> vector<512x1xf32>
    %c0_41 = arith.constant 0 : index
    %c0_42 = arith.constant 0 : index
    %46 = vector.load %arg14[%c0_41, %c0_42] : memref<1x1xf32, #tpu.memory_space<vmem>>, vector<1x1xf32>
    %47 = vector.broadcast %46 : vector<1x1xf32> to vector<512x1xf32>
    %48 = arith.addf %45, %47 : vector<512x1xf32>
    %49 = arith.addf %33, %38 : vector<512x64xf32>
    %50 = math.tanh %49 : vector<512x64xf32>
    %51 = arith.mulf %50, %43 : vector<512x64xf32>
    %cst_43 = arith.constant dense<0.000000e+00> : vector<512xf32>
    %52 = vector.multi_reduction <add>, %51, %cst_43 [1] : vector<512x64xf32> to vector<512xf32>
    %53 = vector.shape_cast %52 : vector<512xf32> to vector<512x1xf32>
    %54 = arith.addf %53, %48 : vector<512x1xf32>
    %c0_44 = arith.constant 0 : index
    %c0_45 = arith.constant 0 : index
    %55 = vector.load %arg18[%c0_44, %c0_45] : memref<512x1xf32, #tpu.memory_space<vmem>>, vector<512x1xf32>
    tpu.vector_store %arg18[%c0_44, %c0_45], %54 {strides = array<i32>} : memref<512x1xf32, #tpu.memory_space<vmem>>, vector<512x1xf32>,
    return
  }
  func.func @transform_0(%arg0: i32) -> (i32, i32) {
    %c0_i32 = arith.constant 0 : i32
    %c0_i32_0 = arith.constant 0 : i32
    return %arg0, %c0_i32 : i32, i32
  }
  func.func @transform_1(%arg0: i32) -> (i32, i32) {
    %c0_i32 = arith.constant 0 : i32
    %c0_i32_0 = arith.constant 0 : i32
    return %arg0, %c0_i32 : i32, i32
  }
  func.func @transform_2(%arg0: i32) -> (i32, i32) {
    %c0_i32 = arith.constant 0 : i32
    %c0_i32_0 = arith.constant 0 : i32
    %c0_i32_1 = arith.constant 0 : i32
    return %c0_i32, %c0_i32_0 : i32, i32
  }
  func.func @transform_3(%arg0: i32) -> (i32, i32) {
    %c0_i32 = arith.constant 0 : i32
    %c0_i32_0 = arith.constant 0 : i32
    %c0_i32_1 = arith.constant 0 : i32
    return %c0_i32, %c0_i32_0 : i32, i32
  }
  func.func @transform_4(%arg0: i32) -> (i32, i32) {
    %c0_i32 = arith.constant 0 : i32
    %c0_i32_0 = arith.constant 0 : i32
    %c0_i32_1 = arith.constant 0 : i32
    return %c0_i32, %c0_i32_0 : i32, i32
  }
  func.func @transform_5(%arg0: i32) -> (i32, i32) {
    %c0_i32 = arith.constant 0 : i32
    %c0_i32_0 = arith.constant 0 : i32
    %c0_i32_1 = arith.constant 0 : i32
    return %c0_i32, %c0_i32_0 : i32, i32
  }
  func.func @transform_6(%arg0: i32) -> (i32, i32) {
    %c0_i32 = arith.constant 0 : i32
    %c0_i32_0 = arith.constant 0 : i32
    %c0_i32_1 = arith.constant 0 : i32
    return %c0_i32, %c0_i32_0 : i32, i32
  }
  func.func @transform_7(%arg0: i32) -> (i32, i32) {
    %c0_i32 = arith.constant 0 : i32
    %c0_i32_0 = arith.constant 0 : i32
    %c0_i32_1 = arith.constant 0 : i32
    return %c0_i32, %c0_i32_0 : i32, i32
  }
  func.func @transform_8(%arg0: i32) -> (i32, i32) {
    %c0_i32 = arith.constant 0 : i32
    %c0_i32_0 = arith.constant 0 : i32
    %c0_i32_1 = arith.constant 0 : i32
    return %c0_i32, %c0_i32_0 : i32, i32
  }
  func.func @transform_9(%arg0: i32) -> (i32, i32) {
    %c0_i32 = arith.constant 0 : i32
    %c0_i32_0 = arith.constant 0 : i32
    %c0_i32_1 = arith.constant 0 : i32
    return %c0_i32, %c0_i32_0 : i32, i32
  }
  func.func @transform_10(%arg0: i32) -> (i32, i32) {
    %c0_i32 = arith.constant 0 : i32
    %c0_i32_0 = arith.constant 0 : i32
    %c0_i32_1 = arith.constant 0 : i32
    return %c0_i32, %c0_i32_0 : i32, i32
  }
  func.func @transform_11(%arg0: i32) -> (i32, i32) {
    %c0_i32 = arith.constant 0 : i32
    %c0_i32_0 = arith.constant 0 : i32
    %c0_i32_1 = arith.constant 0 : i32
    return %c0_i32, %c0_i32_0 : i32, i32
  }
  func.func @transform_12(%arg0: i32) -> (i32, i32) {
    %c0_i32 = arith.constant 0 : i32
    %c0_i32_0 = arith.constant 0 : i32
    %c0_i32_1 = arith.constant 0 : i32
    return %c0_i32, %c0_i32_0 : i32, i32
  }
  func.func @transform_13(%arg0: i32) -> (i32, i32) {
    %c0_i32 = arith.constant 0 : i32
    %c0_i32_0 = arith.constant 0 : i32
    %c0_i32_1 = arith.constant 0 : i32
    return %c0_i32, %c0_i32_0 : i32, i32
  }
  func.func @transform_14(%arg0: i32) -> (i32, i32) {
    %c0_i32 = arith.constant 0 : i32
    %c0_i32_0 = arith.constant 0 : i32
    %c0_i32_1 = arith.constant 0 : i32
    return %c0_i32, %c0_i32_0 : i32, i32
  }
  func.func @transform_15(%arg0: i32) -> (i32, i32) {
    %c0_i32 = arith.constant 0 : i32
    %c0_i32_0 = arith.constant 0 : i32
    %c0_i32_1 = arith.constant 0 : i32
    return %c0_i32, %c0_i32_0 : i32, i32
  }
  func.func @transform_16(%arg0: i32) -> (i32, i32) {
    %c0_i32 = arith.constant 0 : i32
    %c0_i32_0 = arith.constant 0 : i32
    %c0_i32_1 = arith.constant 0 : i32
    return %c0_i32, %c0_i32_0 : i32, i32
  }
  func.func @transform_17(%arg0: i32) -> (i32, i32) {
    %c0_i32 = arith.constant 0 : i32
    %c0_i32_0 = arith.constant 0 : i32
    return %arg0, %c0_i32 : i32, i32
  }
}

</mosaic_0001>

<llo_original>
// kernel: tpu_custom_call.1
$region0: #{tpu_custom_call.1}
  #allocation0 [shape = 'u32[]', space=smem, size = 0x4, offset = 0x4, fixed_abs, tag = 'smem constant byte address 0x4 - core index']
  #allocation1 [shape = 'u32[144,128]{1,0:T(1,128)}', space=vmem, size = 0x12000, scoped, tag = 'internal scratch']
  #allocation2 [shape = 'f32[1,1]{1,0:T(1,128)S(1)}', space=vmem, size = 0x200, scoped, tag = 'scoped memory for tpu_custom_call.1']
  %s0 = inlined_call_operand.vmem [shape: bf16[1024,128], index: 0, kind: input, shape index: {}]
  %s1 = inlined_call_operand.vmem [shape: f32[1024,4], index: 1, kind: input, shape index: {}]
  %s2 = inlined_call_operand.vmem [shape: bf16[128,256], index: 2, kind: input, shape index: {}]
  %s3 = inlined_call_operand.vmem [shape: f32[1,256], index: 3, kind: input, shape index: {}]
  %s4 = inlined_call_operand.vmem [shape: bf16[256,32], index: 4, kind: input, shape index: {}]
  %s5 = inlined_call_operand.vmem [shape: f32[1,32], index: 5, kind: input, shape index: {}]
  %s6 = inlined_call_operand.vmem [shape: bf16[128,256], index: 6, kind: input, shape index: {}]
  %s7 = inlined_call_operand.vmem [shape: f32[1,256], index: 7, kind: input, shape index: {}]
  %s8 = inlined_call_operand.vmem [shape: bf16[128,64], index: 8, kind: input, shape index: {}]
  %s9 = inlined_call_operand.vmem [shape: f32[1,64], index: 9, kind: input, shape index: {}]
  %s10 = inlined_call_operand.vmem [shape: bf16[128,64], index: 10, kind: input, shape index: {}]
  %s11 = inlined_call_operand.vmem [shape: f32[1,64], index: 11, kind: input, shape index: {}]
  %s12 = inlined_call_operand.vmem [shape: bf16[128,1], index: 12, kind: input, shape index: {}]
  %s13 = inlined_call_operand.<no memory space> [shape: f32[1,1], index: 13, kind: input, shape index: {}]
  %s14 = inlined_call_operand.vmem [shape: f32[4,32], index: 14, kind: input, shape index: {}]
  %s15 = inlined_call_operand.vmem [shape: bf16[32,256], index: 15, kind: input, shape index: {}]
  %s16 = inlined_call_operand.vmem [shape: bf16[256,64], index: 16, kind: input, shape index: {}]
  %s17 = inlined_call_operand.vmem [shape: f32[1024,1], index: 17, kind: output, shape index: {}]
  %s18 = sld [smem:[#allocation0]]
  $region101: #{tpu_custom_call.1} parent=0
    _
  %s20 = ssub.s32 1, %s18
  %s21 = scalar_select 0, %s20, %s18
  %v22 = vstv %s13
  %23 = vst [vmem:[#allocation2] sm:$0x1] %v22
  loop: start=0, step=1, limit=4
  $region2: #{tpu_custom_call.1} parent=0 // loop_pre_header
    _
  $region3: #{tpu_custom_call.1} parent=0 // loop_header
    %s25 = sphi 0, %s29
    %p26 = scmp.ge.s32.totalorder %s25, 4
    %s35 = sphi 0, %s37
    %s38 = sphi 0, %s35
    %s39 = sphi 0, %s38
    %s55 = sphi 0, %s39
    %s61 = sphi 0, %s63
    %s64 = sphi 0, %s61
    %s65 = sphi 0, %s64
    %s81 = sphi 0, %s65
    %s85 = sphi 0, %s85
    %s87 = sphi 0, %s85
    %s88 = sphi 0, %s87
    %s102 = sphi 0, %s88
    %s106 = sphi 0, %s106
    %s108 = sphi 0, %s106
    %s109 = sphi 0, %s108
    %s123 = sphi 0, %s109
    %s127 = sphi 0, %s127
    %s129 = sphi 0, %s127
    %s130 = sphi 0, %s129
    %s144 = sphi 0, %s130
    %s148 = sphi 0, %s148
    %s150 = sphi 0, %s148
    %s151 = sphi 0, %s150
    %s165 = sphi 0, %s151
    %s169 = sphi 0, %s169
    %s171 = sphi 0, %s169
    %s172 = sphi 0, %s171
    %s186 = sphi 0, %s172
    %s190 = sphi 0, %s190
    %s192 = sphi 0, %s190
    %s193 = sphi 0, %s192
    %s207 = sphi 0, %s193
    %s211 = sphi 0, %s211
    %s213 = sphi 0, %s211
    %s214 = sphi 0, %s213
    %s228 = sphi 0, %s214
    %s232 = sphi 0, %s232
    %s234 = sphi 0, %s232
    %s235 = sphi 0, %s234
    %s249 = sphi 0, %s235
    %s253 = sphi 0, %s253
    %s255 = sphi 0, %s253
    %s256 = sphi 0, %s255
    %s270 = sphi 0, %s256
    %s274 = sphi 0, %s274
    %s276 = sphi 0, %s274
    %s277 = sphi 0, %s276
    %s291 = sphi 0, %s277
    %s295 = sphi 0, %s295
    %s297 = sphi 0, %s295
    %s298 = sphi 0, %s297
    %s312 = sphi 0, %s298
    %s316 = sphi 0, %s316
    %s318 = sphi 0, %s316
    %s319 = sphi 0, %s318
    %s333 = sphi 0, %s319
    %s337 = sphi 0, %s337
    %s339 = sphi 0, %s337
    %s340 = sphi 0, %s339
    %s354 = sphi 0, %s340
    %s358 = sphi 0, %s358
    %s360 = sphi 0, %s358
    %s361 = sphi 0, %s360
    %s375 = sphi 0, %s361
    %s379 = sphi 0, %s379
    %s381 = sphi 0, %s379
    %s382 = sphi 0, %s381
    %s396 = sphi 0, %s382
    %s402 = sphi 0, %s404
    %s405 = sphi 0, %s402
    %s406 = sphi 0, %s405
    %s422 = sphi 0, %s406
  $region4: #{tpu_custom_call.1} parent=0 // loop_header_branch
    %28 = sbr.rel (%p26) target = $region8
  $region5: #{tpu_custom_call.1} parent=0 // loop_body
    %s30 = ssub.s32 %s25, 1
    %s31 = ssub.s32 %s25, 2
    %s32 = sadd.s32 %s25, 1
    %s33 = ssub.s32 %s25, %s32
    %p34 = scmp.eq.s32.totalorder %s33, 0
    %s36 = sadd.s32 %s35, 1
    %s37 = scalar_select %p34, %s35, %s36
    %p40 = pneg %p34
    %p41 = scmp.eq.s32.totalorder %s25, 1
    %p42 = por %p40, %p41
    %p43 = scmp.ne.s32.totalorder %s35, %s38
    %p44 = scmp.eq.s32.totalorder %s25, 0
    %p45 = por %p43, %p44
    %p46 = scmp.ne.s32.totalorder %s35, %s38
    %p47 = scmp.eq.s32.totalorder %s30, 1
    %p48 = por %p46, %p47
    %p49 = scmp.ne.s32.totalorder %s38, %s39
    %p50 = scmp.eq.s32.totalorder %s30, 0
    %p51 = por %p49, %p50
    %p52 = scmp.ne.s32.totalorder %s38, %s39
    %p53 = scmp.eq.s32.totalorder %s31, 1
    %p54 = por %p52, %p53
    %p56 = scmp.ne.s32.totalorder %s39, %s55
    %p57 = scmp.eq.s32.totalorder %s31, 0
    %p58 = por %p56, %p57
    %s59 = ssub.s32 %s25, %s32
    %p60 = scmp.eq.s32.totalorder %s59, 0
    %s62 = sadd.s32 %s61, 1
    %s63 = scalar_select %p60, %s61, %s62
    %p66 = pneg %p60
    %p67 = scmp.eq.s32.totalorder %s25, 1
    %p68 = por %p66, %p67
    %p69 = scmp.ne.s32.totalorder %s61, %s64
    %p70 = scmp.eq.s32.totalorder %s25, 0
    %p71 = por %p69, %p70
    %p72 = scmp.ne.s32.totalorder %s61, %s64
    %p73 = scmp.eq.s32.totalorder %s30, 1
    %p74 = por %p72, %p73
    %p75 = scmp.ne.s32.totalorder %s64, %s65
    %p76 = scmp.eq.s32.totalorder %s30, 0
    %p77 = por %p75, %p76
    %p78 = scmp.ne.s32.totalorder %s64, %s65
    %p79 = scmp.eq.s32.totalorder %s31, 1
    %p80 = por %p78, %p79
    %p82 = scmp.ne.s32.totalorder %s65, %s81
    %p83 = scmp.eq.s32.totalorder %s31, 0
    %p84 = por %p82, %p83
    %s86 = sadd.s32 %s85, 1
    %p89 = scmp.eq.s32.totalorder %s25, 1
    %p90 = scmp.ne.s32.totalorder %s85, %s87
    %p91 = scmp.eq.s32.totalorder %s25, 0
    %p92 = por %p90, %p91
    %p93 = scmp.ne.s32.totalorder %s85, %s87
    %p94 = scmp.eq.s32.totalorder %s30, 1
    %p95 = por %p93, %p94
    %p96 = scmp.ne.s32.totalorder %s87, %s88
    %p97 = scmp.eq.s32.totalorder %s30, 0
    %p98 = por %p96, %p97
    %p99 = scmp.ne.s32.totalorder %s87, %s88
    %p100 = scmp.eq.s32.totalorder %s31, 1
    %p101 = por %p99, %p100
    %p103 = scmp.ne.s32.totalorder %s88, %s102
    %p104 = scmp.eq.s32.totalorder %s31, 0
    %p105 = por %p103, %p104
    %s107 = sadd.s32 %s106, 1
    %p110 = scmp.eq.s32.totalorder %s25, 1
    %p111 = scmp.ne.s32.totalorder %s106, %s108
    %p112 = scmp.eq.s32.totalorder %s25, 0
    %p113 = por %p111, %p112
    %p114 = scmp.ne.s32.totalorder %s106, %s108
    %p115 = scmp.eq.s32.totalorder %s30, 1
    %p116 = por %p114, %p115
    %p117 = scmp.ne.s32.totalorder %s108, %s109
    %p118 = scmp.eq.s32.totalorder %s30, 0
    %p119 = por %p117, %p118
    %p120 = scmp.ne.s32.totalorder %s108, %s109
    %p121 = scmp.eq.s32.totalorder %s31, 1
    %p122 = por %p120, %p121
    %p124 = scmp.ne.s32.totalorder %s109, %s123
    %p125 = scmp.eq.s32.totalorder %s31, 0
    %p126 = por %p124, %p125
    %s128 = sadd.s32 %s127, 1
    %p131 = scmp.eq.s32.totalorder %s25, 1
    %p132 = scmp.ne.s32.totalorder %s127, %s129
    %p133 = scmp.eq.s32.totalorder %s25, 0
    %p134 = por %p132, %p133
    %p135 = scmp.ne.s32.totalorder %s127, %s129
    %p136 = scmp.eq.s32.totalorder %s30, 1
    %p137 = por %p135, %p136
    %p138 = scmp.ne.s32.totalorder %s129, %s130
    %p139 = scmp.eq.s32.totalorder %s30, 0
    %p140 = por %p138, %p139
    %p141 = scmp.ne.s32.totalorder %s129, %s130
    %p142 = scmp.eq.s32.totalorder %s31, 1
    %p143 = por %p141, %p142
    %p145 = scmp.ne.s32.totalorder %s130, %s144
    %p146 = scmp.eq.s32.totalorder %s31, 0
    %p147 = por %p145, %p146
    %s149 = sadd.s32 %s148, 1
    %p152 = scmp.eq.s32.totalorder %s25, 1
    %p153 = scmp.ne.s32.totalorder %s148, %s150
    %p154 = scmp.eq.s32.totalorder %s25, 0
    %p155 = por %p153, %p154
    %p156 = scmp.ne.s32.totalorder %s148, %s150
    %p157 = scmp.eq.s32.totalorder %s30, 1
    %p158 = por %p156, %p157
    %p159 = scmp.ne.s32.totalorder %s150, %s151
    %p160 = scmp.eq.s32.totalorder %s30, 0
    %p161 = por %p159, %p160
    %p162 = scmp.ne.s32.totalorder %s150, %s151
    %p163 = scmp.eq.s32.totalorder %s31, 1
    %p164 = por %p162, %p163
    %p166 = scmp.ne.s32.totalorder %s151, %s165
    %p167 = scmp.eq.s32.totalorder %s31, 0
    %p168 = por %p166, %p167
    %s170 = sadd.s32 %s169, 1
    %p173 = scmp.eq.s32.totalorder %s25, 1
    %p174 = scmp.ne.s32.totalorder %s169, %s171
    %p175 = scmp.eq.s32.totalorder %s25, 0
    %p176 = por %p174, %p175
    %p177 = scmp.ne.s32.totalorder %s169, %s171
    %p178 = scmp.eq.s32.totalorder %s30, 1
    %p179 = por %p177, %p178
    %p180 = scmp.ne.s32.totalorder %s171, %s172
    %p181 = scmp.eq.s32.totalorder %s30, 0
    %p182 = por %p180, %p181
    %p183 = scmp.ne.s32.totalorder %s171, %s172
    %p184 = scmp.eq.s32.totalorder %s31, 1
    %p185 = por %p183, %p184
    %p187 = scmp.ne.s32.totalorder %s172, %s186
    %p188 = scmp.eq.s32.totalorder %s31, 0
    %p189 = por %p187, %p188
    %s191 = sadd.s32 %s190, 1
    %p194 = scmp.eq.s32.totalorder %s25, 1
    %p195 = scmp.ne.s32.totalorder %s190, %s192
    %p196 = scmp.eq.s32.totalorder %s25, 0
    %p197 = por %p195, %p196
    %p198 = scmp.ne.s32.totalorder %s190, %s192
    %p199 = scmp.eq.s32.totalorder %s30, 1
    %p200 = por %p198, %p199
    %p201 = scmp.ne.s32.totalorder %s192, %s193
    %p202 = scmp.eq.s32.totalorder %s30, 0
    %p203 = por %p201, %p202
    %p204 = scmp.ne.s32.totalorder %s192, %s193
    %p205 = scmp.eq.s32.totalorder %s31, 1
    %p206 = por %p204, %p205
    %p208 = scmp.ne.s32.totalorder %s193, %s207
    %p209 = scmp.eq.s32.totalorder %s31, 0
    %p210 = por %p208, %p209
    %s212 = sadd.s32 %s211, 1
    %p215 = scmp.eq.s32.totalorder %s25, 1
    %p216 = scmp.ne.s32.totalorder %s211, %s213
    %p217 = scmp.eq.s32.totalorder %s25, 0
    %p218 = por %p216, %p217
    %p219 = scmp.ne.s32.totalorder %s211, %s213
    %p220 = scmp.eq.s32.totalorder %s30, 1
    %p221 = por %p219, %p220
    %p222 = scmp.ne.s32.totalorder %s213, %s214
    %p223 = scmp.eq.s32.totalorder %s30, 0
    %p224 = por %p222, %p223
    %p225 = scmp.ne.s32.totalorder %s213, %s214
    %p226 = scmp.eq.s32.totalorder %s31, 1
    %p227 = por %p225, %p226
    %p229 = scmp.ne.s32.totalorder %s214, %s228
    %p230 = scmp.eq.s32.totalorder %s31, 0
    %p231 = por %p229, %p230
    %s233 = sadd.s32 %s232, 1
    %p236 = scmp.eq.s32.totalorder %s25, 1
    %p237 = scmp.ne.s32.totalorder %s232, %s234
    %p238 = scmp.eq.s32.totalorder %s25, 0
    %p239 = por %p237, %p238
    %p240 = scmp.ne.s32.totalorder %s232, %s234
    %p241 = scmp.eq.s32.totalorder %s30, 1
    %p242 = por %p240, %p241
    %p243 = scmp.ne.s32.totalorder %s234, %s235
    %p244 = scmp.eq.s32.totalorder %s30, 0
    %p245 = por %p243, %p244
    %p246 = scmp.ne.s32.totalorder %s234, %s235
    %p247 = scmp.eq.s32.totalorder %s31, 1
    %p248 = por %p246, %p247
    %p250 = scmp.ne.s32.totalorder %s235, %s249
    %p251 = scmp.eq.s32.totalorder %s31, 0
    %p252 = por %p250, %p251
    %s254 = sadd.s32 %s253, 1
    %p257 = scmp.eq.s32.totalorder %s25, 1
    %p258 = scmp.ne.s32.totalorder %s253, %s255
    %p259 = scmp.eq.s32.totalorder %s25, 0
    %p260 = por %p258, %p259
    %p261 = scmp.ne.s32.totalorder %s253, %s255
    %p262 = scmp.eq.s32.totalorder %s30, 1
    %p263 = por %p261, %p262
    %p264 = scmp.ne.s32.totalorder %s255, %s256
    %p265 = scmp.eq.s32.totalorder %s30, 0
    %p266 = por %p264, %p265
    %p267 = scmp.ne.s32.totalorder %s255, %s256
    %p268 = scmp.eq.s32.totalorder %s31, 1
    %p269 = por %p267, %p268
    %p271 = scmp.ne.s32.totalorder %s256, %s270
    %p272 = scmp.eq.s32.totalorder %s31, 0
    %p273 = por %p271, %p272
    %s275 = sadd.s32 %s274, 1
    %p278 = scmp.eq.s32.totalorder %s25, 1
    %p279 = scmp.ne.s32.totalorder %s274, %s276
    %p280 = scmp.eq.s32.totalorder %s25, 0
    %p281 = por %p279, %p280
    %p282 = scmp.ne.s32.totalorder %s274, %s276
    %p283 = scmp.eq.s32.totalorder %s30, 1
    %p284 = por %p282, %p283
    %p285 = scmp.ne.s32.totalorder %s276, %s277
    %p286 = scmp.eq.s32.totalorder %s30, 0
    %p287 = por %p285, %p286
    %p288 = scmp.ne.s32.totalorder %s276, %s277
    %p289 = scmp.eq.s32.totalorder %s31, 1
    %p290 = por %p288, %p289
    %p292 = scmp.ne.s32.totalorder %s277, %s291
    %p293 = scmp.eq.s32.totalorder %s31, 0
    %p294 = por %p292, %p293
    %s296 = sadd.s32 %s295, 1
    %p299 = scmp.eq.s32.totalorder %s25, 1
    %p300 = scmp.ne.s32.totalorder %s295, %s297
    %p301 = scmp.eq.s32.totalorder %s25, 0
    %p302 = por %p300, %p301
    %p303 = scmp.ne.s32.totalorder %s295, %s297
    %p304 = scmp.eq.s32.totalorder %s30, 1
    %p305 = por %p303, %p304
    %p306 = scmp.ne.s32.totalorder %s297, %s298
    %p307 = scmp.eq.s32.totalorder %s30, 0
    %p308 = por %p306, %p307
    %p309 = scmp.ne.s32.totalorder %s297, %s298
    %p310 = scmp.eq.s32.totalorder %s31, 1
    %p311 = por %p309, %p310
    %p313 = scmp.ne.s32.totalorder %s298, %s312
    %p314 = scmp.eq.s32.totalorder %s31, 0
    %p315 = por %p313, %p314
    %s317 = sadd.s32 %s316, 1
    %p320 = scmp.eq.s32.totalorder %s25, 1
    %p321 = scmp.ne.s32.totalorder %s316, %s318
    %p322 = scmp.eq.s32.totalorder %s25, 0
    %p323 = por %p321, %p322
    %p324 = scmp.ne.s32.totalorder %s316, %s318
    %p325 = scmp.eq.s32.totalorder %s30, 1
    %p326 = por %p324, %p325
    %p327 = scmp.ne.s32.totalorder %s318, %s319
    %p328 = scmp.eq.s32.totalorder %s30, 0
    %p329 = por %p327, %p328
    %p330 = scmp.ne.s32.totalorder %s318, %s319
    %p331 = scmp.eq.s32.totalorder %s31, 1
    %p332 = por %p330, %p331
    %p334 = scmp.ne.s32.totalorder %s319, %s333
    %p335 = scmp.eq.s32.totalorder %s31, 0
    %p336 = por %p334, %p335
    %s338 = sadd.s32 %s337, 1
    %p341 = scmp.eq.s32.totalorder %s25, 1
    %p342 = scmp.ne.s32.totalorder %s337, %s339
    %p343 = scmp.eq.s32.totalorder %s25, 0
    %p344 = por %p342, %p343
    %p345 = scmp.ne.s32.totalorder %s337, %s339
    %p346 = scmp.eq.s32.totalorder %s30, 1
    %p347 = por %p345, %p346
    %p348 = scmp.ne.s32.totalorder %s339, %s340
    %p349 = scmp.eq.s32.totalorder %s30, 0
    %p350 = por %p348, %p349
    %p351 = scmp.ne.s32.totalorder %s339, %s340
    %p352 = scmp.eq.s32.totalorder %s31, 1
    %p353 = por %p351, %p352
    %p355 = scmp.ne.s32.totalorder %s340, %s354
    %p356 = scmp.eq.s32.totalorder %s31, 0
    %p357 = por %p355, %p356
    %s359 = sadd.s32 %s358, 1
    %p362 = scmp.eq.s32.totalorder %s25, 1
    %p363 = scmp.ne.s32.totalorder %s358, %s360
    %p364 = scmp.eq.s32.totalorder %s25, 0
    %p365 = por %p363, %p364
    %p366 = scmp.ne.s32.totalorder %s358, %s360
    %p367 = scmp.eq.s32.totalorder %s30, 1
    %p368 = por %p366, %p367
    %p369 = scmp.ne.s32.totalorder %s360, %s361
    %p370 = scmp.eq.s32.totalorder %s30, 0
    %p371 = por %p369, %p370
    %p372 = scmp.ne.s32.totalorder %s360, %s361
    %p373 = scmp.eq.s32.totalorder %s31, 1
    %p374 = por %p372, %p373
    %p376 = scmp.ne.s32.totalorder %s361, %s375
    %p377 = scmp.eq.s32.totalorder %s31, 0
    %p378 = por %p376, %p377
    %s380 = sadd.s32 %s379, 1
    %p383 = scmp.eq.s32.totalorder %s25, 1
    %p384 = scmp.ne.s32.totalorder %s379, %s381
    %p385 = scmp.eq.s32.totalorder %s25, 0
    %p386 = por %p384, %p385
    %p387 = scmp.ne.s32.totalorder %s379, %s381
    %p388 = scmp.eq.s32.totalorder %s30, 1
    %p389 = por %p387, %p388
    %p390 = scmp.ne.s32.totalorder %s381, %s382
    %p391 = scmp.eq.s32.totalorder %s30, 0
    %p392 = por %p390, %p391
    %p393 = scmp.ne.s32.totalorder %s381, %s382
    %p394 = scmp.eq.s32.totalorder %s31, 1
    %p395 = por %p393, %p394
    %p397 = scmp.ne.s32.totalorder %s382, %s396
    %p398 = scmp.eq.s32.totalorder %s31, 0
    %p399 = por %p397, %p398
    %s400 = ssub.s32 %s25, %s32
    %p401 = scmp.eq.s32.totalorder %s400, 0
    %s403 = sadd.s32 %s402, 1
    %s404 = scalar_select %p401, %s402, %s403
    %p407 = pneg %p401
    %p408 = scmp.eq.s32.totalorder %s25, 1
    %p409 = por %p407, %p408
    %p410 = scmp.ne.s32.totalorder %s402, %s405
    %p411 = scmp.eq.s32.totalorder %s25, 0
    %p412 = por %p410, %p411
    %p413 = scmp.ne.s32.totalorder %s402, %s405
    %p414 = scmp.eq.s32.totalorder %s30, 1
    %p415 = por %p413, %p414
    %p416 = scmp.ne.s32.totalorder %s405, %s406
    %p417 = scmp.eq.s32.totalorder %s30, 0
    %p418 = por %p416, %p417
    %p419 = scmp.ne.s32.totalorder %s405, %s406
    %p420 = scmp.eq.s32.totalorder %s31, 1
    %p421 = por %p419, %p420
    %p423 = scmp.ne.s32.totalorder %s406, %s422
    %p424 = scmp.eq.s32.totalorder %s31, 0
    %p425 = por %p423, %p424
    %p426 = scmp.le.s32.totalorder 1, %s25
    %p427 = scmp.lt.s32.totalorder %s25, 3
    %p428 = pnand %p426, %p427
    %p429 = pneg %p428
    // Predicated region
    $region9: #{tpu_custom_call.1} parent=5 // pred_check
      _
    $region10: #{tpu_custom_call.1} parent=5 // pred_check_branch
      %431 = sbr.rel (%p428) target = $region12
    $region11: #{tpu_custom_call.1} parent=5 // pred_region
      %s432 = ssub.s32 %s25, 1
      // Predicated region
      $region13: #{tpu_custom_call.1} parent=11 // pred_check
        %p433 = pneg %p98
      $region14: #{tpu_custom_call.1} parent=11 // pred_check_branch
        %435 = sbr.rel (%p433) target = $region16
      $region15: #{tpu_custom_call.1} parent=11 // pred_region
        _
      $region16: #{tpu_custom_call.1} parent=11 // pred_fallthru
        _
      // Predicated region
      $region17: #{tpu_custom_call.1} parent=11 // pred_check
        %p436 = pneg %p119
      $region18: #{tpu_custom_call.1} parent=11 // pred_check_branch
        %438 = sbr.rel (%p436) target = $region20
      $region19: #{tpu_custom_call.1} parent=11 // pred_region
        _
      $region20: #{tpu_custom_call.1} parent=11 // pred_fallthru
        _
      // Predicated region
      $region21: #{tpu_custom_call.1} parent=11 // pred_check
        %p439 = pneg %p140
      $region22: #{tpu_custom_call.1} parent=11 // pred_check_branch
        %441 = sbr.rel (%p439) target = $region24
      $region23: #{tpu_custom_call.1} parent=11 // pred_region
        _
      $region24: #{tpu_custom_call.1} parent=11 // pred_fallthru
        _
      // Predicated region
      $region25: #{tpu_custom_call.1} parent=11 // pred_check
        %p442 = pneg %p161
      $region26: #{tpu_custom_call.1} parent=11 // pred_check_branch
        %444 = sbr.rel (%p442) target = $region28
      $region27: #{tpu_custom_call.1} parent=11 // pred_region
        _
      $region28: #{tpu_custom_call.1} parent=11 // pred_fallthru
        _
      // Predicated region
      $region29: #{tpu_custom_call.1} parent=11 // pred_check
        %p445 = pneg %p182
      $region30: #{tpu_custom_call.1} parent=11 // pred_check_branch
        %447 = sbr.rel (%p445) target = $region32
      $region31: #{tpu_custom_call.1} parent=11 // pred_region
        _
      $region32: #{tpu_custom_call.1} parent=11 // pred_fallthru
        _
      // Predicated region
      $region33: #{tpu_custom_call.1} parent=11 // pred_check
        %p448 = pneg %p203
      $region34: #{tpu_custom_call.1} parent=11 // pred_check_branch
        %450 = sbr.rel (%p448) target = $region36
      $region35: #{tpu_custom_call.1} parent=11 // pred_region
        _
      $region36: #{tpu_custom_call.1} parent=11 // pred_fallthru
        _
      // Predicated region
      $region37: #{tpu_custom_call.1} parent=11 // pred_check
        %p451 = pneg %p224
      $region38: #{tpu_custom_call.1} parent=11 // pred_check_branch
        %453 = sbr.rel (%p451) target = $region40
      $region39: #{tpu_custom_call.1} parent=11 // pred_region
        _
      $region40: #{tpu_custom_call.1} parent=11 // pred_fallthru
        _
      // Predicated region
      $region41: #{tpu_custom_call.1} parent=11 // pred_check
        %p454 = pneg %p245
      $region42: #{tpu_custom_call.1} parent=11 // pred_check_branch
        %456 = sbr.rel (%p454) target = $region44
      $region43: #{tpu_custom_call.1} parent=11 // pred_region
        _
      $region44: #{tpu_custom_call.1} parent=11 // pred_fallthru
        _
      // Predicated region
      $region45: #{tpu_custom_call.1} parent=11 // pred_check
        %p457 = pneg %p266
      $region46: #{tpu_custom_call.1} parent=11 // pred_check_branch
        %459 = sbr.rel (%p457) target = $region48
      $region47: #{tpu_custom_call.1} parent=11 // pred_region
        _
      $region48: #{tpu_custom_call.1} parent=11 // pred_fallthru
        _
      // Predicated region
      $region49: #{tpu_custom_call.1} parent=11 // pred_check
        %p460 = pneg %p287
      $region50: #{tpu_custom_call.1} parent=11 // pred_check_branch
        %462 = sbr.rel (%p460) target = $region52
      $region51: #{tpu_custom_call.1} parent=11 // pred_region
        _
      $region52: #{tpu_custom_call.1} parent=11 // pred_fallthru
        _
      // Predicated region
      $region53: #{tpu_custom_call.1} parent=11 // pred_check
        %p463 = pneg %p308
      $region54: #{tpu_custom_call.1} parent=11 // pred_check_branch
        %465 = sbr.rel (%p463) target = $region56
      $region55: #{tpu_custom_call.1} parent=11 // pred_region
        _
      $region56: #{tpu_custom_call.1} parent=11 // pred_fallthru
        _
      // Predicated region
      $region57: #{tpu_custom_call.1} parent=11 // pred_check
        %p466 = pneg %p329
      $region58: #{tpu_custom_call.1} parent=11 // pred_check_branch
        %468 = sbr.rel (%p466) target = $region60
      $region59: #{tpu_custom_call.1} parent=11 // pred_region
        _
      $region60: #{tpu_custom_call.1} parent=11 // pred_fallthru
        _
      // Predicated region
      $region61: #{tpu_custom_call.1} parent=11 // pred_check
        %p469 = pneg %p350
      $region62: #{tpu_custom_call.1} parent=11 // pred_check_branch
        %471 = sbr.rel (%p469) target = $region64
      $region63: #{tpu_custom_call.1} parent=11 // pred_region
        _
      $region64: #{tpu_custom_call.1} parent=11 // pred_fallthru
        _
      // Predicated region
      $region65: #{tpu_custom_call.1} parent=11 // pred_check
        %p472 = pneg %p371
      $region66: #{tpu_custom_call.1} parent=11 // pred_check_branch
        %474 = sbr.rel (%p472) target = $region68
      $region67: #{tpu_custom_call.1} parent=11 // pred_region
        _
      $region68: #{tpu_custom_call.1} parent=11 // pred_fallthru
        _
      // Predicated region
      $region69: #{tpu_custom_call.1} parent=11 // pred_check
        %p475 = pneg %p392
      $region70: #{tpu_custom_call.1} parent=11 // pred_check_branch
        %477 = sbr.rel (%p475) target = $region72
      $region71: #{tpu_custom_call.1} parent=11 // pred_region
        _
      $region72: #{tpu_custom_call.1} parent=11 // pred_fallthru
        _
    $region12: #{tpu_custom_call.1} parent=5 // pred_fallthru
      _
    %p478 = scmp.lt.s32.totalorder %s25, 2
    // Predicated region
    $region73: #{tpu_custom_call.1} parent=5 // pred_check
      %p479 = pneg %p478
    $region74: #{tpu_custom_call.1} parent=5 // pred_check_branch
      %481 = sbr.rel (%p479) target = $region76
    $region75: #{tpu_custom_call.1} parent=5 // pred_region
      // Predicated region
      $region77: #{tpu_custom_call.1} parent=75 // pred_check
        %p482 = pneg %p45
      $region78: #{tpu_custom_call.1} parent=75 // pred_check_branch
        %484 = sbr.rel (%p482) target = $region80
      $region79: #{tpu_custom_call.1} parent=75 // pred_region
        %s485 = smul.u32 64, %s25
        %p486 = scmp.lt.s32.totalorder %s485, 127
        %s487 = scalar_select %p486, %s485, 127
        %s488 = smul.addr %s487, 4
        %s489 = scalar_lea.vmem %s0, %s488
        %s490 = smul.u32 64, %s25
      $region80: #{tpu_custom_call.1} parent=75 // pred_fallthru
        _
      // Predicated region
      $region81: #{tpu_custom_call.1} parent=75 // pred_check
        %p491 = pneg %p71
      $region82: #{tpu_custom_call.1} parent=75 // pred_check_branch
        %493 = sbr.rel (%p491) target = $region84
      $region83: #{tpu_custom_call.1} parent=75 // pred_region
        %s494 = smul.u32 64, %s25
        %p495 = scmp.lt.s32.totalorder %s494, 127
        %s496 = scalar_select %p495, %s494, 127
        %s497 = smul.addr %s496, 8
        %s498 = scalar_lea.vmem %s1, %s497
        %s499 = smul.u32 64, %s25
      $region84: #{tpu_custom_call.1} parent=75 // pred_fallthru
        _
    $region76: #{tpu_custom_call.1} parent=5 // pred_fallthru
      _
    %p500 = scmp.le.s32.totalorder 1, %s25
    %p501 = scmp.lt.s32.totalorder %s25, 3
    %p502 = pnand %p500, %p501
    %p503 = pneg %p502
    // Predicated region
    $region85: #{tpu_custom_call.1} parent=5 // pred_check
      _
    $region86: #{tpu_custom_call.1} parent=5 // pred_check_branch
      %505 = sbr.rel (%p502) target = $region88
    $region87: #{tpu_custom_call.1} parent=5 // pred_region
      %s506 = ssub.s32 %s25, 1
      %s507 = smul.u32 64, %s30
      %p508 = scmp.lt.s32.totalorder %s507, 127
      %s509 = scalar_select %p508, %s507, 127
      %s510 = smul.addr %s509, 4
      %s511 = scalar_lea.vmem %s0, %s510
      %p512 = pneg %p51
      %p513 = pneg %p48
      %s514 = smul.u32 64, %s30
      %p515 = scmp.lt.s32.totalorder %s514, 127
      %s516 = scalar_select %p515, %s514, 127
      %s517 = smul.addr %s516, 8
      %s518 = scalar_lea.vmem %s1, %s517
      %p519 = pneg %p77
      %p520 = pneg %p74
      %p521 = pneg %p98
      %p522 = pneg %p95
      %p523 = pneg %p119
      %p524 = pneg %p116
      %p525 = pneg %p140
      %p526 = pneg %p137
      %p527 = pneg %p161
      %p528 = pneg %p158
      %p529 = pneg %p182
      %p530 = pneg %p179
      %p531 = pneg %p203
      %p532 = pneg %p200
      %p533 = pneg %p224
      %p534 = pneg %p221
      %p535 = pneg %p245
      %p536 = pneg %p242
      %p537 = pneg %p266
      %p538 = pneg %p263
      %p539 = pneg %p287
      %p540 = pneg %p284
      %p541 = pneg %p308
      %p542 = pneg %p305
      %p543 = pneg %p329
      %p544 = pneg %p326
      %p545 = pneg %p350
      %p546 = pneg %p347
      %p547 = pneg %p371
      %p548 = pneg %p368
      %p549 = pneg %p392
      %p550 = pneg %p389
      %p551 = pneg %p418
      %p552 = pneg %p415
      %s553 = smul.u32 64, %s30
      %p554 = scmp.lt.s32.totalorder %s553, 127
      %s555 = scalar_select %p554, %s553, 127
      %s556 = smul.addr %s555, 8
      %s557 = scalar_lea.vmem %s17, %s556
      %s558 = smul.u32 64, %s30
      %p559 = scmp.lt.s32.totalorder %s558, 127
      %s560 = scalar_select %p559, %s558, 127
      %s561 = smul.addr %s560, 4
      %s562 = scalar_lea.vmem %s0, %s561
      %s563 = smul.u32 64, %s30
      %s564 = smul.u32 64, %s30
      %p565 = scmp.lt.s32.totalorder %s564, 127
      %s566 = scalar_select %p565, %s564, 127
      %s567 = smul.addr %s566, 8
      %s568 = scalar_lea.vmem %s1, %s567
      %s569 = smul.u32 64, %s30
      %s570 = smul.u32 64, %s30
      %p571 = scmp.lt.s32.totalorder %s570, 127
      %s572 = scalar_select %p571, %s570, 127
      %s573 = smul.addr %s572, 8
      %s574 = scalar_lea.vmem %s17, %s573
      %s575 = smul.u32 64, %s30
      %v577 = vld [vmem:[%s562] sm:$0xf]
      %v578 = vld [vmem:[%s562 + $0x4] sm:$0xf]
      %v579 = vld [vmem:[%s562 + $0x8] sm:$0xf]
      %v580 = vld [vmem:[%s562 + $0xc] sm:$0xf]
      %v581 = vld [vmem:[%s562 + $0x10] sm:$0xf]
      %v582 = vld [vmem:[%s562 + $0x14] sm:$0xf]
      %v583 = vld [vmem:[%s562 + $0x18] sm:$0xf]
      %v584 = vld [vmem:[%s562 + $0x1c] sm:$0xf]
      %v585 = vld [vmem:[%s562 + $0x20] sm:$0xf]
      %v586 = vld [vmem:[%s562 + $0x24] sm:$0xf]
      %v587 = vld [vmem:[%s562 + $0x28] sm:$0xf]
      %v588 = vld [vmem:[%s562 + $0x2c] sm:$0xf]
      %v589 = vld [vmem:[%s562 + $0x30] sm:$0xf]
      %v590 = vld [vmem:[%s562 + $0x34] sm:$0xf]
      %v591 = vld [vmem:[%s562 + $0x38] sm:$0xf]
      %v592 = vld [vmem:[%s562 + $0x3c] sm:$0xf]
      %v593 = vld [vmem:[%s562 + $0x40] sm:$0xf]
      %v594 = vld [vmem:[%s562 + $0x44] sm:$0xf]
      %v595 = vld [vmem:[%s562 + $0x48] sm:$0xf]
      %v596 = vld [vmem:[%s562 + $0x4c] sm:$0xf]
      %v597 = vld [vmem:[%s562 + $0x50] sm:$0xf]
      %v598 = vld [vmem:[%s562 + $0x54] sm:$0xf]
      %v599 = vld [vmem:[%s562 + $0x58] sm:$0xf]
      %v600 = vld [vmem:[%s562 + $0x5c] sm:$0xf]
      %v601 = vld [vmem:[%s562 + $0x60] sm:$0xf]
      %v602 = vld [vmem:[%s562 + $0x64] sm:$0xf]
      %v603 = vld [vmem:[%s562 + $0x68] sm:$0xf]
      %v604 = vld [vmem:[%s562 + $0x6c] sm:$0xf]
      %v605 = vld [vmem:[%s562 + $0x70] sm:$0xf]
      %v606 = vld [vmem:[%s562 + $0x74] sm:$0xf]
      %v607 = vld [vmem:[%s562 + $0x78] sm:$0xf]
      %v608 = vld [vmem:[%s562 + $0x7c] sm:$0xf]
      %v609 = vld [vmem:[%s562 + $0x80] sm:$0xf]
      %v610 = vld [vmem:[%s562 + $0x84] sm:$0xf]
      %v611 = vld [vmem:[%s562 + $0x88] sm:$0xf]
      %v612 = vld [vmem:[%s562 + $0x8c] sm:$0xf]
      %v613 = vld [vmem:[%s562 + $0x90] sm:$0xf]
      %v614 = vld [vmem:[%s562 + $0x94] sm:$0xf]
      %v615 = vld [vmem:[%s562 + $0x98] sm:$0xf]
      %v616 = vld [vmem:[%s562 + $0x9c] sm:$0xf]
      %v617 = vld [vmem:[%s562 + $0xa0] sm:$0xf]
      %v618 = vld [vmem:[%s562 + $0xa4] sm:$0xf]
      %v619 = vld [vmem:[%s562 + $0xa8] sm:$0xf]
      %v620 = vld [vmem:[%s562 + $0xac] sm:$0xf]
      %v621 = vld [vmem:[%s562 + $0xb0] sm:$0xf]
      %v622 = vld [vmem:[%s562 + $0xb4] sm:$0xf]
      %v623 = vld [vmem:[%s562 + $0xb8] sm:$0xf]
      %v624 = vld [vmem:[%s562 + $0xbc] sm:$0xf]
      %v625 = vld [vmem:[%s562 + $0xc0] sm:$0xf]
      %v626 = vld [vmem:[%s562 + $0xc4] sm:$0xf]
      %v627 = vld [vmem:[%s562 + $0xc8] sm:$0xf]
      %v628 = vld [vmem:[%s562 + $0xcc] sm:$0xf]
      %v629 = vld [vmem:[%s562 + $0xd0] sm:$0xf]
      %v630 = vld [vmem:[%s562 + $0xd4] sm:$0xf]
      %v631 = vld [vmem:[%s562 + $0xd8] sm:$0xf]
      %v632 = vld [vmem:[%s562 + $0xdc] sm:$0xf]
      %v633 = vld [vmem:[%s562 + $0xe0] sm:$0xf]
      %v634 = vld [vmem:[%s562 + $0xe4] sm:$0xf]
      %v635 = vld [vmem:[%s562 + $0xe8] sm:$0xf]
      %v636 = vld [vmem:[%s562 + $0xec] sm:$0xf]
      %v637 = vld [vmem:[%s562 + $0xf0] sm:$0xf]
      %v638 = vld [vmem:[%s562 + $0xf4] sm:$0xf]
      %v639 = vld [vmem:[%s562 + $0xf8] sm:$0xf]
      %v640 = vld [vmem:[%s562 + $0xfc] sm:$0xf]
      %v641 = vld [vmem:[%s2] sm:$0xff]
      %v642 = vld [vmem:[%s2 + $0x8] sm:$0xff]
      %v643 = vld [vmem:[%s2 + $0x10] sm:$0xff]
      %v644 = vld [vmem:[%s2 + $0x18] sm:$0xff]
      %v645 = vld [vmem:[%s2 + $0x20] sm:$0xff]
      %v646 = vld [vmem:[%s2 + $0x28] sm:$0xff]
      %v647 = vld [vmem:[%s2 + $0x30] sm:$0xff]
      %v648 = vld [vmem:[%s2 + $0x38] sm:$0xff]
      %v649 = vld [vmem:[%s2 + $0x40] sm:$0xff]
      %v650 = vld [vmem:[%s2 + $0x48] sm:$0xff]
      %v651 = vld [vmem:[%s2 + $0x50] sm:$0xff]
      %v652 = vld [vmem:[%s2 + $0x58] sm:$0xff]
      %v653 = vld [vmem:[%s2 + $0x60] sm:$0xff]
      %v654 = vld [vmem:[%s2 + $0x68] sm:$0xff]
      %v655 = vld [vmem:[%s2 + $0x70] sm:$0xff]
      %v656 = vld [vmem:[%s2 + $0x78] sm:$0xff]
      %v657 = vld [vmem:[%s3] sm:$0x3]
      %v659 = vlaneseq
      %v660 = vshrl.u32 %v659, 7
      %v661 = vsub.s32 0, %v660
      %v662 = vrot.slane %v657, %v661
      %v663 = vlaneseq
      %v664 = vshrl.u32 %v663, 7
      %v665 = vsub.s32 1, %v664
      %v666 = vrot.slane %v657, %v665
      %v733 = vunpack.c.l.b16 %v577
      %v734 = vunpack.c.l.b16 %v578
      %v735 = vunpack.c.l.b16 %v579
      %v736 = vunpack.c.l.b16 %v580
      %v737 = vunpack.c.l.b16 %v581
      %v738 = vunpack.c.l.b16 %v582
      %v739 = vunpack.c.l.b16 %v583
      %v740 = vunpack.c.l.b16 %v584
      %v741 = vunpack.c.l.b16 %v585
      %v742 = vunpack.c.l.b16 %v586
      %v743 = vunpack.c.l.b16 %v587
      %v744 = vunpack.c.l.b16 %v588
      %v745 = vunpack.c.l.b16 %v589
      %v746 = vunpack.c.l.b16 %v590
      %v747 = vunpack.c.l.b16 %v591
      %v748 = vunpack.c.l.b16 %v592
      %v749 = vunpack.c.l.b16 %v593
      %v750 = vunpack.c.l.b16 %v594
      %v751 = vunpack.c.l.b16 %v595
      %v752 = vunpack.c.l.b16 %v596
      %v753 = vunpack.c.l.b16 %v597
      %v754 = vunpack.c.l.b16 %v598
      %v755 = vunpack.c.l.b16 %v599
      %v756 = vunpack.c.l.b16 %v600
      %v757 = vunpack.c.l.b16 %v601
      %v758 = vunpack.c.l.b16 %v602
      %v759 = vunpack.c.l.b16 %v603
      %v760 = vunpack.c.l.b16 %v604
      %v761 = vunpack.c.l.b16 %v605
      %v762 = vunpack.c.l.b16 %v606
      %v763 = vunpack.c.l.b16 %v607
      %v764 = vunpack.c.l.b16 %v608
      %v765 = vunpack.c.l.b16 %v609
      %v766 = vunpack.c.l.b16 %v610
      %v767 = vunpack.c.l.b16 %v611
      %v768 = vunpack.c.l.b16 %v612
      %v769 = vunpack.c.l.b16 %v613
      %v770 = vunpack.c.l.b16 %v614
      %v771 = vunpack.c.l.b16 %v615
      %v772 = vunpack.c.l.b16 %v616
      %v773 = vunpack.c.l.b16 %v617
      %v774 = vunpack.c.l.b16 %v618
      %v775 = vunpack.c.l.b16 %v619
      %v776 = vunpack.c.l.b16 %v620
      %v777 = vunpack.c.l.b16 %v621
      %v778 = vunpack.c.l.b16 %v622
      %v779 = vunpack.c.l.b16 %v623
      %v780 = vunpack.c.l.b16 %v624
      %v781 = vunpack.c.l.b16 %v625
      %v782 = vunpack.c.l.b16 %v626
      %v783 = vunpack.c.l.b16 %v627
      %v784 = vunpack.c.l.b16 %v628
      %v785 = vunpack.c.l.b16 %v629
      %v786 = vunpack.c.l.b16 %v630
      %v787 = vunpack.c.l.b16 %v631
      %v788 = vunpack.c.l.b16 %v632
      %v789 = vunpack.c.l.b16 %v633
      %v790 = vunpack.c.l.b16 %v634
      %v791 = vunpack.c.l.b16 %v635
      %v792 = vunpack.c.l.b16 %v636
      %v793 = vunpack.c.l.b16 %v637
      %v794 = vunpack.c.l.b16 %v638
      %v795 = vunpack.c.l.b16 %v639
      %v796 = vunpack.c.l.b16 %v640
      %v797 = vpack.c.b16 %v734, %v733
      %v798 = vpack.c.b16 %v736, %v735
      %v799 = vpack.c.b16 %v738, %v737
      %v800 = vpack.c.b16 %v740, %v739
      %v801 = vpack.c.b16 %v742, %v741
      %v802 = vpack.c.b16 %v744, %v743
      %v803 = vpack.c.b16 %v746, %v745
      %v804 = vpack.c.b16 %v748, %v747
      %v805 = vpack.c.b16 %v750, %v749
      %v806 = vpack.c.b16 %v752, %v751
      %v807 = vpack.c.b16 %v754, %v753
      %v808 = vpack.c.b16 %v756, %v755
      %v809 = vpack.c.b16 %v758, %v757
      %v810 = vpack.c.b16 %v760, %v759
      %v811 = vpack.c.b16 %v762, %v761
      %v812 = vpack.c.b16 %v764, %v763
      %v813 = vpack.c.b16 %v766, %v765
      %v814 = vpack.c.b16 %v768, %v767
      %v815 = vpack.c.b16 %v770, %v769
      %v816 = vpack.c.b16 %v772, %v771
      %v817 = vpack.c.b16 %v774, %v773
      %v818 = vpack.c.b16 %v776, %v775
      %v819 = vpack.c.b16 %v778, %v777
      %v820 = vpack.c.b16 %v780, %v779
      %v821 = vpack.c.b16 %v782, %v781
      %v822 = vpack.c.b16 %v784, %v783
      %v823 = vpack.c.b16 %v786, %v785
      %v824 = vpack.c.b16 %v788, %v787
      %v825 = vpack.c.b16 %v790, %v789
      %v826 = vpack.c.b16 %v792, %v791
      %v827 = vpack.c.b16 %v794, %v793
      %v828 = vpack.c.b16 %v796, %v795
      %v877 = vunpack.c.l.b16 %v641
      %v878 = vunpack.c.h.b16 %v641
      %v879 = vunpack.c.l.b16 %v642
      %v880 = vunpack.c.h.b16 %v642
      %v881 = vunpack.c.l.b16 %v643
      %v882 = vunpack.c.h.b16 %v643
      %v883 = vunpack.c.l.b16 %v644
      %v884 = vunpack.c.h.b16 %v644
      %v885 = vunpack.c.l.b16 %v645
      %v886 = vunpack.c.h.b16 %v645
      %v887 = vunpack.c.l.b16 %v646
      %v888 = vunpack.c.h.b16 %v646
      %v889 = vunpack.c.l.b16 %v647
      %v890 = vunpack.c.h.b16 %v647
      %v891 = vunpack.c.l.b16 %v648
      %v892 = vunpack.c.h.b16 %v648
      %v893 = vunpack.c.l.b16 %v649
      %v894 = vunpack.c.h.b16 %v649
      %v895 = vunpack.c.l.b16 %v650
      %v896 = vunpack.c.h.b16 %v650
      %v897 = vunpack.c.l.b16 %v651
      %v898 = vunpack.c.h.b16 %v651
      %v899 = vunpack.c.l.b16 %v652
      %v900 = vunpack.c.h.b16 %v652
      %v901 = vunpack.c.l.b16 %v653
      %v902 = vunpack.c.h.b16 %v653
      %v903 = vunpack.c.l.b16 %v654
      %v904 = vunpack.c.h.b16 %v654
      %v905 = vunpack.c.l.b16 %v655
      %v906 = vunpack.c.h.b16 %v655
      %v907 = vunpack.c.l.b16 %v656
      %v908 = vunpack.c.h.b16 %v656
      %v909 = vpack.c.b16 %v879, %v877
      %v910 = vpack.c.b16 %v880, %v878
      %v911 = vpack.c.b16 %v883, %v881
      %v912 = vpack.c.b16 %v884, %v882
      %v913 = vpack.c.b16 %v887, %v885
      %v914 = vpack.c.b16 %v888, %v886
      %v915 = vpack.c.b16 %v891, %v889
      %v916 = vpack.c.b16 %v892, %v890
      %v917 = vpack.c.b16 %v895, %v893
      %v918 = vpack.c.b16 %v896, %v894
      %v919 = vpack.c.b16 %v899, %v897
      %v920 = vpack.c.b16 %v900, %v898
      %v921 = vpack.c.b16 %v903, %v901
      %v922 = vpack.c.b16 %v904, %v902
      %v923 = vpack.c.b16 %v907, %v905
      %v924 = vpack.c.b16 %v908, %v906
      %941 = vmatprep.subr.bf16.mxu0 %v910
      %942 = vmatpush1.bf16.msra.mxu0 %v909
      %943 = vmatprep.subr.bf16.mxu0 %v912
      %944 = vmatpush1.bf16.msra.mxu0 %v911
      %945 = vmatprep.subr.bf16.mxu0 %v914
      %946 = vmatpush1.bf16.msra.mxu0 %v913
      %947 = vmatprep.subr.bf16.mxu0 %v916
      %948 = vmatpush1.bf16.msra.mxu0 %v915
      %949 = vmatprep.subr.bf16.mxu0 %v918
      %950 = vmatpush1.bf16.msra.mxu0 %v917
      %951 = vmatprep.subr.bf16.mxu0 %v920
      %952 = vmatpush1.bf16.msra.mxu0 %v919
      %953 = vmatprep.subr.bf16.mxu0 %v922
      %954 = vmatpush1.bf16.msra.mxu0 %v921
      %955 = vmatprep.subr.bf16.mxu0 %v924
      %956 = vmatpush1.bf16.msra.mxu0 %v923
      %957 = vmatprep.subr.bf16.mxu0 0
      %958 = vmatpush1.bf16.msra.mxu0 0
      %959 = vmatprep.subr.bf16.mxu0 0
      %960 = vmatpush1.bf16.msra.mxu0 0
      %961 = vmatprep.subr.bf16.mxu0 0
      %962 = vmatpush1.bf16.msra.mxu0 0
      %963 = vmatprep.subr.bf16.mxu0 0
      %964 = vmatpush1.bf16.msra.mxu0 0
      %965 = vmatprep.subr.bf16.mxu0 0
      %966 = vmatpush1.bf16.msra.mxu0 0
      %967 = vmatprep.subr.bf16.mxu0 0
      %968 = vmatpush1.bf16.msra.mxu0 0
      %969 = vmatprep.subr.bf16.mxu0 0
      %970 = vmatpush1.bf16.msra.mxu0 0
      %971 = vmatprep.subr.bf16.mxu0 0
      %972 = vmatpush1.bf16.msra.mxu0 0
      %973 = vmatprep.mubr.bf16.mxu0 0
      %974 = vmatmul.mubr.bf16.gmra.mrb[0].mxu0 %v797
      %v975 = vpop.f32.mrb[0].mxu0
      %v976 = vadd.f32 %v662, %v975
      %v977 = vpop.f32.mrb[0].mxu0
      %v978 = vadd.f32 %v666, %v977
      %v979 = vpop.f32.mrb[0].mxu0
      %v980 = vadd.f32 %v662, %v979
      %v981 = vpop.f32.mrb[0].mxu0
      %v982 = vadd.f32 %v666, %v981
      %983 = vmatprep.mubr.bf16.mxu0 0
      %984 = vmatmul.mubr.bf16.gmra.mrb[0].mxu0 %v798
      %v985 = vpop.f32.mrb[0].mxu0
      %v986 = vadd.f32 %v662, %v985
      %v987 = vpop.f32.mrb[0].mxu0
      %v988 = vadd.f32 %v666, %v987
      %v989 = vpop.f32.mrb[0].mxu0
      %v990 = vadd.f32 %v662, %v989
      %v991 = vpop.f32.mrb[0].mxu0
      %v992 = vadd.f32 %v666, %v991
      %993 = vmatprep.mubr.bf16.mxu0 0
      %994 = vmatmul.mubr.bf16.gmra.mrb[0].mxu0 %v799
      %v995 = vpop.f32.mrb[0].mxu0
      %v996 = vadd.f32 %v662, %v995
      %v997 = vpop.f32.mrb[0].mxu0
      %v998 = vadd.f32 %v666, %v997
      %v999 = vpop.f32.mrb[0].mxu0
      %v1000 = vadd.f32 %v662, %v999
      %v1001 = vpop.f32.mrb[0].mxu0
      %v1002 = vadd.f32 %v666, %v1001
      %1003 = vmatprep.mubr.bf16.mxu0 0
      %1004 = vmatmul.mubr.bf16.gmra.mrb[0].mxu0 %v800
      %v1005 = vpop.f32.mrb[0].mxu0
      %v1006 = vadd.f32 %v662, %v1005
      %v1007 = vpop.f32.mrb[0].mxu0
      %v1008 = vadd.f32 %v666, %v1007
      %v1009 = vpop.f32.mrb[0].mxu0
      %v1010 = vadd.f32 %v662, %v1009
      %v1011 = vpop.f32.mrb[0].mxu0
      %v1012 = vadd.f32 %v666, %v1011
      %1013 = vmatprep.mubr.bf16.mxu0 0
      %1014 = vmatmul.mubr.bf16.gmra.mrb[0].mxu0 %v801
      %v1015 = vpop.f32.mrb[0].mxu0
      %v1016 = vadd.f32 %v662, %v1015
      %v1017 = vpop.f32.mrb[0].mxu0
      %v1018 = vadd.f32 %v666, %v1017
      %v1019 = vpop.f32.mrb[0].mxu0
      %v1020 = vadd.f32 %v662, %v1019
      %v1021 = vpop.f32.mrb[0].mxu0
      %v1022 = vadd.f32 %v666, %v1021
      %1023 = vmatprep.mubr.bf16.mxu0 0
      %1024 = vmatmul.mubr.bf16.gmra.mrb[0].mxu0 %v802
      %v1025 = vpop.f32.mrb[0].mxu0
      %v1026 = vadd.f32 %v662, %v1025
      %v1027 = vpop.f32.mrb[0].mxu0
      %v1028 = vadd.f32 %v666, %v1027
      %v1029 = vpop.f32.mrb[0].mxu0
      %v1030 = vadd.f32 %v662, %v1029
      %v1031 = vpop.f32.mrb[0].mxu0
      %v1032 = vadd.f32 %v666, %v1031
      %1033 = vmatprep.mubr.bf16.mxu0 0
      %1034 = vmatmul.mubr.bf16.gmra.mrb[0].mxu0 %v803
      %v1035 = vpop.f32.mrb[0].mxu0
      %v1036 = vadd.f32 %v662, %v1035
      %v1037 = vpop.f32.mrb[0].mxu0
      %v1038 = vadd.f32 %v666, %v1037
      %v1039 = vpop.f32.mrb[0].mxu0
      %v1040 = vadd.f32 %v662, %v1039
      %v1041 = vpop.f32.mrb[0].mxu0
      %v1042 = vadd.f32 %v666, %v1041
      %1043 = vmatprep.mubr.bf16.mxu0 0
      %1044 = vmatmul.mubr.bf16.gmra.mrb[0].mxu0 %v804
      %v1045 = vpop.f32.mrb[0].mxu0
      %v1046 = vadd.f32 %v662, %v1045
      %v1047 = vpop.f32.mrb[0].mxu0
      %v1048 = vadd.f32 %v666, %v1047
      %v1049 = vpop.f32.mrb[0].mxu0
      %v1050 = vadd.f32 %v662, %v1049
      %v1051 = vpop.f32.mrb[0].mxu0
      %v1052 = vadd.f32 %v666, %v1051
      %1053 = vmatprep.mubr.bf16.mxu0 0
      %1054 = vmatmul.mubr.bf16.gmra.mrb[0].mxu0 %v805
      %v1055 = vpop.f32.mrb[0].mxu0
      %v1056 = vadd.f32 %v662, %v1055
      %v1057 = vpop.f32.mrb[0].mxu0
      %v1058 = vadd.f32 %v666, %v1057
      %v1059 = vpop.f32.mrb[0].mxu0
      %v1060 = vadd.f32 %v662, %v1059
      %v1061 = vpop.f32.mrb[0].mxu0
      %v1062 = vadd.f32 %v666, %v1061
      %1063 = vmatprep.mubr.bf16.mxu0 0
      %1064 = vmatmul.mubr.bf16.gmra.mrb[0].mxu0 %v806
      %v1065 = vpop.f32.mrb[0].mxu0
      %v1066 = vadd.f32 %v662, %v1065
      %v1067 = vpop.f32.mrb[0].mxu0
      %v1068 = vadd.f32 %v666, %v1067
      %v1069 = vpop.f32.mrb[0].mxu0
      %v1070 = vadd.f32 %v662, %v1069
      %v1071 = vpop.f32.mrb[0].mxu0
      %v1072 = vadd.f32 %v666, %v1071
      %1073 = vmatprep.mubr.bf16.mxu0 0
      %1074 = vmatmul.mubr.bf16.gmra.mrb[0].mxu0 %v807
      %v1075 = vpop.f32.mrb[0].mxu0
      %v1076 = vadd.f32 %v662, %v1075
      %v1077 = vpop.f32.mrb[0].mxu0
      %v1078 = vadd.f32 %v666, %v1077
      %v1079 = vpop.f32.mrb[0].mxu0
      %v1080 = vadd.f32 %v662, %v1079
      %v1081 = vpop.f32.mrb[0].mxu0
      %v1082 = vadd.f32 %v666, %v1081
      %1083 = vmatprep.mubr.bf16.mxu0 0
      %1084 = vmatmul.mubr.bf16.gmra.mrb[0].mxu0 %v808
      %v1085 = vpop.f32.mrb[0].mxu0
      %v1086 = vadd.f32 %v662, %v1085
      %v1087 = vpop.f32.mrb[0].mxu0
      %v1088 = vadd.f32 %v666, %v1087
      %v1089 = vpop.f32.mrb[0].mxu0
      %v1090 = vadd.f32 %v662, %v1089
      %v1091 = vpop.f32.mrb[0].mxu0
      %v1092 = vadd.f32 %v666, %v1091
      %1093 = vmatprep.mubr.bf16.mxu0 0
      %1094 = vmatmul.mubr.bf16.gmra.mrb[0].mxu0 %v809
      %v1095 = vpop.f32.mrb[0].mxu0
      %v1096 = vadd.f32 %v662, %v1095
      %v1097 = vpop.f32.mrb[0].mxu0
      %v1098 = vadd.f32 %v666, %v1097
      %v1099 = vpop.f32.mrb[0].mxu0
      %v1100 = vadd.f32 %v662, %v1099
      %v1101 = vpop.f32.mrb[0].mxu0
      %v1102 = vadd.f32 %v666, %v1101
      %1103 = vmatprep.mubr.bf16.mxu0 0
      %1104 = vmatmul.mubr.bf16.gmra.mrb[0].mxu0 %v810
      %v1105 = vpop.f32.mrb[0].mxu0
      %v1106 = vadd.f32 %v662, %v1105
      %v1107 = vpop.f32.mrb[0].mxu0
      %v1108 = vadd.f32 %v666, %v1107
      %v1109 = vpop.f32.mrb[0].mxu0
      %v1110 = vadd.f32 %v662, %v1109
      %v1111 = vpop.f32.mrb[0].mxu0
      %v1112 = vadd.f32 %v666, %v1111
      %1113 = vmatprep.mubr.bf16.mxu0 0
      %1114 = vmatmul.mubr.bf16.gmra.mrb[0].mxu0 %v811
      %v1115 = vpop.f32.mrb[0].mxu0
      %v1116 = vadd.f32 %v662, %v1115
      %v1117 = vpop.f32.mrb[0].mxu0
      %v1118 = vadd.f32 %v666, %v1117
      %v1119 = vpop.f32.mrb[0].mxu0
      %v1120 = vadd.f32 %v662, %v1119
      %v1121 = vpop.f32.mrb[0].mxu0
      %v1122 = vadd.f32 %v666, %v1121
      %1123 = vmatprep.mubr.bf16.mxu0 0
      %1124 = vmatmul.mubr.bf16.gmra.mrb[0].mxu0 %v812
      %v1125 = vpop.f32.mrb[0].mxu0
      %v1126 = vadd.f32 %v662, %v1125
      %v1127 = vpop.f32.mrb[0].mxu0
      %v1128 = vadd.f32 %v666, %v1127
      %v1129 = vpop.f32.mrb[0].mxu0
      %v1130 = vadd.f32 %v662, %v1129
      %v1131 = vpop.f32.mrb[0].mxu0
      %v1132 = vadd.f32 %v666, %v1131
      %1133 = vmatprep.mubr.bf16.mxu0 0
      %1134 = vmatmul.mubr.bf16.gmra.mrb[0].mxu0 %v813
      %v1135 = vpop.f32.mrb[0].mxu0
      %v1136 = vadd.f32 %v662, %v1135
      %v1137 = vpop.f32.mrb[0].mxu0
      %v1138 = vadd.f32 %v666, %v1137
      %v1139 = vpop.f32.mrb[0].mxu0
      %v1140 = vadd.f32 %v662, %v1139
      %v1141 = vpop.f32.mrb[0].mxu0
      %v1142 = vadd.f32 %v666, %v1141
      %1143 = vmatprep.mubr.bf16.mxu0 0
      %1144 = vmatmul.mubr.bf16.gmra.mrb[0].mxu0 %v814
      %v1145 = vpop.f32.mrb[0].mxu0
      %v1146 = vadd.f32 %v662, %v1145
      %v1147 = vpop.f32.mrb[0].mxu0
      %v1148 = vadd.f32 %v666, %v1147
      %v1149 = vpop.f32.mrb[0].mxu0
      %v1150 = vadd.f32 %v662, %v1149
      %v1151 = vpop.f32.mrb[0].mxu0
      %v1152 = vadd.f32 %v666, %v1151
      %1153 = vmatprep.mubr.bf16.mxu0 0
      %1154 = vmatmul.mubr.bf16.gmra.mrb[0].mxu0 %v815
      %v1155 = vpop.f32.mrb[0].mxu0
      %v1156 = vadd.f32 %v662, %v1155
      %v1157 = vpop.f32.mrb[0].mxu0
      %v1158 = vadd.f32 %v666, %v1157
      %v1159 = vpop.f32.mrb[0].mxu0
      %v1160 = vadd.f32 %v662, %v1159
      %v1161 = vpop.f32.mrb[0].mxu0
      %v1162 = vadd.f32 %v666, %v1161
      %1163 = vmatprep.mubr.bf16.mxu0 0
      %1164 = vmatmul.mubr.bf16.gmra.mrb[0].mxu0 %v816
      %v1165 = vpop.f32.mrb[0].mxu0
      %v1166 = vadd.f32 %v662, %v1165
      %v1167 = vpop.f32.mrb[0].mxu0
      %v1168 = vadd.f32 %v666, %v1167
      %v1169 = vpop.f32.mrb[0].mxu0
      %v1170 = vadd.f32 %v662, %v1169
      %v1171 = vpop.f32.mrb[0].mxu0
      %v1172 = vadd.f32 %v666, %v1171
      %1173 = vmatprep.mubr.bf16.mxu0 0
      %1174 = vmatmul.mubr.bf16.gmra.mrb[0].mxu0 %v817
      %v1175 = vpop.f32.mrb[0].mxu0
      %v1176 = vadd.f32 %v662, %v1175
      %v1177 = vpop.f32.mrb[0].mxu0
      %v1178 = vadd.f32 %v666, %v1177
      %v1179 = vpop.f32.mrb[0].mxu0
      %v1180 = vadd.f32 %v662, %v1179
      %v1181 = vpop.f32.mrb[0].mxu0
      %v1182 = vadd.f32 %v666, %v1181
      %1183 = vmatprep.mubr.bf16.mxu0 0
      %1184 = vmatmul.mubr.bf16.gmra.mrb[0].mxu0 %v818
      %v1185 = vpop.f32.mrb[0].mxu0
      %v1186 = vadd.f32 %v662, %v1185
      %v1187 = vpop.f32.mrb[0].mxu0
      %v1188 = vadd.f32 %v666, %v1187
      %v1189 = vpop.f32.mrb[0].mxu0
      %v1190 = vadd.f32 %v662, %v1189
      %v1191 = vpop.f32.mrb[0].mxu0
      %v1192 = vadd.f32 %v666, %v1191
      %1193 = vmatprep.mubr.bf16.mxu0 0
      %1194 = vmatmul.mubr.bf16.gmra.mrb[0].mxu0 %v819
      %v1195 = vpop.f32.mrb[0].mxu0
      %v1196 = vadd.f32 %v662, %v1195
      %v1197 = vpop.f32.mrb[0].mxu0
      %v1198 = vadd.f32 %v666, %v1197
      %v1199 = vpop.f32.mrb[0].mxu0
      %v1200 = vadd.f32 %v662, %v1199
      %v1201 = vpop.f32.mrb[0].mxu0
      %v1202 = vadd.f32 %v666, %v1201
      %1203 = vmatprep.mubr.bf16.mxu0 0
      %1204 = vmatmul.mubr.bf16.gmra.mrb[0].mxu0 %v820
      %v1205 = vpop.f32.mrb[0].mxu0
      %v1206 = vadd.f32 %v662, %v1205
      %v1207 = vpop.f32.mrb[0].mxu0
      %v1208 = vadd.f32 %v666, %v1207
      %v1209 = vpop.f32.mrb[0].mxu0
      %v1210 = vadd.f32 %v662, %v1209
      %v1211 = vpop.f32.mrb[0].mxu0
      %v1212 = vadd.f32 %v666, %v1211
      %1213 = vmatprep.mubr.bf16.mxu0 0
      %1214 = vmatmul.mubr.bf16.gmra.mrb[0].mxu0 %v821
      %v1215 = vpop.f32.mrb[0].mxu0
      %v1216 = vadd.f32 %v662, %v1215
      %v1217 = vpop.f32.mrb[0].mxu0
      %v1218 = vadd.f32 %v666, %v1217
      %v1219 = vpop.f32.mrb[0].mxu0
      %v1220 = vadd.f32 %v662, %v1219
      %v1221 = vpop.f32.mrb[0].mxu0
      %v1222 = vadd.f32 %v666, %v1221
      %1223 = vmatprep.mubr.bf16.mxu0 0
      %1224 = vmatmul.mubr.bf16.gmra.mrb[0].mxu0 %v822
      %v1225 = vpop.f32.mrb[0].mxu0
      %v1226 = vadd.f32 %v662, %v1225
      %v1227 = vpop.f32.mrb[0].mxu0
      %v1228 = vadd.f32 %v666, %v1227
      %v1229 = vpop.f32.mrb[0].mxu0
      %v1230 = vadd.f32 %v662, %v1229
      %v1231 = vpop.f32.mrb[0].mxu0
      %v1232 = vadd.f32 %v666, %v1231
      %1233 = vmatprep.mubr.bf16.mxu0 0
      %1234 = vmatmul.mubr.bf16.gmra.mrb[0].mxu0 %v823
      %v1235 = vpop.f32.mrb[0].mxu0
      %v1236 = vadd.f32 %v662, %v1235
      %v1237 = vpop.f32.mrb[0].mxu0
      %v1238 = vadd.f32 %v666, %v1237
      %v1239 = vpop.f32.mrb[0].mxu0
      %v1240 = vadd.f32 %v662, %v1239
      %v1241 = vpop.f32.mrb[0].mxu0
      %v1242 = vadd.f32 %v666, %v1241
      %1243 = vmatprep.mubr.bf16.mxu0 0
      %1244 = vmatmul.mubr.bf16.gmra.mrb[0].mxu0 %v824
      %v1245 = vpop.f32.mrb[0].mxu0
      %v1246 = vadd.f32 %v662, %v1245
      %v1247 = vpop.f32.mrb[0].mxu0
      %v1248 = vadd.f32 %v666, %v1247
      %v1249 = vpop.f32.mrb[0].mxu0
      %v1250 = vadd.f32 %v662, %v1249
      %v1251 = vpop.f32.mrb[0].mxu0
      %v1252 = vadd.f32 %v666, %v1251
      %1253 = vmatprep.mubr.bf16.mxu0 0
      %1254 = vmatmul.mubr.bf16.gmra.mrb[0].mxu0 %v825
      %v1255 = vpop.f32.mrb[0].mxu0
      %v1256 = vadd.f32 %v662, %v1255
      %v1257 = vpop.f32.mrb[0].mxu0
      %v1258 = vadd.f32 %v666, %v1257
      %v1259 = vpop.f32.mrb[0].mxu0
      %v1260 = vadd.f32 %v662, %v1259
      %v1261 = vpop.f32.mrb[0].mxu0
      %v1262 = vadd.f32 %v666, %v1261
      %1263 = vmatprep.mubr.bf16.mxu0 0
      %1264 = vmatmul.mubr.bf16.gmra.mrb[0].mxu0 %v826
      %v1265 = vpop.f32.mrb[0].mxu0
      %v1266 = vadd.f32 %v662, %v1265
      %v1267 = vpop.f32.mrb[0].mxu0
      %v1268 = vadd.f32 %v666, %v1267
      %v1269 = vpop.f32.mrb[0].mxu0
      %v1270 = vadd.f32 %v662, %v1269
      %v1271 = vpop.f32.mrb[0].mxu0
      %v1272 = vadd.f32 %v666, %v1271
      %1273 = vmatprep.mubr.bf16.mxu0 0
      %1274 = vmatmul.mubr.bf16.gmra.mrb[0].mxu0 %v827
      %v1275 = vpop.f32.mrb[0].mxu0
      %v1276 = vadd.f32 %v662, %v1275
      %v1277 = vpop.f32.mrb[0].mxu0
      %v1278 = vadd.f32 %v666, %v1277
      %v1279 = vpop.f32.mrb[0].mxu0
      %v1280 = vadd.f32 %v662, %v1279
      %v1281 = vpop.f32.mrb[0].mxu0
      %v1282 = vadd.f32 %v666, %v1281
      %1283 = vmatprep.mubr.bf16.mxu0 0
      %1284 = vmatmul.mubr.bf16.gmra.mrb[0].mxu0 %v828
      %v1285 = vpop.f32.mrb[0].mxu0
      %v1286 = vadd.f32 %v662, %v1285
      %v1287 = vpop.f32.mrb[0].mxu0
      %v1288 = vadd.f32 %v666, %v1287
      %v1289 = vpop.f32.mrb[0].mxu0
      %v1290 = vadd.f32 %v662, %v1289
      %v1291 = vpop.f32.mrb[0].mxu0
      %v1292 = vadd.f32 %v666, %v1291
      %1293 = vdwg.mxu0
      %v1294 = vmax.f32 %v976, 0.0
      %v1295 = vmax.f32 %v978, 0.0
      %v1296 = vmax.f32 %v980, 0.0
      %v1297 = vmax.f32 %v982, 0.0
      %v1298 = vmax.f32 %v986, 0.0
      %v1299 = vmax.f32 %v988, 0.0
      %v1300 = vmax.f32 %v990, 0.0
      %v1301 = vmax.f32 %v992, 0.0
      %v1302 = vmax.f32 %v996, 0.0
      %v1303 = vmax.f32 %v998, 0.0
      %v1304 = vmax.f32 %v1000, 0.0
      %v1305 = vmax.f32 %v1002, 0.0
      %v1306 = vmax.f32 %v1006, 0.0
      %v1307 = vmax.f32 %v1008, 0.0
      %v1308 = vmax.f32 %v1010, 0.0
      %v1309 = vmax.f32 %v1012, 0.0
      %v1310 = vmax.f32 %v1016, 0.0
      %v1311 = vmax.f32 %v1018, 0.0
      %v1312 = vmax.f32 %v1020, 0.0
      %v1313 = vmax.f32 %v1022, 0.0
      %v1314 = vmax.f32 %v1026, 0.0
      %v1315 = vmax.f32 %v1028, 0.0
      %v1316 = vmax.f32 %v1030, 0.0
      %v1317 = vmax.f32 %v1032, 0.0
      %v1318 = vmax.f32 %v1036, 0.0
      %v1319 = vmax.f32 %v1038, 0.0
      %v1320 = vmax.f32 %v1040, 0.0
      %v1321 = vmax.f32 %v1042, 0.0
      %v1322 = vmax.f32 %v1046, 0.0
      %v1323 = vmax.f32 %v1048, 0.0
      %v1324 = vmax.f32 %v1050, 0.0
      %v1325 = vmax.f32 %v1052, 0.0
      %v1326 = vmax.f32 %v1056, 0.0
      %v1327 = vmax.f32 %v1058, 0.0
      %v1328 = vmax.f32 %v1060, 0.0
      %v1329 = vmax.f32 %v1062, 0.0
      %v1330 = vmax.f32 %v1066, 0.0
      %v1331 = vmax.f32 %v1068, 0.0
      %v1332 = vmax.f32 %v1070, 0.0
      %v1333 = vmax.f32 %v1072, 0.0
      %v1334 = vmax.f32 %v1076, 0.0
      %v1335 = vmax.f32 %v1078, 0.0
      %v1336 = vmax.f32 %v1080, 0.0
      %v1337 = vmax.f32 %v1082, 0.0
      %v1338 = vmax.f32 %v1086, 0.0
      %v1339 = vmax.f32 %v1088, 0.0
      %v1340 = vmax.f32 %v1090, 0.0
      %v1341 = vmax.f32 %v1092, 0.0
      %v1342 = vmax.f32 %v1096, 0.0
      %v1343 = vmax.f32 %v1098, 0.0
      %v1344 = vmax.f32 %v1100, 0.0
      %v1345 = vmax.f32 %v1102, 0.0
      %v1346 = vmax.f32 %v1106, 0.0
      %v1347 = vmax.f32 %v1108, 0.0
      %v1348 = vmax.f32 %v1110, 0.0
      %v1349 = vmax.f32 %v1112, 0.0
      %v1350 = vmax.f32 %v1116, 0.0
      %v1351 = vmax.f32 %v1118, 0.0
      %v1352 = vmax.f32 %v1120, 0.0
      %v1353 = vmax.f32 %v1122, 0.0
      %v1354 = vmax.f32 %v1126, 0.0
      %v1355 = vmax.f32 %v1128, 0.0
      %v1356 = vmax.f32 %v1130, 0.0
      %v1357 = vmax.f32 %v1132, 0.0
      %v1358 = vmax.f32 %v1136, 0.0
      %v1359 = vmax.f32 %v1138, 0.0
      %v1360 = vmax.f32 %v1140, 0.0
      %v1361 = vmax.f32 %v1142, 0.0
      %v1362 = vmax.f32 %v1146, 0.0
      %v1363 = vmax.f32 %v1148, 0.0
      %v1364 = vmax.f32 %v1150, 0.0
      %v1365 = vmax.f32 %v1152, 0.0
      %v1366 = vmax.f32 %v1156, 0.0
      %v1367 = vmax.f32 %v1158, 0.0
      %v1368 = vmax.f32 %v1160, 0.0
      %v1369 = vmax.f32 %v1162, 0.0
      %v1370 = vmax.f32 %v1166, 0.0
      %v1371 = vmax.f32 %v1168, 0.0
      %v1372 = vmax.f32 %v1170, 0.0
      %v1373 = vmax.f32 %v1172, 0.0
      %v1374 = vmax.f32 %v1176, 0.0
      %v1375 = vmax.f32 %v1178, 0.0
      %v1376 = vmax.f32 %v1180, 0.0
      %v1377 = vmax.f32 %v1182, 0.0
      %v1378 = vmax.f32 %v1186, 0.0
      %v1379 = vmax.f32 %v1188, 0.0
      %v1380 = vmax.f32 %v1190, 0.0
      %v1381 = vmax.f32 %v1192, 0.0
      %v1382 = vmax.f32 %v1196, 0.0
      %v1383 = vmax.f32 %v1198, 0.0
      %v1384 = vmax.f32 %v1200, 0.0
      %v1385 = vmax.f32 %v1202, 0.0
      %v1386 = vmax.f32 %v1206, 0.0
      %v1387 = vmax.f32 %v1208, 0.0
      %v1388 = vmax.f32 %v1210, 0.0
      %v1389 = vmax.f32 %v1212, 0.0
      %v1390 = vmax.f32 %v1216, 0.0
      %v1391 = vmax.f32 %v1218, 0.0
      %v1392 = vmax.f32 %v1220, 0.0
      %v1393 = vmax.f32 %v1222, 0.0
      %v1394 = vmax.f32 %v1226, 0.0
      %v1395 = vmax.f32 %v1228, 0.0
      %v1396 = vmax.f32 %v1230, 0.0
      %v1397 = vmax.f32 %v1232, 0.0
      %v1398 = vmax.f32 %v1236, 0.0
      %v1399 = vmax.f32 %v1238, 0.0
      %v1400 = vmax.f32 %v1240, 0.0
      %v1401 = vmax.f32 %v1242, 0.0
      %v1402 = vmax.f32 %v1246, 0.0
      %v1403 = vmax.f32 %v1248, 0.0
      %v1404 = vmax.f32 %v1250, 0.0
      %v1405 = vmax.f32 %v1252, 0.0
      %v1406 = vmax.f32 %v1256, 0.0
      %v1407 = vmax.f32 %v1258, 0.0
      %v1408 = vmax.f32 %v1260, 0.0
      %v1409 = vmax.f32 %v1262, 0.0
      %v1410 = vmax.f32 %v1266, 0.0
      %v1411 = vmax.f32 %v1268, 0.0
      %v1412 = vmax.f32 %v1270, 0.0
      %v1413 = vmax.f32 %v1272, 0.0
      %v1414 = vmax.f32 %v1276, 0.0
      %v1415 = vmax.f32 %v1278, 0.0
      %v1416 = vmax.f32 %v1280, 0.0
      %v1417 = vmax.f32 %v1282, 0.0
      %v1418 = vmax.f32 %v1286, 0.0
      %v1419 = vmax.f32 %v1288, 0.0
      %v1420 = vmax.f32 %v1290, 0.0
      %v1421 = vmax.f32 %v1292, 0.0
      %v1422 = vpack.c.bf16 %v1296, %v1294
      %v1423 = vpack.c.bf16 %v1297, %v1295
      %v1424 = vpack.c.bf16 %v1300, %v1298
      %v1425 = vpack.c.bf16 %v1301, %v1299
      %v1426 = vpack.c.bf16 %v1304, %v1302
      %v1427 = vpack.c.bf16 %v1305, %v1303
      %v1428 = vpack.c.bf16 %v1308, %v1306
      %v1429 = vpack.c.bf16 %v1309, %v1307
      %v1430 = vpack.c.bf16 %v1312, %v1310
      %v1431 = vpack.c.bf16 %v1313, %v1311
      %v1432 = vpack.c.bf16 %v1316, %v1314
      %v1433 = vpack.c.bf16 %v1317, %v1315
      %v1434 = vpack.c.bf16 %v1320, %v1318
      %v1435 = vpack.c.bf16 %v1321, %v1319
      %v1436 = vpack.c.bf16 %v1324, %v1322
      %v1437 = vpack.c.bf16 %v1325, %v1323
      %v1438 = vpack.c.bf16 %v1328, %v1326
      %v1439 = vpack.c.bf16 %v1329, %v1327
      %v1440 = vpack.c.bf16 %v1332, %v1330
      %v1441 = vpack.c.bf16 %v1333, %v1331
      %v1442 = vpack.c.bf16 %v1336, %v1334
      %v1443 = vpack.c.bf16 %v1337, %v1335
      %v1444 = vpack.c.bf16 %v1340, %v1338
      %v1445 = vpack.c.bf16 %v1341, %v1339
      %v1446 = vpack.c.bf16 %v1344, %v1342
      %v1447 = vpack.c.bf16 %v1345, %v1343
      %v1448 = vpack.c.bf16 %v1348, %v1346
      %v1449 = vpack.c.bf16 %v1349, %v1347
      %v1450 = vpack.c.bf16 %v1352, %v1350
      %v1451 = vpack.c.bf16 %v1353, %v1351
      %v1452 = vpack.c.bf16 %v1356, %v1354
      %v1453 = vpack.c.bf16 %v1357, %v1355
      %v1454 = vpack.c.bf16 %v1360, %v1358
      %v1455 = vpack.c.bf16 %v1361, %v1359
      %v1456 = vpack.c.bf16 %v1364, %v1362
      %v1457 = vpack.c.bf16 %v1365, %v1363
      %v1458 = vpack.c.bf16 %v1368, %v1366
      %v1459 = vpack.c.bf16 %v1369, %v1367
      %v1460 = vpack.c.bf16 %v1372, %v1370
      %v1461 = vpack.c.bf16 %v1373, %v1371
      %v1462 = vpack.c.bf16 %v1376, %v1374
      %v1463 = vpack.c.bf16 %v1377, %v1375
      %v1464 = vpack.c.bf16 %v1380, %v1378
      %v1465 = vpack.c.bf16 %v1381, %v1379
      %v1466 = vpack.c.bf16 %v1384, %v1382
      %v1467 = vpack.c.bf16 %v1385, %v1383
      %v1468 = vpack.c.bf16 %v1388, %v1386
      %v1469 = vpack.c.bf16 %v1389, %v1387
      %v1470 = vpack.c.bf16 %v1392, %v1390
      %v1471 = vpack.c.bf16 %v1393, %v1391
      %v1472 = vpack.c.bf16 %v1396, %v1394
      %v1473 = vpack.c.bf16 %v1397, %v1395
      %v1474 = vpack.c.bf16 %v1400, %v1398
      %v1475 = vpack.c.bf16 %v1401, %v1399
      %v1476 = vpack.c.bf16 %v1404, %v1402
      %v1477 = vpack.c.bf16 %v1405, %v1403
      %v1478 = vpack.c.bf16 %v1408, %v1406
      %v1479 = vpack.c.bf16 %v1409, %v1407
      %v1480 = vpack.c.bf16 %v1412, %v1410
      %v1481 = vpack.c.bf16 %v1413, %v1411
      %v1482 = vpack.c.bf16 %v1416, %v1414
      %v1483 = vpack.c.bf16 %v1417, %v1415
      %v1484 = vpack.c.bf16 %v1420, %v1418
      %v1485 = vpack.c.bf16 %v1421, %v1419
      %v1486 = vld [vmem:[%s4] sm:$0xf]
      %v1487 = vld [vmem:[%s4 + $0x4] sm:$0xf]
      %v1488 = vld [vmem:[%s4 + $0x8] sm:$0xf]
      %v1489 = vld [vmem:[%s4 + $0xc] sm:$0xf]
      %v1490 = vld [vmem:[%s4 + $0x10] sm:$0xf]
      %v1491 = vld [vmem:[%s4 + $0x14] sm:$0xf]
      %v1492 = vld [vmem:[%s4 + $0x18] sm:$0xf]
      %v1493 = vld [vmem:[%s4 + $0x1c] sm:$0xf]
      %v1494 = vld [vmem:[%s4 + $0x20] sm:$0xf]
      %v1495 = vld [vmem:[%s4 + $0x24] sm:$0xf]
      %v1496 = vld [vmem:[%s4 + $0x28] sm:$0xf]
      %v1497 = vld [vmem:[%s4 + $0x2c] sm:$0xf]
      %v1498 = vld [vmem:[%s4 + $0x30] sm:$0xf]
      %v1499 = vld [vmem:[%s4 + $0x34] sm:$0xf]
      %v1500 = vld [vmem:[%s4 + $0x38] sm:$0xf]
      %v1501 = vld [vmem:[%s4 + $0x3c] sm:$0xf]
      %v1502 = vld [vmem:[%s4 + $0x40] sm:$0xf]
      %v1503 = vld [vmem:[%s4 + $0x44] sm:$0xf]
      %v1504 = vld [vmem:[%s4 + $0x48] sm:$0xf]
      %v1505 = vld [vmem:[%s4 + $0x4c] sm:$0xf]
      %v1506 = vld [vmem:[%s4 + $0x50] sm:$0xf]
      %v1507 = vld [vmem:[%s4 + $0x54] sm:$0xf]
      %v1508 = vld [vmem:[%s4 + $0x58] sm:$0xf]
      %v1509 = vld [vmem:[%s4 + $0x5c] sm:$0xf]
      %v1510 = vld [vmem:[%s4 + $0x60] sm:$0xf]
      %v1511 = vld [vmem:[%s4 + $0x64] sm:$0xf]
      %v1512 = vld [vmem:[%s4 + $0x68] sm:$0xf]
      %v1513 = vld [vmem:[%s4 + $0x6c] sm:$0xf]
      %v1514 = vld [vmem:[%s4 + $0x70] sm:$0xf]
      %v1515 = vld [vmem:[%s4 + $0x74] sm:$0xf]
      %v1516 = vld [vmem:[%s4 + $0x78] sm:$0xf]
      %v1517 = vld [vmem:[%s4 + $0x7c] sm:$0xf]
      %v1518 = vld [vmem:[%s5] sm:$0x1]
      %v1520 = vlaneseq
      %v1521 = vshrl.u32 %v1520, 7
      %v1522 = vsub.s32 0, %v1521
      %v1523 = vrot.slane %v1518, %v1522
      %v1557 = vunpack.c.l.b16 %v1486
      %v1558 = vunpack.c.l.b16 %v1487
      %v1559 = vunpack.c.l.b16 %v1488
      %v1560 = vunpack.c.l.b16 %v1489
      %v1561 = vunpack.c.l.b16 %v1490
      %v1562 = vunpack.c.l.b16 %v1491
      %v1563 = vunpack.c.l.b16 %v1492
      %v1564 = vunpack.c.l.b16 %v1493
      %v1565 = vunpack.c.l.b16 %v1494
      %v1566 = vunpack.c.l.b16 %v1495
      %v1567 = vunpack.c.l.b16 %v1496
      %v1568 = vunpack.c.l.b16 %v1497
      %v1569 = vunpack.c.l.b16 %v1498
      %v1570 = vunpack.c.l.b16 %v1499
      %v1571 = vunpack.c.l.b16 %v1500
      %v1572 = vunpack.c.l.b16 %v1501
      %v1573 = vunpack.c.l.b16 %v1502
      %v1574 = vunpack.c.l.b16 %v1503
      %v1575 = vunpack.c.l.b16 %v1504
      %v1576 = vunpack.c.l.b16 %v1505
      %v1577 = vunpack.c.l.b16 %v1506
      %v1578 = vunpack.c.l.b16 %v1507
      %v1579 = vunpack.c.l.b16 %v1508
      %v1580 = vunpack.c.l.b16 %v1509
      %v1581 = vunpack.c.l.b16 %v1510
      %v1582 = vunpack.c.l.b16 %v1511
      %v1583 = vunpack.c.l.b16 %v1512
      %v1584 = vunpack.c.l.b16 %v1513
      %v1585 = vunpack.c.l.b16 %v1514
      %v1586 = vunpack.c.l.b16 %v1515
      %v1587 = vunpack.c.l.b16 %v1516
      %v1588 = vunpack.c.l.b16 %v1517
      %v1589 = vpack.c.b16 %v1558, %v1557
      %v1590 = vpack.c.b16 %v1560, %v1559
      %v1591 = vpack.c.b16 %v1562, %v1561
      %v1592 = vpack.c.b16 %v1564, %v1563
      %v1593 = vpack.c.b16 %v1566, %v1565
      %v1594 = vpack.c.b16 %v1568, %v1567
      %v1595 = vpack.c.b16 %v1570, %v1569
      %v1596 = vpack.c.b16 %v1572, %v1571
      %v1597 = vpack.c.b16 %v1574, %v1573
      %v1598 = vpack.c.b16 %v1576, %v1575
      %v1599 = vpack.c.b16 %v1578, %v1577
      %v1600 = vpack.c.b16 %v1580, %v1579
      %v1601 = vpack.c.b16 %v1582, %v1581
      %v1602 = vpack.c.b16 %v1584, %v1583
      %v1603 = vpack.c.b16 %v1586, %v1585
      %v1604 = vpack.c.b16 %v1588, %v1587
      %1621 = vmatprep.subr.bf16.mxu0 0
      %1622 = vmatpush1.bf16.msra.mxu0 %v1589
      %1623 = vmatprep.subr.bf16.mxu0 0
      %1624 = vmatpush1.bf16.msra.mxu0 %v1590
      %1625 = vmatprep.subr.bf16.mxu0 0
      %1626 = vmatpush1.bf16.msra.mxu0 %v1591
      %1627 = vmatprep.subr.bf16.mxu0 0
      %1628 = vmatpush1.bf16.msra.mxu0 %v1592
      %1629 = vmatprep.subr.bf16.mxu0 0
      %1630 = vmatpush1.bf16.msra.mxu0 %v1593
      %1631 = vmatprep.subr.bf16.mxu0 0
      %1632 = vmatpush1.bf16.msra.mxu0 %v1594
      %1633 = vmatprep.subr.bf16.mxu0 0
      %1634 = vmatpush1.bf16.msra.mxu0 %v1595
      %1635 = vmatprep.subr.bf16.mxu0 0
      %1636 = vmatpush1.bf16.msra.mxu0 %v1596
      %1637 = vmatprep.subr.bf16.mxu0 0
      %1638 = vmatpush1.bf16.msra.mxu0 %v1597
      %1639 = vmatprep.subr.bf16.mxu0 0
      %1640 = vmatpush1.bf16.msra.mxu0 %v1598
      %1641 = vmatprep.subr.bf16.mxu0 0
      %1642 = vmatpush1.bf16.msra.mxu0 %v1599
      %1643 = vmatprep.subr.bf16.mxu0 0
      %1644 = vmatpush1.bf16.msra.mxu0 %v1600
      %1645 = vmatprep.subr.bf16.mxu0 0
      %1646 = vmatpush1.bf16.msra.mxu0 %v1601
      %1647 = vmatprep.subr.bf16.mxu0 0
      %1648 = vmatpush1.bf16.msra.mxu0 %v1602
      %1649 = vmatprep.subr.bf16.mxu0 0
      %1650 = vmatpush1.bf16.msra.mxu0 %v1603
      %1651 = vmatprep.subr.bf16.mxu0 0
      %1652 = vmatpush1.bf16.msra.mxu0 %v1604
      %1653 = vmatprep.mubr.bf16.mxu0 %v1423
      %1654 = vmatmul.mubr.bf16.gmra.mrb[0].mxu0 %v1422
      %v1655 = vpop.f32.mrb[0].mxu0
      %v1656 = vadd.f32 %v1523, %v1655
      %v1657 = vpop.f32.mrb[0].mxu0
      %v1658 = vpop.f32.mrb[0].mxu0
      %v1659 = vadd.f32 %v1523, %v1658
      %v1660 = vpop.f32.mrb[0].mxu0
      %1661 = vmatprep.mubr.bf16.mxu0 %v1425
      %1662 = vmatmul.mubr.bf16.gmra.mrb[0].mxu0 %v1424
      %v1663 = vpop.f32.mrb[0].mxu0
      %v1664 = vadd.f32 %v1523, %v1663
      %v1665 = vpop.f32.mrb[0].mxu0
      %v1666 = vpop.f32.mrb[0].mxu0
      %v1667 = vadd.f32 %v1523, %v1666
      %v1668 = vpop.f32.mrb[0].mxu0
      %1669 = vmatprep.mubr.bf16.mxu0 %v1427
      %1670 = vmatmul.mubr.bf16.gmra.mrb[0].mxu0 %v1426
      %v1671 = vpop.f32.mrb[0].mxu0
      %v1672 = vadd.f32 %v1523, %v1671
      %v1673 = vpop.f32.mrb[0].mxu0
      %v1674 = vpop.f32.mrb[0].mxu0
      %v1675 = vadd.f32 %v1523, %v1674
      %v1676 = vpop.f32.mrb[0].mxu0
      %1677 = vmatprep.mubr.bf16.mxu0 %v1429
      %1678 = vmatmul.mubr.bf16.gmra.mrb[0].mxu0 %v1428
      %v1679 = vpop.f32.mrb[0].mxu0
      %v1680 = vadd.f32 %v1523, %v1679
      %v1681 = vpop.f32.mrb[0].mxu0
      %v1682 = vpop.f32.mrb[0].mxu0
      %v1683 = vadd.f32 %v1523, %v1682
      %v1684 = vpop.f32.mrb[0].mxu0
      %1685 = vmatprep.mubr.bf16.mxu0 %v1431
      %1686 = vmatmul.mubr.bf16.gmra.mrb[0].mxu0 %v1430
      %v1687 = vpop.f32.mrb[0].mxu0
      %v1688 = vadd.f32 %v1523, %v1687
      %v1689 = vpop.f32.mrb[0].mxu0
      %v1690 = vpop.f32.mrb[0].mxu0
      %v1691 = vadd.f32 %v1523, %v1690
      %v1692 = vpop.f32.mrb[0].mxu0
      %1693 = vmatprep.mubr.bf16.mxu0 %v1433
      %1694 = vmatmul.mubr.bf16.gmra.mrb[0].mxu0 %v1432
      %v1695 = vpop.f32.mrb[0].mxu0
      %v1696 = vadd.f32 %v1523, %v1695
      %v1697 = vpop.f32.mrb[0].mxu0
      %v1698 = vpop.f32.mrb[0].mxu0
      %v1699 = vadd.f32 %v1523, %v1698
      %v1700 = vpop.f32.mrb[0].mxu0
      %1701 = vmatprep.mubr.bf16.mxu0 %v1435
      %1702 = vmatmul.mubr.bf16.gmra.mrb[0].mxu0 %v1434
      %v1703 = vpop.f32.mrb[0].mxu0
      %v1704 = vadd.f32 %v1523, %v1703
      %v1705 = vpop.f32.mrb[0].mxu0
      %v1706 = vpop.f32.mrb[0].mxu0
      %v1707 = vadd.f32 %v1523, %v1706
      %v1708 = vpop.f32.mrb[0].mxu0
      %1709 = vmatprep.mubr.bf16.mxu0 %v1437
      %1710 = vmatmul.mubr.bf16.gmra.mrb[0].mxu0 %v1436
      %v1711 = vpop.f32.mrb[0].mxu0
      %v1712 = vadd.f32 %v1523, %v1711
      %v1713 = vpop.f32.mrb[0].mxu0
      %v1714 = vpop.f32.mrb[0].mxu0
      %v1715 = vadd.f32 %v1523, %v1714
      %v1716 = vpop.f32.mrb[0].mxu0
      %1717 = vmatprep.mubr.bf16.mxu0 %v1439
      %1718 = vmatmul.mubr.bf16.gmra.mrb[0].mxu0 %v1438
      %v1719 = vpop.f32.mrb[0].mxu0
      %v1720 = vadd.f32 %v1523, %v1719
      %v1721 = vpop.f32.mrb[0].mxu0
      %v1722 = vpop.f32.mrb[0].mxu0
      %v1723 = vadd.f32 %v1523, %v1722
      %v1724 = vpop.f32.mrb[0].mxu0
      %1725 = vmatprep.mubr.bf16.mxu0 %v1441
      %1726 = vmatmul.mubr.bf16.gmra.mrb[0].mxu0 %v1440
      %v1727 = vpop.f32.mrb[0].mxu0
      %v1728 = vadd.f32 %v1523, %v1727
      %v1729 = vpop.f32.mrb[0].mxu0
      %v1730 = vpop.f32.mrb[0].mxu0
      %v1731 = vadd.f32 %v1523, %v1730
      %v1732 = vpop.f32.mrb[0].mxu0
      %1733 = vmatprep.mubr.bf16.mxu0 %v1443
      %1734 = vmatmul.mubr.bf16.gmra.mrb[0].mxu0 %v1442
      %v1735 = vpop.f32.mrb[0].mxu0
      %v1736 = vadd.f32 %v1523, %v1735
      %v1737 = vpop.f32.mrb[0].mxu0
      %v1738 = vpop.f32.mrb[0].mxu0
      %v1739 = vadd.f32 %v1523, %v1738
      %v1740 = vpop.f32.mrb[0].mxu0
      %1741 = vmatprep.mubr.bf16.mxu0 %v1445
      %1742 = vmatmul.mubr.bf16.gmra.mrb[0].mxu0 %v1444
      %v1743 = vpop.f32.mrb[0].mxu0
      %v1744 = vadd.f32 %v1523, %v1743
      %v1745 = vpop.f32.mrb[0].mxu0
      %v1746 = vpop.f32.mrb[0].mxu0
      %v1747 = vadd.f32 %v1523, %v1746
      %v1748 = vpop.f32.mrb[0].mxu0
      %1749 = vmatprep.mubr.bf16.mxu0 %v1447
      %1750 = vmatmul.mubr.bf16.gmra.mrb[0].mxu0 %v1446
      %v1751 = vpop.f32.mrb[0].mxu0
      %v1752 = vadd.f32 %v1523, %v1751
      %v1753 = vpop.f32.mrb[0].mxu0
      %v1754 = vpop.f32.mrb[0].mxu0
      %v1755 = vadd.f32 %v1523, %v1754
      %v1756 = vpop.f32.mrb[0].mxu0
      %1757 = vmatprep.mubr.bf16.mxu0 %v1449
      %1758 = vmatmul.mubr.bf16.gmra.mrb[0].mxu0 %v1448
      %v1759 = vpop.f32.mrb[0].mxu0
      %v1760 = vadd.f32 %v1523, %v1759
      %v1761 = vpop.f32.mrb[0].mxu0
      %v1762 = vpop.f32.mrb[0].mxu0
      %v1763 = vadd.f32 %v1523, %v1762
      %v1764 = vpop.f32.mrb[0].mxu0
      %1765 = vmatprep.mubr.bf16.mxu0 %v1451
      %1766 = vmatmul.mubr.bf16.gmra.mrb[0].mxu0 %v1450
      %v1767 = vpop.f32.mrb[0].mxu0
      %v1768 = vadd.f32 %v1523, %v1767
      %v1769 = vpop.f32.mrb[0].mxu0
      %v1770 = vpop.f32.mrb[0].mxu0
      %v1771 = vadd.f32 %v1523, %v1770
      %v1772 = vpop.f32.mrb[0].mxu0
      %1773 = vmatprep.mubr.bf16.mxu0 %v1453
      %1774 = vmatmul.mubr.bf16.gmra.mrb[0].mxu0 %v1452
      %v1775 = vpop.f32.mrb[0].mxu0
      %v1776 = vadd.f32 %v1523, %v1775
      %v1777 = vpop.f32.mrb[0].mxu0
      %v1778 = vpop.f32.mrb[0].mxu0
      %v1779 = vadd.f32 %v1523, %v1778
      %v1780 = vpop.f32.mrb[0].mxu0
      %1781 = vmatprep.mubr.bf16.mxu0 %v1455
      %1782 = vmatmul.mubr.bf16.gmra.mrb[0].mxu0 %v1454
      %v1783 = vpop.f32.mrb[0].mxu0
      %v1784 = vadd.f32 %v1523, %v1783
      %v1785 = vpop.f32.mrb[0].mxu0
      %v1786 = vpop.f32.mrb[0].mxu0
      %v1787 = vadd.f32 %v1523, %v1786
      %v1788 = vpop.f32.mrb[0].mxu0
      %1789 = vmatprep.mubr.bf16.mxu0 %v1457
      %1790 = vmatmul.mubr.bf16.gmra.mrb[0].mxu0 %v1456
      %v1791 = vpop.f32.mrb[0].mxu0
      %v1792 = vadd.f32 %v1523, %v1791
      %v1793 = vpop.f32.mrb[0].mxu0
      %v1794 = vpop.f32.mrb[0].mxu0
      %v1795 = vadd.f32 %v1523, %v1794
      %v1796 = vpop.f32.mrb[0].mxu0
      %1797 = vmatprep.mubr.bf16.mxu0 %v1459
      %1798 = vmatmul.mubr.bf16.gmra.mrb[0].mxu0 %v1458
      %v1799 = vpop.f32.mrb[0].mxu0
      %v1800 = vadd.f32 %v1523, %v1799
      %v1801 = vpop.f32.mrb[0].mxu0
      %v1802 = vpop.f32.mrb[0].mxu0
      %v1803 = vadd.f32 %v1523, %v1802
      %v1804 = vpop.f32.mrb[0].mxu0
      %1805 = vmatprep.mubr.bf16.mxu0 %v1461
      %1806 = vmatmul.mubr.bf16.gmra.mrb[0].mxu0 %v1460
      %v1807 = vpop.f32.mrb[0].mxu0
      %v1808 = vadd.f32 %v1523, %v1807
      %v1809 = vpop.f32.mrb[0].mxu0
      %v1810 = vpop.f32.mrb[0].mxu0
      %v1811 = vadd.f32 %v1523, %v1810
      %v1812 = vpop.f32.mrb[0].mxu0
      %1813 = vmatprep.mubr.bf16.mxu0 %v1463
      %1814 = vmatmul.mubr.bf16.gmra.mrb[0].mxu0 %v1462
      %v1815 = vpop.f32.mrb[0].mxu0
      %v1816 = vadd.f32 %v1523, %v1815
      %v1817 = vpop.f32.mrb[0].mxu0
      %v1818 = vpop.f32.mrb[0].mxu0
      %v1819 = vadd.f32 %v1523, %v1818
      %v1820 = vpop.f32.mrb[0].mxu0
      %1821 = vmatprep.mubr.bf16.mxu0 %v1465
      %1822 = vmatmul.mubr.bf16.gmra.mrb[0].mxu0 %v1464
      %v1823 = vpop.f32.mrb[0].mxu0
      %v1824 = vadd.f32 %v1523, %v1823
      %v1825 = vpop.f32.mrb[0].mxu0
      %v1826 = vpop.f32.mrb[0].mxu0
      %v1827 = vadd.f32 %v1523, %v1826
      %v1828 = vpop.f32.mrb[0].mxu0
      %1829 = vmatprep.mubr.bf16.mxu0 %v1467
      %1830 = vmatmul.mubr.bf16.gmra.mrb[0].mxu0 %v1466
      %v1831 = vpop.f32.mrb[0].mxu0
      %v1832 = vadd.f32 %v1523, %v1831
      %v1833 = vpop.f32.mrb[0].mxu0
      %v1834 = vpop.f32.mrb[0].mxu0
      %v1835 = vadd.f32 %v1523, %v1834
      %v1836 = vpop.f32.mrb[0].mxu0
      %1837 = vmatprep.mubr.bf16.mxu0 %v1469
      %1838 = vmatmul.mubr.bf16.gmra.mrb[0].mxu0 %v1468
      %v1839 = vpop.f32.mrb[0].mxu0
      %v1840 = vadd.f32 %v1523, %v1839
      %v1841 = vpop.f32.mrb[0].mxu0
      %v1842 = vpop.f32.mrb[0].mxu0
      %v1843 = vadd.f32 %v1523, %v1842
      %v1844 = vpop.f32.mrb[0].mxu0
      %1845 = vmatprep.mubr.bf16.mxu0 %v1471
      %1846 = vmatmul.mubr.bf16.gmra.mrb[0].mxu0 %v1470
      %v1847 = vpop.f32.mrb[0].mxu0
      %v1848 = vadd.f32 %v1523, %v1847
      %v1849 = vpop.f32.mrb[0].mxu0
      %v1850 = vpop.f32.mrb[0].mxu0
      %v1851 = vadd.f32 %v1523, %v1850
      %v1852 = vpop.f32.mrb[0].mxu0
      %1853 = vmatprep.mubr.bf16.mxu0 %v1473
      %1854 = vmatmul.mubr.bf16.gmra.mrb[0].mxu0 %v1472
      %v1855 = vpop.f32.mrb[0].mxu0
      %v1856 = vadd.f32 %v1523, %v1855
      %v1857 = vpop.f32.mrb[0].mxu0
      %v1858 = vpop.f32.mrb[0].mxu0
      %v1859 = vadd.f32 %v1523, %v1858
      %v1860 = vpop.f32.mrb[0].mxu0
      %1861 = vmatprep.mubr.bf16.mxu0 %v1475
      %1862 = vmatmul.mubr.bf16.gmra.mrb[0].mxu0 %v1474
      %v1863 = vpop.f32.mrb[0].mxu0
      %v1864 = vadd.f32 %v1523, %v1863
      %v1865 = vpop.f32.mrb[0].mxu0
      %v1866 = vpop.f32.mrb[0].mxu0
      %v1867 = vadd.f32 %v1523, %v1866
      %v1868 = vpop.f32.mrb[0].mxu0
      %1869 = vmatprep.mubr.bf16.mxu0 %v1477
      %1870 = vmatmul.mubr.bf16.gmra.mrb[0].mxu0 %v1476
      %v1871 = vpop.f32.mrb[0].mxu0
      %v1872 = vadd.f32 %v1523, %v1871
      %v1873 = vpop.f32.mrb[0].mxu0
      %v1874 = vpop.f32.mrb[0].mxu0
      %v1875 = vadd.f32 %v1523, %v1874
      %v1876 = vpop.f32.mrb[0].mxu0
      %1877 = vmatprep.mubr.bf16.mxu0 %v1479
      %1878 = vmatmul.mubr.bf16.gmra.mrb[0].mxu0 %v1478
      %v1879 = vpop.f32.mrb[0].mxu0
      %v1880 = vadd.f32 %v1523, %v1879
      %v1881 = vpop.f32.mrb[0].mxu0
      %v1882 = vpop.f32.mrb[0].mxu0
      %v1883 = vadd.f32 %v1523, %v1882
      %v1884 = vpop.f32.mrb[0].mxu0
      %1885 = vmatprep.mubr.bf16.mxu0 %v1481
      %1886 = vmatmul.mubr.bf16.gmra.mrb[0].mxu0 %v1480
      %v1887 = vpop.f32.mrb[0].mxu0
      %v1888 = vadd.f32 %v1523, %v1887
      %v1889 = vpop.f32.mrb[0].mxu0
      %v1890 = vpop.f32.mrb[0].mxu0
      %v1891 = vadd.f32 %v1523, %v1890
      %v1892 = vpop.f32.mrb[0].mxu0
      %1893 = vmatprep.mubr.bf16.mxu0 %v1483
      %1894 = vmatmul.mubr.bf16.gmra.mrb[0].mxu0 %v1482
      %v1895 = vpop.f32.mrb[0].mxu0
      %v1896 = vadd.f32 %v1523, %v1895
      %v1897 = vpop.f32.mrb[0].mxu0
      %v1898 = vpop.f32.mrb[0].mxu0
      %v1899 = vadd.f32 %v1523, %v1898
      %v1900 = vpop.f32.mrb[0].mxu0
      %1901 = vmatprep.mubr.bf16.mxu0 %v1485
      %1902 = vmatmul.mubr.bf16.gmra.mrb[0].mxu0 %v1484
      %v1903 = vpop.f32.mrb[0].mxu0
      %v1904 = vadd.f32 %v1523, %v1903
      %v1905 = vpop.f32.mrb[0].mxu0
      %v1906 = vpop.f32.mrb[0].mxu0
      %v1907 = vadd.f32 %v1523, %v1906
      %v1908 = vpop.f32.mrb[0].mxu0
      %1909 = vdwg.mxu0
      %v1910 = vld [vmem:[%s568] sm:$0xff]
      %v1911 = vld [vmem:[%s568 + $0x8] sm:$0xff]
      %v1912 = vld [vmem:[%s568 + $0x10] sm:$0xff]
      %v1913 = vld [vmem:[%s568 + $0x18] sm:$0xff]
      %v1914 = vld [vmem:[%s568 + $0x20] sm:$0xff]
      %v1915 = vld [vmem:[%s568 + $0x28] sm:$0xff]
      %v1916 = vld [vmem:[%s568 + $0x30] sm:$0xff]
      %v1917 = vld [vmem:[%s568 + $0x38] sm:$0xff]
      %v1918 = vld [vmem:[%s568 + $0x40] sm:$0xff]
      %v1919 = vld [vmem:[%s568 + $0x48] sm:$0xff]
      %v1920 = vld [vmem:[%s568 + $0x50] sm:$0xff]
      %v1921 = vld [vmem:[%s568 + $0x58] sm:$0xff]
      %v1922 = vld [vmem:[%s568 + $0x60] sm:$0xff]
      %v1923 = vld [vmem:[%s568 + $0x68] sm:$0xff]
      %v1924 = vld [vmem:[%s568 + $0x70] sm:$0xff]
      %v1925 = vld [vmem:[%s568 + $0x78] sm:$0xff]
      %v1926 = vld [vmem:[%s568 + $0x80] sm:$0xff]
      %v1927 = vld [vmem:[%s568 + $0x88] sm:$0xff]
      %v1928 = vld [vmem:[%s568 + $0x90] sm:$0xff]
      %v1929 = vld [vmem:[%s568 + $0x98] sm:$0xff]
      %v1930 = vld [vmem:[%s568 + $0xa0] sm:$0xff]
      %v1931 = vld [vmem:[%s568 + $0xa8] sm:$0xff]
      %v1932 = vld [vmem:[%s568 + $0xb0] sm:$0xff]
      %v1933 = vld [vmem:[%s568 + $0xb8] sm:$0xff]
      %v1934 = vld [vmem:[%s568 + $0xc0] sm:$0xff]
      %v1935 = vld [vmem:[%s568 + $0xc8] sm:$0xff]
      %v1936 = vld [vmem:[%s568 + $0xd0] sm:$0xff]
      %v1937 = vld [vmem:[%s568 + $0xd8] sm:$0xff]
      %v1938 = vld [vmem:[%s568 + $0xe0] sm:$0xff]
      %v1939 = vld [vmem:[%s568 + $0xe8] sm:$0xff]
      %v1940 = vld [vmem:[%s568 + $0xf0] sm:$0xff]
      %v1941 = vld [vmem:[%s568 + $0xf8] sm:$0xff]
      %v1942 = vld [vmem:[%s568 + $0x100] sm:$0xff]
      %v1943 = vld [vmem:[%s568 + $0x108] sm:$0xff]
      %v1944 = vld [vmem:[%s568 + $0x110] sm:$0xff]
      %v1945 = vld [vmem:[%s568 + $0x118] sm:$0xff]
      %v1946 = vld [vmem:[%s568 + $0x120] sm:$0xff]
      %v1947 = vld [vmem:[%s568 + $0x128] sm:$0xff]
      %v1948 = vld [vmem:[%s568 + $0x130] sm:$0xff]
      %v1949 = vld [vmem:[%s568 + $0x138] sm:$0xff]
      %v1950 = vld [vmem:[%s568 + $0x140] sm:$0xff]
      %v1951 = vld [vmem:[%s568 + $0x148] sm:$0xff]
      %v1952 = vld [vmem:[%s568 + $0x150] sm:$0xff]
      %v1953 = vld [vmem:[%s568 + $0x158] sm:$0xff]
      %v1954 = vld [vmem:[%s568 + $0x160] sm:$0xff]
      %v1955 = vld [vmem:[%s568 + $0x168] sm:$0xff]
      %v1956 = vld [vmem:[%s568 + $0x170] sm:$0xff]
      %v1957 = vld [vmem:[%s568 + $0x178] sm:$0xff]
      %v1958 = vld [vmem:[%s568 + $0x180] sm:$0xff]
      %v1959 = vld [vmem:[%s568 + $0x188] sm:$0xff]
      %v1960 = vld [vmem:[%s568 + $0x190] sm:$0xff]
      %v1961 = vld [vmem:[%s568 + $0x198] sm:$0xff]
      %v1962 = vld [vmem:[%s568 + $0x1a0] sm:$0xff]
      %v1963 = vld [vmem:[%s568 + $0x1a8] sm:$0xff]
      %v1964 = vld [vmem:[%s568 + $0x1b0] sm:$0xff]
      %v1965 = vld [vmem:[%s568 + $0x1b8] sm:$0xff]
      %v1966 = vld [vmem:[%s568 + $0x1c0] sm:$0xff]
      %v1967 = vld [vmem:[%s568 + $0x1c8] sm:$0xff]
      %v1968 = vld [vmem:[%s568 + $0x1d0] sm:$0xff]
      %v1969 = vld [vmem:[%s568 + $0x1d8] sm:$0xff]
      %v1970 = vld [vmem:[%s568 + $0x1e0] sm:$0xff]
      %v1971 = vld [vmem:[%s568 + $0x1e8] sm:$0xff]
      %v1972 = vld [vmem:[%s568 + $0x1f0] sm:$0xff]
      %v1973 = vld [vmem:[%s568 + $0x1f8] sm:$0xff]
      %v1974 = vld [vmem:[%s14] sm:$0xf]
      %vm1975 = vcmask 31744
      %v1977 = vsel %vm1975, %v1910, 0
      %v1980 = vsel %vm1975, %v1911, 0
      %v1983 = vsel %vm1975, %v1912, 0
      %v1986 = vsel %vm1975, %v1913, 0
      %v1989 = vsel %vm1975, %v1914, 0
      %v1992 = vsel %vm1975, %v1915, 0
      %v1995 = vsel %vm1975, %v1916, 0
      %v1998 = vsel %vm1975, %v1917, 0
      %v2001 = vsel %vm1975, %v1918, 0
      %v2004 = vsel %vm1975, %v1919, 0
      %v2007 = vsel %vm1975, %v1920, 0
      %v2010 = vsel %vm1975, %v1921, 0
      %v2013 = vsel %vm1975, %v1922, 0
      %v2016 = vsel %vm1975, %v1923, 0
      %v2019 = vsel %vm1975, %v1924, 0
      %v2022 = vsel %vm1975, %v1925, 0
      %v2025 = vsel %vm1975, %v1926, 0
      %v2028 = vsel %vm1975, %v1927, 0
      %v2031 = vsel %vm1975, %v1928, 0
      %v2034 = vsel %vm1975, %v1929, 0
      %v2037 = vsel %vm1975, %v1930, 0
      %v2040 = vsel %vm1975, %v1931, 0
      %v2043 = vsel %vm1975, %v1932, 0
      %v2046 = vsel %vm1975, %v1933, 0
      %v2049 = vsel %vm1975, %v1934, 0
      %v2052 = vsel %vm1975, %v1935, 0
      %v2055 = vsel %vm1975, %v1936, 0
      %v2058 = vsel %vm1975, %v1937, 0
      %v2061 = vsel %vm1975, %v1938, 0
      %v2064 = vsel %vm1975, %v1939, 0
      %v2067 = vsel %vm1975, %v1940, 0
      %v2070 = vsel %vm1975, %v1941, 0
      %v2073 = vsel %vm1975, %v1942, 0
      %v2076 = vsel %vm1975, %v1943, 0
      %v2079 = vsel %vm1975, %v1944, 0
      %v2082 = vsel %vm1975, %v1945, 0
      %v2085 = vsel %vm1975, %v1946, 0
      %v2088 = vsel %vm1975, %v1947, 0
      %v2091 = vsel %vm1975, %v1948, 0
      %v2094 = vsel %vm1975, %v1949, 0
      %v2097 = vsel %vm1975, %v1950, 0
      %v2100 = vsel %vm1975, %v1951, 0
      %v2103 = vsel %vm1975, %v1952, 0
      %v2106 = vsel %vm1975, %v1953, 0
      %v2109 = vsel %vm1975, %v1954, 0
      %v2112 = vsel %vm1975, %v1955, 0
      %v2115 = vsel %vm1975, %v1956, 0
      %v2118 = vsel %vm1975, %v1957, 0
      %v2121 = vsel %vm1975, %v1958, 0
      %v2124 = vsel %vm1975, %v1959, 0
      %v2127 = vsel %vm1975, %v1960, 0
      %v2130 = vsel %vm1975, %v1961, 0
      %v2133 = vsel %vm1975, %v1962, 0
      %v2136 = vsel %vm1975, %v1963, 0
      %v2139 = vsel %vm1975, %v1964, 0
      %v2142 = vsel %vm1975, %v1965, 0
      %v2145 = vsel %vm1975, %v1966, 0
      %v2148 = vsel %vm1975, %v1967, 0
      %v2151 = vsel %vm1975, %v1968, 0
      %v2154 = vsel %vm1975, %v1969, 0
      %v2157 = vsel %vm1975, %v1970, 0
      %v2160 = vsel %vm1975, %v1971, 0
      %v2163 = vsel %vm1975, %v1972, 0
      %v2166 = vsel %vm1975, %v1973, 0
      %vm2168 = vcmask 1043456
      %v2170 = vsel %vm2168, %v1974, 0
      %2172 = vmatprep.subr.mxu0 0.0
      %2173 = vmatpush1.msra.mxu0 %v2170
      %2174 = vmatprep.subr.mxu0 0.0
      %2175 = vmatpush1.msra.mxu0 0.0
      %2176 = vmatprep.subr.mxu0 0.0
      %2177 = vmatpush1.msra.mxu0 0.0
      %2178 = vmatprep.subr.mxu0 0.0
      %2179 = vmatpush1.msra.mxu0 0.0
      %2180 = vmatprep.subr.mxu0 0.0
      %2181 = vmatpush1.msra.mxu0 0.0
      %2182 = vmatprep.subr.mxu0 0.0
      %2183 = vmatpush1.msra.mxu0 0.0
      %2184 = vmatprep.subr.mxu0 0.0
      %2185 = vmatpush1.msra.mxu0 0.0
      %2186 = vmatprep.subr.mxu0 0.0
      %2187 = vmatpush1.msra.mxu0 0.0
      %2188 = vmatprep.subr.mxu0 0.0
      %2189 = vmatpush1.msra.mxu0 0.0
      %2190 = vmatprep.subr.mxu0 0.0
      %2191 = vmatpush1.msra.mxu0 0.0
      %2192 = vmatprep.subr.mxu0 0.0
      %2193 = vmatpush1.msra.mxu0 0.0
      %2194 = vmatprep.subr.mxu0 0.0
      %2195 = vmatpush1.msra.mxu0 0.0
      %2196 = vmatprep.subr.mxu0 0.0
      %2197 = vmatpush1.msra.mxu0 0.0
      %2198 = vmatprep.subr.mxu0 0.0
      %2199 = vmatpush1.msra.mxu0 0.0
      %2200 = vmatprep.subr.mxu0 0.0
      %2201 = vmatpush1.msra.mxu0 0.0
      %2202 = vmatprep.subr.mxu0 0.0
      %2203 = vmatpush1.msra.mxu0 0.0
      %2204 = vmatprep.subr.mxu0 0.0
      %2205 = vmatpush1.msra.mxu0 0.0
      %2206 = vmatprep.subr.mxu0 0.0
      %2207 = vmatpush1.msra.mxu0 0.0
      %2208 = vmatprep.subr.mxu0 0.0
      %2209 = vmatpush1.msra.mxu0 0.0
      %2210 = vmatprep.subr.mxu0 0.0
      %2211 = vmatpush1.msra.mxu0 0.0
      %2212 = vmatprep.subr.mxu0 0.0
      %2213 = vmatpush1.msra.mxu0 0.0
      %2214 = vmatprep.subr.mxu0 0.0
      %2215 = vmatpush1.msra.mxu0 0.0
      %2216 = vmatprep.subr.mxu0 0.0
      %2217 = vmatpush1.msra.mxu0 0.0
      %2218 = vmatprep.subr.mxu0 0.0
      %2219 = vmatpush1.msra.mxu0 0.0
      %2220 = vmatprep.subr.mxu0 0.0
      %2221 = vmatpush1.msra.mxu0 0.0
      %2222 = vmatprep.subr.mxu0 0.0
      %2223 = vmatpush1.msra.mxu0 0.0
      %2224 = vmatprep.subr.mxu0 0.0
      %2225 = vmatpush1.msra.mxu0 0.0
      %2226 = vmatprep.subr.mxu0 0.0
      %2227 = vmatpush1.msra.mxu0 0.0
      %2228 = vmatprep.subr.mxu0 0.0
      %2229 = vmatpush1.msra.mxu0 0.0
      %2230 = vmatprep.subr.mxu0 0.0
      %2231 = vmatpush1.msra.mxu0 0.0
      %2232 = vmatprep.subr.mxu0 0.0
      %2233 = vmatpush1.msra.mxu0 0.0
      %2234 = vmatprep.subr.mxu0 0.0
      %2235 = vmatpush1.msra.mxu0 0.0
      %2236 = vmatprep.mubr.f32.mxu0 0.0
      %2237 = vmatmul.mubr.f32.gmra.mrb[0].mxu0 %v1977
      %v2238 = vpop.f32.mrb[0].mxu0
      %v2239 = vadd.f32 0.0, %v2238
      %v2240 = vpop.f32.mrb[0].mxu0
      %2241 = vmatprep.mubr.f32.mxu0 0.0
      %2242 = vmatmul.mubr.f32.gmra.mrb[0].mxu0 %v1980
      %v2243 = vpop.f32.mrb[0].mxu0
      %v2244 = vadd.f32 0.0, %v2243
      %v2245 = vpop.f32.mrb[0].mxu0
      %2246 = vmatprep.mubr.f32.mxu0 0.0
      %2247 = vmatmul.mubr.f32.gmra.mrb[0].mxu0 %v1983
      %v2248 = vpop.f32.mrb[0].mxu0
      %v2249 = vadd.f32 0.0, %v2248
      %v2250 = vpop.f32.mrb[0].mxu0
      %2251 = vmatprep.mubr.f32.mxu0 0.0
      %2252 = vmatmul.mubr.f32.gmra.mrb[0].mxu0 %v1986
      %v2253 = vpop.f32.mrb[0].mxu0
      %v2254 = vadd.f32 0.0, %v2253
      %v2255 = vpop.f32.mrb[0].mxu0
      %2256 = vmatprep.mubr.f32.mxu0 0.0
      %2257 = vmatmul.mubr.f32.gmra.mrb[0].mxu0 %v1989
      %v2258 = vpop.f32.mrb[0].mxu0
      %v2259 = vadd.f32 0.0, %v2258
      %v2260 = vpop.f32.mrb[0].mxu0
      %2261 = vmatprep.mubr.f32.mxu0 0.0
      %2262 = vmatmul.mubr.f32.gmra.mrb[0].mxu0 %v1992
      %v2263 = vpop.f32.mrb[0].mxu0
      %v2264 = vadd.f32 0.0, %v2263
      %v2265 = vpop.f32.mrb[0].mxu0
      %2266 = vmatprep.mubr.f32.mxu0 0.0
      %2267 = vmatmul.mubr.f32.gmra.mrb[0].mxu0 %v1995
      %v2268 = vpop.f32.mrb[0].mxu0
      %v2269 = vadd.f32 0.0, %v2268
      %v2270 = vpop.f32.mrb[0].mxu0
      %2271 = vmatprep.mubr.f32.mxu0 0.0
      %2272 = vmatmul.mubr.f32.gmra.mrb[0].mxu0 %v1998
      %v2273 = vpop.f32.mrb[0].mxu0
      %v2274 = vadd.f32 0.0, %v2273
      %v2275 = vpop.f32.mrb[0].mxu0
      %2276 = vmatprep.mubr.f32.mxu0 0.0
      %2277 = vmatmul.mubr.f32.gmra.mrb[0].mxu0 %v2001
      %v2278 = vpop.f32.mrb[0].mxu0
      %v2279 = vadd.f32 0.0, %v2278
      %v2280 = vpop.f32.mrb[0].mxu0
      %2281 = vmatprep.mubr.f32.mxu0 0.0
      %2282 = vmatmul.mubr.f32.gmra.mrb[0].mxu0 %v2004
      %v2283 = vpop.f32.mrb[0].mxu0
      %v2284 = vadd.f32 0.0, %v2283
      %v2285 = vpop.f32.mrb[0].mxu0
      %2286 = vmatprep.mubr.f32.mxu0 0.0
      %2287 = vmatmul.mubr.f32.gmra.mrb[0].mxu0 %v2007
      %v2288 = vpop.f32.mrb[0].mxu0
      %v2289 = vadd.f32 0.0, %v2288
      %v2290 = vpop.f32.mrb[0].mxu0
      %2291 = vmatprep.mubr.f32.mxu0 0.0
      %2292 = vmatmul.mubr.f32.gmra.mrb[0].mxu0 %v2010
      %v2293 = vpop.f32.mrb[0].mxu0
      %v2294 = vadd.f32 0.0, %v2293
      %v2295 = vpop.f32.mrb[0].mxu0
      %2296 = vmatprep.mubr.f32.mxu0 0.0
      %2297 = vmatmul.mubr.f32.gmra.mrb[0].mxu0 %v2013
      %v2298 = vpop.f32.mrb[0].mxu0
      %v2299 = vadd.f32 0.0, %v2298
      %v2300 = vpop.f32.mrb[0].mxu0
      %2301 = vmatprep.mubr.f32.mxu0 0.0
      %2302 = vmatmul.mubr.f32.gmra.mrb[0].mxu0 %v2016
      %v2303 = vpop.f32.mrb[0].mxu0
      %v2304 = vadd.f32 0.0, %v2303
      %v2305 = vpop.f32.mrb[0].mxu0
      %2306 = vmatprep.mubr.f32.mxu0 0.0
      %2307 = vmatmul.mubr.f32.gmra.mrb[0].mxu0 %v2019
      %v2308 = vpop.f32.mrb[0].mxu0
      %v2309 = vadd.f32 0.0, %v2308
      %v2310 = vpop.f32.mrb[0].mxu0
      %2311 = vmatprep.mubr.f32.mxu0 0.0
      %2312 = vmatmul.mubr.f32.gmra.mrb[0].mxu0 %v2022
      %v2313 = vpop.f32.mrb[0].mxu0
      %v2314 = vadd.f32 0.0, %v2313
      %v2315 = vpop.f32.mrb[0].mxu0
      %2316 = vmatprep.mubr.f32.mxu0 0.0
      %2317 = vmatmul.mubr.f32.gmra.mrb[0].mxu0 %v2025
      %v2318 = vpop.f32.mrb[0].mxu0
      %v2319 = vadd.f32 0.0, %v2318
      %v2320 = vpop.f32.mrb[0].mxu0
      %2321 = vmatprep.mubr.f32.mxu0 0.0
      %2322 = vmatmul.mubr.f32.gmra.mrb[0].mxu0 %v2028
      %v2323 = vpop.f32.mrb[0].mxu0
      %v2324 = vadd.f32 0.0, %v2323
      %v2325 = vpop.f32.mrb[0].mxu0
      %2326 = vmatprep.mubr.f32.mxu0 0.0
      %2327 = vmatmul.mubr.f32.gmra.mrb[0].mxu0 %v2031
      %v2328 = vpop.f32.mrb[0].mxu0
      %v2329 = vadd.f32 0.0, %v2328
      %v2330 = vpop.f32.mrb[0].mxu0
      %2331 = vmatprep.mubr.f32.mxu0 0.0
      %2332 = vmatmul.mubr.f32.gmra.mrb[0].mxu0 %v2034
      %v2333 = vpop.f32.mrb[0].mxu0
      %v2334 = vadd.f32 0.0, %v2333
      %v2335 = vpop.f32.mrb[0].mxu0
      %2336 = vmatprep.mubr.f32.mxu0 0.0
      %2337 = vmatmul.mubr.f32.gmra.mrb[0].mxu0 %v2037
      %v2338 = vpop.f32.mrb[0].mxu0
      %v2339 = vadd.f32 0.0, %v2338
      %v2340 = vpop.f32.mrb[0].mxu0
      %2341 = vmatprep.mubr.f32.mxu0 0.0
      %2342 = vmatmul.mubr.f32.gmra.mrb[0].mxu0 %v2040
      %v2343 = vpop.f32.mrb[0].mxu0
      %v2344 = vadd.f32 0.0, %v2343
      %v2345 = vpop.f32.mrb[0].mxu0
      %2346 = vmatprep.mubr.f32.mxu0 0.0
      %2347 = vmatmul.mubr.f32.gmra.mrb[0].mxu0 %v2043
      %v2348 = vpop.f32.mrb[0].mxu0
      %v2349 = vadd.f32 0.0, %v2348
      %v2350 = vpop.f32.mrb[0].mxu0
      %2351 = vmatprep.mubr.f32.mxu0 0.0
      %2352 = vmatmul.mubr.f32.gmra.mrb[0].mxu0 %v2046
      %v2353 = vpop.f32.mrb[0].mxu0
      %v2354 = vadd.f32 0.0, %v2353
      %v2355 = vpop.f32.mrb[0].mxu0
      %2356 = vmatprep.mubr.f32.mxu0 0.0
      %2357 = vmatmul.mubr.f32.gmra.mrb[0].mxu0 %v2049
      %v2358 = vpop.f32.mrb[0].mxu0
      %v2359 = vadd.f32 0.0, %v2358
      %v2360 = vpop.f32.mrb[0].mxu0
      %2361 = vmatprep.mubr.f32.mxu0 0.0
      %2362 = vmatmul.mubr.f32.gmra.mrb[0].mxu0 %v2052
      %v2363 = vpop.f32.mrb[0].mxu0
      %v2364 = vadd.f32 0.0, %v2363
      %v2365 = vpop.f32.mrb[0].mxu0
      %2366 = vmatprep.mubr.f32.mxu0 0.0
      %2367 = vmatmul.mubr.f32.gmra.mrb[0].mxu0 %v2055
      %v2368 = vpop.f32.mrb[0].mxu0
      %v2369 = vadd.f32 0.0, %v2368
      %v2370 = vpop.f32.mrb[0].mxu0
      %2371 = vmatprep.mubr.f32.mxu0 0.0
      %2372 = vmatmul.mubr.f32.gmra.mrb[0].mxu0 %v2058
      %v2373 = vpop.f32.mrb[0].mxu0
      %v2374 = vadd.f32 0.0, %v2373
      %v2375 = vpop.f32.mrb[0].mxu0
      %2376 = vmatprep.mubr.f32.mxu0 0.0
      %2377 = vmatmul.mubr.f32.gmra.mrb[0].mxu0 %v2061
      %v2378 = vpop.f32.mrb[0].mxu0
      %v2379 = vadd.f32 0.0, %v2378
      %v2380 = vpop.f32.mrb[0].mxu0
      %2381 = vmatprep.mubr.f32.mxu0 0.0
      %2382 = vmatmul.mubr.f32.gmra.mrb[0].mxu0 %v2064
      %v2383 = vpop.f32.mrb[0].mxu0
      %v2384 = vadd.f32 0.0, %v2383
      %v2385 = vpop.f32.mrb[0].mxu0
      %2386 = vmatprep.mubr.f32.mxu0 0.0
      %2387 = vmatmul.mubr.f32.gmra.mrb[0].mxu0 %v2067
      %v2388 = vpop.f32.mrb[0].mxu0
      %v2389 = vadd.f32 0.0, %v2388
      %v2390 = vpop.f32.mrb[0].mxu0
      %2391 = vmatprep.mubr.f32.mxu0 0.0
      %2392 = vmatmul.mubr.f32.gmra.mrb[0].mxu0 %v2070
      %v2393 = vpop.f32.mrb[0].mxu0
      %v2394 = vadd.f32 0.0, %v2393
      %v2395 = vpop.f32.mrb[0].mxu0
      %2396 = vmatprep.mubr.f32.mxu0 0.0
      %2397 = vmatmul.mubr.f32.gmra.mrb[0].mxu0 %v2073
      %v2398 = vpop.f32.mrb[0].mxu0
      %v2399 = vadd.f32 0.0, %v2398
      %v2400 = vpop.f32.mrb[0].mxu0
      %2401 = vmatprep.mubr.f32.mxu0 0.0
      %2402 = vmatmul.mubr.f32.gmra.mrb[0].mxu0 %v2076
      %v2403 = vpop.f32.mrb[0].mxu0
      %v2404 = vadd.f32 0.0, %v2403
      %v2405 = vpop.f32.mrb[0].mxu0
      %2406 = vmatprep.mubr.f32.mxu0 0.0
      %2407 = vmatmul.mubr.f32.gmra.mrb[0].mxu0 %v2079
      %v2408 = vpop.f32.mrb[0].mxu0
      %v2409 = vadd.f32 0.0, %v2408
      %v2410 = vpop.f32.mrb[0].mxu0
      %2411 = vmatprep.mubr.f32.mxu0 0.0
      %2412 = vmatmul.mubr.f32.gmra.mrb[0].mxu0 %v2082
      %v2413 = vpop.f32.mrb[0].mxu0
      %v2414 = vadd.f32 0.0, %v2413
      %v2415 = vpop.f32.mrb[0].mxu0
      %2416 = vmatprep.mubr.f32.mxu0 0.0
      %2417 = vmatmul.mubr.f32.gmra.mrb[0].mxu0 %v2085
      %v2418 = vpop.f32.mrb[0].mxu0
      %v2419 = vadd.f32 0.0, %v2418
      %v2420 = vpop.f32.mrb[0].mxu0
      %2421 = vmatprep.mubr.f32.mxu0 0.0
      %2422 = vmatmul.mubr.f32.gmra.mrb[0].mxu0 %v2088
      %v2423 = vpop.f32.mrb[0].mxu0
      %v2424 = vadd.f32 0.0, %v2423
      %v2425 = vpop.f32.mrb[0].mxu0
      %2426 = vmatprep.mubr.f32.mxu0 0.0
      %2427 = vmatmul.mubr.f32.gmra.mrb[0].mxu0 %v2091
      %v2428 = vpop.f32.mrb[0].mxu0
      %v2429 = vadd.f32 0.0, %v2428
      %v2430 = vpop.f32.mrb[0].mxu0
      %2431 = vmatprep.mubr.f32.mxu0 0.0
      %2432 = vmatmul.mubr.f32.gmra.mrb[0].mxu0 %v2094
      %v2433 = vpop.f32.mrb[0].mxu0
      %v2434 = vadd.f32 0.0, %v2433
      %v2435 = vpop.f32.mrb[0].mxu0
      %2436 = vmatprep.mubr.f32.mxu0 0.0
      %2437 = vmatmul.mubr.f32.gmra.mrb[0].mxu0 %v2097
      %v2438 = vpop.f32.mrb[0].mxu0
      %v2439 = vadd.f32 0.0, %v2438
      %v2440 = vpop.f32.mrb[0].mxu0
      %2441 = vmatprep.mubr.f32.mxu0 0.0
      %2442 = vmatmul.mubr.f32.gmra.mrb[0].mxu0 %v2100
      %v2443 = vpop.f32.mrb[0].mxu0
      %v2444 = vadd.f32 0.0, %v2443
      %v2445 = vpop.f32.mrb[0].mxu0
      %2446 = vmatprep.mubr.f32.mxu0 0.0
      %2447 = vmatmul.mubr.f32.gmra.mrb[0].mxu0 %v2103
      %v2448 = vpop.f32.mrb[0].mxu0
      %v2449 = vadd.f32 0.0, %v2448
      %v2450 = vpop.f32.mrb[0].mxu0
      %2451 = vmatprep.mubr.f32.mxu0 0.0
      %2452 = vmatmul.mubr.f32.gmra.mrb[0].mxu0 %v2106
      %v2453 = vpop.f32.mrb[0].mxu0
      %v2454 = vadd.f32 0.0, %v2453
      %v2455 = vpop.f32.mrb[0].mxu0
      %2456 = vmatprep.mubr.f32.mxu0 0.0
      %2457 = vmatmul.mubr.f32.gmra.mrb[0].mxu0 %v2109
      %v2458 = vpop.f32.mrb[0].mxu0
      %v2459 = vadd.f32 0.0, %v2458
      %v2460 = vpop.f32.mrb[0].mxu0
      %2461 = vmatprep.mubr.f32.mxu0 0.0
      %2462 = vmatmul.mubr.f32.gmra.mrb[0].mxu0 %v2112
      %v2463 = vpop.f32.mrb[0].mxu0
      %v2464 = vadd.f32 0.0, %v2463
      %v2465 = vpop.f32.mrb[0].mxu0
      %2466 = vmatprep.mubr.f32.mxu0 0.0
      %2467 = vmatmul.mubr.f32.gmra.mrb[0].mxu0 %v2115
      %v2468 = vpop.f32.mrb[0].mxu0
      %v2469 = vadd.f32 0.0, %v2468
      %v2470 = vpop.f32.mrb[0].mxu0
      %2471 = vmatprep.mubr.f32.mxu0 0.0
      %2472 = vmatmul.mubr.f32.gmra.mrb[0].mxu0 %v2118
      %v2473 = vpop.f32.mrb[0].mxu0
      %v2474 = vadd.f32 0.0, %v2473
      %v2475 = vpop.f32.mrb[0].mxu0
      %2476 = vmatprep.mubr.f32.mxu0 0.0
      %2477 = vmatmul.mubr.f32.gmra.mrb[0].mxu0 %v2121
      %v2478 = vpop.f32.mrb[0].mxu0
      %v2479 = vadd.f32 0.0, %v2478
      %v2480 = vpop.f32.mrb[0].mxu0
      %2481 = vmatprep.mubr.f32.mxu0 0.0
      %2482 = vmatmul.mubr.f32.gmra.mrb[0].mxu0 %v2124
      %v2483 = vpop.f32.mrb[0].mxu0
      %v2484 = vadd.f32 0.0, %v2483
      %v2485 = vpop.f32.mrb[0].mxu0
      %2486 = vmatprep.mubr.f32.mxu0 0.0
      %2487 = vmatmul.mubr.f32.gmra.mrb[0].mxu0 %v2127
      %v2488 = vpop.f32.mrb[0].mxu0
      %v2489 = vadd.f32 0.0, %v2488
      %v2490 = vpop.f32.mrb[0].mxu0
      %2491 = vmatprep.mubr.f32.mxu0 0.0
      %2492 = vmatmul.mubr.f32.gmra.mrb[0].mxu0 %v2130
      %v2493 = vpop.f32.mrb[0].mxu0
      %v2494 = vadd.f32 0.0, %v2493
      %v2495 = vpop.f32.mrb[0].mxu0
      %2496 = vmatprep.mubr.f32.mxu0 0.0
      %2497 = vmatmul.mubr.f32.gmra.mrb[0].mxu0 %v2133
      %v2498 = vpop.f32.mrb[0].mxu0
      %v2499 = vadd.f32 0.0, %v2498
      %v2500 = vpop.f32.mrb[0].mxu0
      %2501 = vmatprep.mubr.f32.mxu0 0.0
      %2502 = vmatmul.mubr.f32.gmra.mrb[0].mxu0 %v2136
      %v2503 = vpop.f32.mrb[0].mxu0
      %v2504 = vadd.f32 0.0, %v2503
      %v2505 = vpop.f32.mrb[0].mxu0
      %2506 = vmatprep.mubr.f32.mxu0 0.0
      %2507 = vmatmul.mubr.f32.gmra.mrb[0].mxu0 %v2139
      %v2508 = vpop.f32.mrb[0].mxu0
      %v2509 = vadd.f32 0.0, %v2508
      %v2510 = vpop.f32.mrb[0].mxu0
      %2511 = vmatprep.mubr.f32.mxu0 0.0
      %2512 = vmatmul.mubr.f32.gmra.mrb[0].mxu0 %v2142
      %v2513 = vpop.f32.mrb[0].mxu0
      %v2514 = vadd.f32 0.0, %v2513
      %v2515 = vpop.f32.mrb[0].mxu0
      %2516 = vmatprep.mubr.f32.mxu0 0.0
      %2517 = vmatmul.mubr.f32.gmra.mrb[0].mxu0 %v2145
      %v2518 = vpop.f32.mrb[0].mxu0
      %v2519 = vadd.f32 0.0, %v2518
      %v2520 = vpop.f32.mrb[0].mxu0
      %2521 = vmatprep.mubr.f32.mxu0 0.0
      %2522 = vmatmul.mubr.f32.gmra.mrb[0].mxu0 %v2148
      %v2523 = vpop.f32.mrb[0].mxu0
      %v2524 = vadd.f32 0.0, %v2523
      %v2525 = vpop.f32.mrb[0].mxu0
      %2526 = vmatprep.mubr.f32.mxu0 0.0
      %2527 = vmatmul.mubr.f32.gmra.mrb[0].mxu0 %v2151
      %v2528 = vpop.f32.mrb[0].mxu0
      %v2529 = vadd.f32 0.0, %v2528
      %v2530 = vpop.f32.mrb[0].mxu0
      %2531 = vmatprep.mubr.f32.mxu0 0.0
      %2532 = vmatmul.mubr.f32.gmra.mrb[0].mxu0 %v2154
      %v2533 = vpop.f32.mrb[0].mxu0
      %v2534 = vadd.f32 0.0, %v2533
      %v2535 = vpop.f32.mrb[0].mxu0
      %2536 = vmatprep.mubr.f32.mxu0 0.0
      %2537 = vmatmul.mubr.f32.gmra.mrb[0].mxu0 %v2157
      %v2538 = vpop.f32.mrb[0].mxu0
      %v2539 = vadd.f32 0.0, %v2538
      %v2540 = vpop.f32.mrb[0].mxu0
      %2541 = vmatprep.mubr.f32.mxu0 0.0
      %2542 = vmatmul.mubr.f32.gmra.mrb[0].mxu0 %v2160
      %v2543 = vpop.f32.mrb[0].mxu0
      %v2544 = vadd.f32 0.0, %v2543
      %v2545 = vpop.f32.mrb[0].mxu0
      %2546 = vmatprep.mubr.f32.mxu0 0.0
      %2547 = vmatmul.mubr.f32.gmra.mrb[0].mxu0 %v2163
      %v2548 = vpop.f32.mrb[0].mxu0
      %v2549 = vadd.f32 0.0, %v2548
      %v2550 = vpop.f32.mrb[0].mxu0
      %2551 = vmatprep.mubr.f32.mxu0 0.0
      %2552 = vmatmul.mubr.f32.gmra.mrb[0].mxu0 %v2166
      %v2553 = vpop.f32.mrb[0].mxu0
      %v2554 = vadd.f32 0.0, %v2553
      %v2555 = vpop.f32.mrb[0].mxu0
      %2556 = vdwg.mxu0
      %v2557 = vlaneseq
      %v2558 = vand.u32 %v2557, 127
      %v2559 = vcvt.s32.f32 %v2558
      %vm2560 = vcmp.eq.f32.partialorder %v2239, %v2559
      %vm2561 = vcmp.eq.f32.partialorder %v2244, %v2559
      %vm2562 = vcmp.eq.f32.partialorder %v2249, %v2559
      %vm2563 = vcmp.eq.f32.partialorder %v2254, %v2559
      %vm2564 = vcmp.eq.f32.partialorder %v2259, %v2559
      %vm2565 = vcmp.eq.f32.partialorder %v2264, %v2559
      %vm2566 = vcmp.eq.f32.partialorder %v2269, %v2559
      %vm2567 = vcmp.eq.f32.partialorder %v2274, %v2559
      %vm2568 = vcmp.eq.f32.partialorder %v2279, %v2559
      %vm2569 = vcmp.eq.f32.partialorder %v2284, %v2559
      %vm2570 = vcmp.eq.f32.partialorder %v2289, %v2559
      %vm2571 = vcmp.eq.f32.partialorder %v2294, %v2559
      %vm2572 = vcmp.eq.f32.partialorder %v2299, %v2559
      %vm2573 = vcmp.eq.f32.partialorder %v2304, %v2559
      %vm2574 = vcmp.eq.f32.partialorder %v2309, %v2559
      %vm2575 = vcmp.eq.f32.partialorder %v2314, %v2559
      %vm2576 = vcmp.eq.f32.partialorder %v2319, %v2559
      %vm2577 = vcmp.eq.f32.partialorder %v2324, %v2559
      %vm2578 = vcmp.eq.f32.partialorder %v2329, %v2559
      %vm2579 = vcmp.eq.f32.partialorder %v2334, %v2559
      %vm2580 = vcmp.eq.f32.partialorder %v2339, %v2559
      %vm2581 = vcmp.eq.f32.partialorder %v2344, %v2559
      %vm2582 = vcmp.eq.f32.partialorder %v2349, %v2559
      %vm2583 = vcmp.eq.f32.partialorder %v2354, %v2559
      %vm2584 = vcmp.eq.f32.partialorder %v2359, %v2559
      %vm2585 = vcmp.eq.f32.partialorder %v2364, %v2559
      %vm2586 = vcmp.eq.f32.partialorder %v2369, %v2559
      %vm2587 = vcmp.eq.f32.partialorder %v2374, %v2559
      %vm2588 = vcmp.eq.f32.partialorder %v2379, %v2559
      %vm2589 = vcmp.eq.f32.partialorder %v2384, %v2559
      %vm2590 = vcmp.eq.f32.partialorder %v2389, %v2559
      %vm2591 = vcmp.eq.f32.partialorder %v2394, %v2559
      %vm2592 = vcmp.eq.f32.partialorder %v2399, %v2559
      %vm2593 = vcmp.eq.f32.partialorder %v2404, %v2559
      %vm2594 = vcmp.eq.f32.partialorder %v2409, %v2559
      %vm2595 = vcmp.eq.f32.partialorder %v2414, %v2559
      %vm2596 = vcmp.eq.f32.partialorder %v2419, %v2559
      %vm2597 = vcmp.eq.f32.partialorder %v2424, %v2559
      %vm2598 = vcmp.eq.f32.partialorder %v2429, %v2559
      %vm2599 = vcmp.eq.f32.partialorder %v2434, %v2559
      %vm2600 = vcmp.eq.f32.partialorder %v2439, %v2559
      %vm2601 = vcmp.eq.f32.partialorder %v2444, %v2559
      %vm2602 = vcmp.eq.f32.partialorder %v2449, %v2559
      %vm2603 = vcmp.eq.f32.partialorder %v2454, %v2559
      %vm2604 = vcmp.eq.f32.partialorder %v2459, %v2559
      %vm2605 = vcmp.eq.f32.partialorder %v2464, %v2559
      %vm2606 = vcmp.eq.f32.partialorder %v2469, %v2559
      %vm2607 = vcmp.eq.f32.partialorder %v2474, %v2559
      %vm2608 = vcmp.eq.f32.partialorder %v2479, %v2559
      %vm2609 = vcmp.eq.f32.partialorder %v2484, %v2559
      %vm2610 = vcmp.eq.f32.partialorder %v2489, %v2559
      %vm2611 = vcmp.eq.f32.partialorder %v2494, %v2559
      %vm2612 = vcmp.eq.f32.partialorder %v2499, %v2559
      %vm2613 = vcmp.eq.f32.partialorder %v2504, %v2559
      %vm2614 = vcmp.eq.f32.partialorder %v2509, %v2559
      %vm2615 = vcmp.eq.f32.partialorder %v2514, %v2559
      %vm2616 = vcmp.eq.f32.partialorder %v2519, %v2559
      %vm2617 = vcmp.eq.f32.partialorder %v2524, %v2559
      %vm2618 = vcmp.eq.f32.partialorder %v2529, %v2559
      %vm2619 = vcmp.eq.f32.partialorder %v2534, %v2559
      %vm2620 = vcmp.eq.f32.partialorder %v2539, %v2559
      %vm2621 = vcmp.eq.f32.partialorder %v2544, %v2559
      %vm2622 = vcmp.eq.f32.partialorder %v2549, %v2559
      %vm2623 = vcmp.eq.f32.partialorder %v2554, %v2559
      %v2624 = vsel %vm2560, %v1656, 0.0
      %v2625 = vsel %vm2561, %v1659, 0.0
      %v2626 = vsel %vm2562, %v1664, 0.0
      %v2627 = vsel %vm2563, %v1667, 0.0
      %v2628 = vsel %vm2564, %v1672, 0.0
      %v2629 = vsel %vm2565, %v1675, 0.0
      %v2630 = vsel %vm2566, %v1680, 0.0
      %v2631 = vsel %vm2567, %v1683, 0.0
      %v2632 = vsel %vm2568, %v1688, 0.0
      %v2633 = vsel %vm2569, %v1691, 0.0
      %v2634 = vsel %vm2570, %v1696, 0.0
      %v2635 = vsel %vm2571, %v1699, 0.0
      %v2636 = vsel %vm2572, %v1704, 0.0
      %v2637 = vsel %vm2573, %v1707, 0.0
      %v2638 = vsel %vm2574, %v1712, 0.0
      %v2639 = vsel %vm2575, %v1715, 0.0
      %v2640 = vsel %vm2576, %v1720, 0.0
      %v2641 = vsel %vm2577, %v1723, 0.0
      %v2642 = vsel %vm2578, %v1728, 0.0
      %v2643 = vsel %vm2579, %v1731, 0.0
      %v2644 = vsel %vm2580, %v1736, 0.0
      %v2645 = vsel %vm2581, %v1739, 0.0
      %v2646 = vsel %vm2582, %v1744, 0.0
      %v2647 = vsel %vm2583, %v1747, 0.0
      %v2648 = vsel %vm2584, %v1752, 0.0
      %v2649 = vsel %vm2585, %v1755, 0.0
      %v2650 = vsel %vm2586, %v1760, 0.0
      %v2651 = vsel %vm2587, %v1763, 0.0
      %v2652 = vsel %vm2588, %v1768, 0.0
      %v2653 = vsel %vm2589, %v1771, 0.0
      %v2654 = vsel %vm2590, %v1776, 0.0
      %v2655 = vsel %vm2591, %v1779, 0.0
      %v2656 = vsel %vm2592, %v1784, 0.0
      %v2657 = vsel %vm2593, %v1787, 0.0
      %v2658 = vsel %vm2594, %v1792, 0.0
      %v2659 = vsel %vm2595, %v1795, 0.0
      %v2660 = vsel %vm2596, %v1800, 0.0
      %v2661 = vsel %vm2597, %v1803, 0.0
      %v2662 = vsel %vm2598, %v1808, 0.0
      %v2663 = vsel %vm2599, %v1811, 0.0
      %v2664 = vsel %vm2600, %v1816, 0.0
      %v2665 = vsel %vm2601, %v1819, 0.0
      %v2666 = vsel %vm2602, %v1824, 0.0
      %v2667 = vsel %vm2603, %v1827, 0.0
      %v2668 = vsel %vm2604, %v1832, 0.0
      %v2669 = vsel %vm2605, %v1835, 0.0
      %v2670 = vsel %vm2606, %v1840, 0.0
      %v2671 = vsel %vm2607, %v1843, 0.0
      %v2672 = vsel %vm2608, %v1848, 0.0
      %v2673 = vsel %vm2609, %v1851, 0.0
      %v2674 = vsel %vm2610, %v1856, 0.0
      %v2675 = vsel %vm2611, %v1859, 0.0
      %v2676 = vsel %vm2612, %v1864, 0.0
      %v2677 = vsel %vm2613, %v1867, 0.0
      %v2678 = vsel %vm2614, %v1872, 0.0
      %v2679 = vsel %vm2615, %v1875, 0.0
      %v2680 = vsel %vm2616, %v1880, 0.0
      %v2681 = vsel %vm2617, %v1883, 0.0
      %v2682 = vsel %vm2618, %v1888, 0.0
      %v2683 = vsel %vm2619, %v1891, 0.0
      %v2684 = vsel %vm2620, %v1896, 0.0
      %v2685 = vsel %vm2621, %v1899, 0.0
      %v2686 = vsel %vm2622, %v1904, 0.0
      %v2687 = vsel %vm2623, %v1907, 0.0
      %v2688 = vpack.c.bf16 %v2625, %v2624
      %v2689 = vpack.c.bf16 %v2627, %v2626
      %v2690 = vpack.c.bf16 %v2629, %v2628
      %v2691 = vpack.c.bf16 %v2631, %v2630
      %v2692 = vpack.c.bf16 %v2633, %v2632
      %v2693 = vpack.c.bf16 %v2635, %v2634
      %v2694 = vpack.c.bf16 %v2637, %v2636
      %v2695 = vpack.c.bf16 %v2639, %v2638
      %v2696 = vpack.c.bf16 %v2641, %v2640
      %v2697 = vpack.c.bf16 %v2643, %v2642
      %v2698 = vpack.c.bf16 %v2645, %v2644
      %v2699 = vpack.c.bf16 %v2647, %v2646
      %v2700 = vpack.c.bf16 %v2649, %v2648
      %v2701 = vpack.c.bf16 %v2651, %v2650
      %v2702 = vpack.c.bf16 %v2653, %v2652
      %v2703 = vpack.c.bf16 %v2655, %v2654
      %v2704 = vpack.c.bf16 %v2657, %v2656
      %v2705 = vpack.c.bf16 %v2659, %v2658
      %v2706 = vpack.c.bf16 %v2661, %v2660
      %v2707 = vpack.c.bf16 %v2663, %v2662
      %v2708 = vpack.c.bf16 %v2665, %v2664
      %v2709 = vpack.c.bf16 %v2667, %v2666
      %v2710 = vpack.c.bf16 %v2669, %v2668
      %v2711 = vpack.c.bf16 %v2671, %v2670
      %v2712 = vpack.c.bf16 %v2673, %v2672
      %v2713 = vpack.c.bf16 %v2675, %v2674
      %v2714 = vpack.c.bf16 %v2677, %v2676
      %v2715 = vpack.c.bf16 %v2679, %v2678
      %v2716 = vpack.c.bf16 %v2681, %v2680
      %v2717 = vpack.c.bf16 %v2683, %v2682
      %v2718 = vpack.c.bf16 %v2685, %v2684
      %v2719 = vpack.c.bf16 %v2687, %v2686
      %v2720 = vld [vmem:[%s15] sm:$0xff]
      %v2721 = vld [vmem:[%s15 + $0x8] sm:$0xff]
      %v2722 = vld [vmem:[%s15 + $0x10] sm:$0xff]
      %v2723 = vld [vmem:[%s15 + $0x18] sm:$0xff]
      %v2728 = vunpack.c.l.b16 %v2720
      %v2729 = vunpack.c.h.b16 %v2720
      %v2730 = vunpack.c.l.b16 %v2721
      %v2731 = vunpack.c.h.b16 %v2721
      %v2732 = vunpack.c.l.b16 %v2722
      %v2733 = vunpack.c.h.b16 %v2722
      %v2734 = vunpack.c.l.b16 %v2723
      %v2735 = vunpack.c.h.b16 %v2723
      %v2736 = vpack.c.b16 %v2730, %v2728
      %v2737 = vpack.c.b16 %v2731, %v2729
      %v2738 = vpack.c.b16 %v2734, %v2732
      %v2739 = vpack.c.b16 %v2735, %v2733
      %vm2744 = vcmask 261120
      %v2746 = vsel %vm2744, %v2688, 0
      %v2749 = vsel %vm2744, %v2689, 0
      %v2752 = vsel %vm2744, %v2690, 0
      %v2755 = vsel %vm2744, %v2691, 0
      %v2758 = vsel %vm2744, %v2692, 0
      %v2761 = vsel %vm2744, %v2693, 0
      %v2764 = vsel %vm2744, %v2694, 0
      %v2767 = vsel %vm2744, %v2695, 0
      %v2770 = vsel %vm2744, %v2696, 0
      %v2773 = vsel %vm2744, %v2697, 0
      %v2776 = vsel %vm2744, %v2698, 0
      %v2779 = vsel %vm2744, %v2699, 0
      %v2782 = vsel %vm2744, %v2700, 0
      %v2785 = vsel %vm2744, %v2701, 0
      %v2788 = vsel %vm2744, %v2702, 0
      %v2791 = vsel %vm2744, %v2703, 0
      %v2794 = vsel %vm2744, %v2704, 0
      %v2797 = vsel %vm2744, %v2705, 0
      %v2800 = vsel %vm2744, %v2706, 0
      %v2803 = vsel %vm2744, %v2707, 0
      %v2806 = vsel %vm2744, %v2708, 0
      %v2809 = vsel %vm2744, %v2709, 0
      %v2812 = vsel %vm2744, %v2710, 0
      %v2815 = vsel %vm2744, %v2711, 0
      %v2818 = vsel %vm2744, %v2712, 0
      %v2821 = vsel %vm2744, %v2713, 0
      %v2824 = vsel %vm2744, %v2714, 0
      %v2827 = vsel %vm2744, %v2715, 0
      %v2830 = vsel %vm2744, %v2716, 0
      %v2833 = vsel %vm2744, %v2717, 0
      %v2836 = vsel %vm2744, %v2718, 0
      %v2839 = vsel %vm2744, %v2719, 0
      %2841 = vmatprep.subr.bf16.mxu0 %v2737
      %2842 = vmatpush1.bf16.msra.mxu0 %v2736
      %2843 = vmatprep.subr.bf16.mxu0 %v2739
      %2844 = vmatpush1.bf16.msra.mxu0 %v2738
      %2845 = vmatprep.subr.bf16.mxu0 0
      %2846 = vmatpush1.bf16.msra.mxu0 0
      %2847 = vmatprep.subr.bf16.mxu0 0
      %2848 = vmatpush1.bf16.msra.mxu0 0
      %2849 = vmatprep.subr.bf16.mxu0 0
      %2850 = vmatpush1.bf16.msra.mxu0 0
      %2851 = vmatprep.subr.bf16.mxu0 0
      %2852 = vmatpush1.bf16.msra.mxu0 0
      %2853 = vmatprep.subr.bf16.mxu0 0
      %2854 = vmatpush1.bf16.msra.mxu0 0
      %2855 = vmatprep.subr.bf16.mxu0 0
      %2856 = vmatpush1.bf16.msra.mxu0 0
      %2857 = vmatprep.subr.bf16.mxu0 0
      %2858 = vmatpush1.bf16.msra.mxu0 0
      %2859 = vmatprep.subr.bf16.mxu0 0
      %2860 = vmatpush1.bf16.msra.mxu0 0
      %2861 = vmatprep.subr.bf16.mxu0 0
      %2862 = vmatpush1.bf16.msra.mxu0 0
      %2863 = vmatprep.subr.bf16.mxu0 0
      %2864 = vmatpush1.bf16.msra.mxu0 0
      %2865 = vmatprep.subr.bf16.mxu0 0
      %2866 = vmatpush1.bf16.msra.mxu0 0
      %2867 = vmatprep.subr.bf16.mxu0 0
      %2868 = vmatpush1.bf16.msra.mxu0 0
      %2869 = vmatprep.subr.bf16.mxu0 0
      %2870 = vmatpush1.bf16.msra.mxu0 0
      %2871 = vmatprep.subr.bf16.mxu0 0
      %2872 = vmatpush1.bf16.msra.mxu0 0
      %2873 = vmatprep.mubr.bf16.mxu0 0
      %2874 = vmatmul.mubr.bf16.gmra.mrb[0].mxu0 %v2746
      %v2875 = vpop.f32.mrb[0].mxu0
      %v2876 = vadd.f32 0.0, %v2875
      %v2877 = vpop.f32.mrb[0].mxu0
      %v2878 = vadd.f32 0.0, %v2877
      %v2879 = vpop.f32.mrb[0].mxu0
      %v2880 = vadd.f32 0.0, %v2879
      %v2881 = vpop.f32.mrb[0].mxu0
      %v2882 = vadd.f32 0.0, %v2881
      %2883 = vmatprep.mubr.bf16.mxu0 0
      %2884 = vmatmul.mubr.bf16.gmra.mrb[0].mxu0 %v2749
      %v2885 = vpop.f32.mrb[0].mxu0
      %v2886 = vadd.f32 0.0, %v2885
      %v2887 = vpop.f32.mrb[0].mxu0
      %v2888 = vadd.f32 0.0, %v2887
      %v2889 = vpop.f32.mrb[0].mxu0
      %v2890 = vadd.f32 0.0, %v2889
      %v2891 = vpop.f32.mrb[0].mxu0
      %v2892 = vadd.f32 0.0, %v2891
      %2893 = vmatprep.mubr.bf16.mxu0 0
      %2894 = vmatmul.mubr.bf16.gmra.mrb[0].mxu0 %v2752
      %v2895 = vpop.f32.mrb[0].mxu0
      %v2896 = vadd.f32 0.0, %v2895
      %v2897 = vpop.f32.mrb[0].mxu0
      %v2898 = vadd.f32 0.0, %v2897
      %v2899 = vpop.f32.mrb[0].mxu0
      %v2900 = vadd.f32 0.0, %v2899
      %v2901 = vpop.f32.mrb[0].mxu0
      %v2902 = vadd.f32 0.0, %v2901
      %2903 = vmatprep.mubr.bf16.mxu0 0
      %2904 = vmatmul.mubr.bf16.gmra.mrb[0].mxu0 %v2755
      %v2905 = vpop.f32.mrb[0].mxu0
      %v2906 = vadd.f32 0.0, %v2905
      %v2907 = vpop.f32.mrb[0].mxu0
      %v2908 = vadd.f32 0.0, %v2907
      %v2909 = vpop.f32.mrb[0].mxu0
      %v2910 = vadd.f32 0.0, %v2909
      %v2911 = vpop.f32.mrb[0].mxu0
      %v2912 = vadd.f32 0.0, %v2911
      %2913 = vmatprep.mubr.bf16.mxu0 0
      %2914 = vmatmul.mubr.bf16.gmra.mrb[0].mxu0 %v2758
      %v2915 = vpop.f32.mrb[0].mxu0
      %v2916 = vadd.f32 0.0, %v2915
      %v2917 = vpop.f32.mrb[0].mxu0
      %v2918 = vadd.f32 0.0, %v2917
      %v2919 = vpop.f32.mrb[0].mxu0
      %v2920 = vadd.f32 0.0, %v2919
      %v2921 = vpop.f32.mrb[0].mxu0
      %v2922 = vadd.f32 0.0, %v2921
      %2923 = vmatprep.mubr.bf16.mxu0 0
      %2924 = vmatmul.mubr.bf16.gmra.mrb[0].mxu0 %v2761
      %v2925 = vpop.f32.mrb[0].mxu0
      %v2926 = vadd.f32 0.0, %v2925
      %v2927 = vpop.f32.mrb[0].mxu0
      %v2928 = vadd.f32 0.0, %v2927
      %v2929 = vpop.f32.mrb[0].mxu0
      %v2930 = vadd.f32 0.0, %v2929
      %v2931 = vpop.f32.mrb[0].mxu0
      %v2932 = vadd.f32 0.0, %v2931
      %2933 = vmatprep.mubr.bf16.mxu0 0
      %2934 = vmatmul.mubr.bf16.gmra.mrb[0].mxu0 %v2764
      %v2935 = vpop.f32.mrb[0].mxu0
      %v2936 = vadd.f32 0.0, %v2935
      %v2937 = vpop.f32.mrb[0].mxu0
      %v2938 = vadd.f32 0.0, %v2937
      %v2939 = vpop.f32.mrb[0].mxu0
      %v2940 = vadd.f32 0.0, %v2939
      %v2941 = vpop.f32.mrb[0].mxu0
      %v2942 = vadd.f32 0.0, %v2941
      %2943 = vmatprep.mubr.bf16.mxu0 0
      %2944 = vmatmul.mubr.bf16.gmra.mrb[0].mxu0 %v2767
      %v2945 = vpop.f32.mrb[0].mxu0
      %v2946 = vadd.f32 0.0, %v2945
      %v2947 = vpop.f32.mrb[0].mxu0
      %v2948 = vadd.f32 0.0, %v2947
      %v2949 = vpop.f32.mrb[0].mxu0
      %v2950 = vadd.f32 0.0, %v2949
      %v2951 = vpop.f32.mrb[0].mxu0
      %v2952 = vadd.f32 0.0, %v2951
      %2953 = vmatprep.mubr.bf16.mxu0 0
      %2954 = vmatmul.mubr.bf16.gmra.mrb[0].mxu0 %v2770
      %v2955 = vpop.f32.mrb[0].mxu0
      %v2956 = vadd.f32 0.0, %v2955
      %v2957 = vpop.f32.mrb[0].mxu0
      %v2958 = vadd.f32 0.0, %v2957
      %v2959 = vpop.f32.mrb[0].mxu0
      %v2960 = vadd.f32 0.0, %v2959
      %v2961 = vpop.f32.mrb[0].mxu0
      %v2962 = vadd.f32 0.0, %v2961
      %2963 = vmatprep.mubr.bf16.mxu0 0
      %2964 = vmatmul.mubr.bf16.gmra.mrb[0].mxu0 %v2773
      %v2965 = vpop.f32.mrb[0].mxu0
      %v2966 = vadd.f32 0.0, %v2965
      %v2967 = vpop.f32.mrb[0].mxu0
      %v2968 = vadd.f32 0.0, %v2967
      %v2969 = vpop.f32.mrb[0].mxu0
      %v2970 = vadd.f32 0.0, %v2969
      %v2971 = vpop.f32.mrb[0].mxu0
      %v2972 = vadd.f32 0.0, %v2971
      %2973 = vmatprep.mubr.bf16.mxu0 0
      %2974 = vmatmul.mubr.bf16.gmra.mrb[0].mxu0 %v2776
      %v2975 = vpop.f32.mrb[0].mxu0
      %v2976 = vadd.f32 0.0, %v2975
      %v2977 = vpop.f32.mrb[0].mxu0
      %v2978 = vadd.f32 0.0, %v2977
      %v2979 = vpop.f32.mrb[0].mxu0
      %v2980 = vadd.f32 0.0, %v2979
      %v2981 = vpop.f32.mrb[0].mxu0
      %v2982 = vadd.f32 0.0, %v2981
      %2983 = vmatprep.mubr.bf16.mxu0 0
      %2984 = vmatmul.mubr.bf16.gmra.mrb[0].mxu0 %v2779
      %v2985 = vpop.f32.mrb[0].mxu0
      %v2986 = vadd.f32 0.0, %v2985
      %v2987 = vpop.f32.mrb[0].mxu0
      %v2988 = vadd.f32 0.0, %v2987
      %v2989 = vpop.f32.mrb[0].mxu0
      %v2990 = vadd.f32 0.0, %v2989
      %v2991 = vpop.f32.mrb[0].mxu0
      %v2992 = vadd.f32 0.0, %v2991
      %2993 = vmatprep.mubr.bf16.mxu0 0
      %2994 = vmatmul.mubr.bf16.gmra.mrb[0].mxu0 %v2782
      %v2995 = vpop.f32.mrb[0].mxu0
      %v2996 = vadd.f32 0.0, %v2995
      %v2997 = vpop.f32.mrb[0].mxu0
      %v2998 = vadd.f32 0.0, %v2997
      %v2999 = vpop.f32.mrb[0].mxu0
      %v3000 = vadd.f32 0.0, %v2999
      %v3001 = vpop.f32.mrb[0].mxu0
      %v3002 = vadd.f32 0.0, %v3001
      %3003 = vmatprep.mubr.bf16.mxu0 0
      %3004 = vmatmul.mubr.bf16.gmra.mrb[0].mxu0 %v2785
      %v3005 = vpop.f32.mrb[0].mxu0
      %v3006 = vadd.f32 0.0, %v3005
      %v3007 = vpop.f32.mrb[0].mxu0
      %v3008 = vadd.f32 0.0, %v3007
      %v3009 = vpop.f32.mrb[0].mxu0
      %v3010 = vadd.f32 0.0, %v3009
      %v3011 = vpop.f32.mrb[0].mxu0
      %v3012 = vadd.f32 0.0, %v3011
      %3013 = vmatprep.mubr.bf16.mxu0 0
      %3014 = vmatmul.mubr.bf16.gmra.mrb[0].mxu0 %v2788
      %v3015 = vpop.f32.mrb[0].mxu0
      %v3016 = vadd.f32 0.0, %v3015
      %v3017 = vpop.f32.mrb[0].mxu0
      %v3018 = vadd.f32 0.0, %v3017
      %v3019 = vpop.f32.mrb[0].mxu0
      %v3020 = vadd.f32 0.0, %v3019
      %v3021 = vpop.f32.mrb[0].mxu0
      %v3022 = vadd.f32 0.0, %v3021
      %3023 = vmatprep.mubr.bf16.mxu0 0
      %3024 = vmatmul.mubr.bf16.gmra.mrb[0].mxu0 %v2791
      %v3025 = vpop.f32.mrb[0].mxu0
      %v3026 = vadd.f32 0.0, %v3025
      %v3027 = vpop.f32.mrb[0].mxu0
      %v3028 = vadd.f32 0.0, %v3027
      %v3029 = vpop.f32.mrb[0].mxu0
      %v3030 = vadd.f32 0.0, %v3029
      %v3031 = vpop.f32.mrb[0].mxu0
      %v3032 = vadd.f32 0.0, %v3031
      %3033 = vmatprep.mubr.bf16.mxu0 0
      %3034 = vmatmul.mubr.bf16.gmra.mrb[0].mxu0 %v2794
      %v3035 = vpop.f32.mrb[0].mxu0
      %v3036 = vadd.f32 0.0, %v3035
      %v3037 = vpop.f32.mrb[0].mxu0
      %v3038 = vadd.f32 0.0, %v3037
      %v3039 = vpop.f32.mrb[0].mxu0
      %v3040 = vadd.f32 0.0, %v3039
      %v3041 = vpop.f32.mrb[0].mxu0
      %v3042 = vadd.f32 0.0, %v3041
      %3043 = vmatprep.mubr.bf16.mxu0 0
      %3044 = vmatmul.mubr.bf16.gmra.mrb[0].mxu0 %v2797
      %v3045 = vpop.f32.mrb[0].mxu0
      %v3046 = vadd.f32 0.0, %v3045
      %v3047 = vpop.f32.mrb[0].mxu0
      %v3048 = vadd.f32 0.0, %v3047
      %v3049 = vpop.f32.mrb[0].mxu0
      %v3050 = vadd.f32 0.0, %v3049
      %v3051 = vpop.f32.mrb[0].mxu0
      %v3052 = vadd.f32 0.0, %v3051
      %3053 = vmatprep.mubr.bf16.mxu0 0
      %3054 = vmatmul.mubr.bf16.gmra.mrb[0].mxu0 %v2800
      %v3055 = vpop.f32.mrb[0].mxu0
      %v3056 = vadd.f32 0.0, %v3055
      %v3057 = vpop.f32.mrb[0].mxu0
      %v3058 = vadd.f32 0.0, %v3057
      %v3059 = vpop.f32.mrb[0].mxu0
      %v3060 = vadd.f32 0.0, %v3059
      %v3061 = vpop.f32.mrb[0].mxu0
      %v3062 = vadd.f32 0.0, %v3061
      %3063 = vmatprep.mubr.bf16.mxu0 0
      %3064 = vmatmul.mubr.bf16.gmra.mrb[0].mxu0 %v2803
      %v3065 = vpop.f32.mrb[0].mxu0
      %v3066 = vadd.f32 0.0, %v3065
      %v3067 = vpop.f32.mrb[0].mxu0
      %v3068 = vadd.f32 0.0, %v3067
      %v3069 = vpop.f32.mrb[0].mxu0
      %v3070 = vadd.f32 0.0, %v3069
      %v3071 = vpop.f32.mrb[0].mxu0
      %v3072 = vadd.f32 0.0, %v3071
      %3073 = vmatprep.mubr.bf16.mxu0 0
      %3074 = vmatmul.mubr.bf16.gmra.mrb[0].mxu0 %v2806
      %v3075 = vpop.f32.mrb[0].mxu0
      %v3076 = vadd.f32 0.0, %v3075
      %v3077 = vpop.f32.mrb[0].mxu0
      %v3078 = vadd.f32 0.0, %v3077
      %v3079 = vpop.f32.mrb[0].mxu0
      %v3080 = vadd.f32 0.0, %v3079
      %v3081 = vpop.f32.mrb[0].mxu0
      %v3082 = vadd.f32 0.0, %v3081
      %3083 = vmatprep.mubr.bf16.mxu0 0
      %3084 = vmatmul.mubr.bf16.gmra.mrb[0].mxu0 %v2809
      %v3085 = vpop.f32.mrb[0].mxu0
      %v3086 = vadd.f32 0.0, %v3085
      %v3087 = vpop.f32.mrb[0].mxu0
      %v3088 = vadd.f32 0.0, %v3087
      %v3089 = vpop.f32.mrb[0].mxu0
      %v3090 = vadd.f32 0.0, %v3089
      %v3091 = vpop.f32.mrb[0].mxu0
      %v3092 = vadd.f32 0.0, %v3091
      %3093 = vmatprep.mubr.bf16.mxu0 0
      %3094 = vmatmul.mubr.bf16.gmra.mrb[0].mxu0 %v2812
      %v3095 = vpop.f32.mrb[0].mxu0
      %v3096 = vadd.f32 0.0, %v3095
      %v3097 = vpop.f32.mrb[0].mxu0
      %v3098 = vadd.f32 0.0, %v3097
      %v3099 = vpop.f32.mrb[0].mxu0
      %v3100 = vadd.f32 0.0, %v3099
      %v3101 = vpop.f32.mrb[0].mxu0
      %v3102 = vadd.f32 0.0, %v3101
      %3103 = vmatprep.mubr.bf16.mxu0 0
      %3104 = vmatmul.mubr.bf16.gmra.mrb[0].mxu0 %v2815
      %v3105 = vpop.f32.mrb[0].mxu0
      %v3106 = vadd.f32 0.0, %v3105
      %v3107 = vpop.f32.mrb[0].mxu0
      %v3108 = vadd.f32 0.0, %v3107
      %v3109 = vpop.f32.mrb[0].mxu0
      %v3110 = vadd.f32 0.0, %v3109
      %v3111 = vpop.f32.mrb[0].mxu0
      %v3112 = vadd.f32 0.0, %v3111
      %3113 = vmatprep.mubr.bf16.mxu0 0
      %3114 = vmatmul.mubr.bf16.gmra.mrb[0].mxu0 %v2818
      %v3115 = vpop.f32.mrb[0].mxu0
      %v3116 = vadd.f32 0.0, %v3115
      %v3117 = vpop.f32.mrb[0].mxu0
      %v3118 = vadd.f32 0.0, %v3117
      %v3119 = vpop.f32.mrb[0].mxu0
      %v3120 = vadd.f32 0.0, %v3119
      %v3121 = vpop.f32.mrb[0].mxu0
      %v3122 = vadd.f32 0.0, %v3121
      %3123 = vmatprep.mubr.bf16.mxu0 0
      %3124 = vmatmul.mubr.bf16.gmra.mrb[0].mxu0 %v2821
      %v3125 = vpop.f32.mrb[0].mxu0
      %v3126 = vadd.f32 0.0, %v3125
      %v3127 = vpop.f32.mrb[0].mxu0
      %v3128 = vadd.f32 0.0, %v3127
      %v3129 = vpop.f32.mrb[0].mxu0
      %v3130 = vadd.f32 0.0, %v3129
      %v3131 = vpop.f32.mrb[0].mxu0
      %v3132 = vadd.f32 0.0, %v3131
      %3133 = vmatprep.mubr.bf16.mxu0 0
      %3134 = vmatmul.mubr.bf16.gmra.mrb[0].mxu0 %v2824
      %v3135 = vpop.f32.mrb[0].mxu0
      %v3136 = vadd.f32 0.0, %v3135
      %v3137 = vpop.f32.mrb[0].mxu0
      %v3138 = vadd.f32 0.0, %v3137
      %v3139 = vpop.f32.mrb[0].mxu0
      %v3140 = vadd.f32 0.0, %v3139
      %v3141 = vpop.f32.mrb[0].mxu0
      %v3142 = vadd.f32 0.0, %v3141
      %3143 = vmatprep.mubr.bf16.mxu0 0
      %3144 = vmatmul.mubr.bf16.gmra.mrb[0].mxu0 %v2827
      %v3145 = vpop.f32.mrb[0].mxu0
      %v3146 = vadd.f32 0.0, %v3145
      %v3147 = vpop.f32.mrb[0].mxu0
      %v3148 = vadd.f32 0.0, %v3147
      %v3149 = vpop.f32.mrb[0].mxu0
      %v3150 = vadd.f32 0.0, %v3149
      %v3151 = vpop.f32.mrb[0].mxu0
      %v3152 = vadd.f32 0.0, %v3151
      %3153 = vmatprep.mubr.bf16.mxu0 0
      %3154 = vmatmul.mubr.bf16.gmra.mrb[0].mxu0 %v2830
      %v3155 = vpop.f32.mrb[0].mxu0
      %v3156 = vadd.f32 0.0, %v3155
      %v3157 = vpop.f32.mrb[0].mxu0
      %v3158 = vadd.f32 0.0, %v3157
      %v3159 = vpop.f32.mrb[0].mxu0
      %v3160 = vadd.f32 0.0, %v3159
      %v3161 = vpop.f32.mrb[0].mxu0
      %v3162 = vadd.f32 0.0, %v3161
      %3163 = vmatprep.mubr.bf16.mxu0 0
      %3164 = vmatmul.mubr.bf16.gmra.mrb[0].mxu0 %v2833
      %v3165 = vpop.f32.mrb[0].mxu0
      %v3166 = vadd.f32 0.0, %v3165
      %v3167 = vpop.f32.mrb[0].mxu0
      %v3168 = vadd.f32 0.0, %v3167
      %v3169 = vpop.f32.mrb[0].mxu0
      %v3170 = vadd.f32 0.0, %v3169
      %v3171 = vpop.f32.mrb[0].mxu0
      %v3172 = vadd.f32 0.0, %v3171
      %3173 = vmatprep.mubr.bf16.mxu0 0
      %3174 = vmatmul.mubr.bf16.gmra.mrb[0].mxu0 %v2836
      %v3175 = vpop.f32.mrb[0].mxu0
      %v3176 = vadd.f32 0.0, %v3175
      %v3177 = vpop.f32.mrb[0].mxu0
      %v3178 = vadd.f32 0.0, %v3177
      %v3179 = vpop.f32.mrb[0].mxu0
      %v3180 = vadd.f32 0.0, %v3179
      %v3181 = vpop.f32.mrb[0].mxu0
      %v3182 = vadd.f32 0.0, %v3181
      %3183 = vmatprep.mubr.bf16.mxu0 0
      %3184 = vmatmul.mubr.bf16.gmra.mrb[0].mxu0 %v2839
      %v3185 = vpop.f32.mrb[0].mxu0
      %v3186 = vadd.f32 0.0, %v3185
      %v3187 = vpop.f32.mrb[0].mxu0
      %v3188 = vadd.f32 0.0, %v3187
      %v3189 = vpop.f32.mrb[0].mxu0
      %v3190 = vadd.f32 0.0, %v3189
      %v3191 = vpop.f32.mrb[0].mxu0
      %v3192 = vadd.f32 0.0, %v3191
      %3193 = vdwg.mxu0
      %v3194 = vld [vmem:[%s6] sm:$0xff]
      %v3195 = vld [vmem:[%s6 + $0x8] sm:$0xff]
      %v3196 = vld [vmem:[%s6 + $0x10] sm:$0xff]
      %v3197 = vld [vmem:[%s6 + $0x18] sm:$0xff]
      %v3198 = vld [vmem:[%s6 + $0x20] sm:$0xff]
      %v3199 = vld [vmem:[%s6 + $0x28] sm:$0xff]
      %v3200 = vld [vmem:[%s6 + $0x30] sm:$0xff]
      %v3201 = vld [vmem:[%s6 + $0x38] sm:$0xff]
      %v3202 = vld [vmem:[%s6 + $0x40] sm:$0xff]
      %v3203 = vld [vmem:[%s6 + $0x48] sm:$0xff]
      %v3204 = vld [vmem:[%s6 + $0x50] sm:$0xff]
      %v3205 = vld [vmem:[%s6 + $0x58] sm:$0xff]
      %v3206 = vld [vmem:[%s6 + $0x60] sm:$0xff]
      %v3207 = vld [vmem:[%s6 + $0x68] sm:$0xff]
      %v3208 = vld [vmem:[%s6 + $0x70] sm:$0xff]
      %v3209 = vld [vmem:[%s6 + $0x78] sm:$0xff]
      %v3210 = vld [vmem:[%s7] sm:$0x3]
      %v3212 = vlaneseq
      %v3213 = vshrl.u32 %v3212, 7
      %v3214 = vsub.s32 0, %v3213
      %v3215 = vrot.slane %v3210, %v3214
      %v3216 = vlaneseq
      %v3217 = vshrl.u32 %v3216, 7
      %v3218 = vsub.s32 1, %v3217
      %v3219 = vrot.slane %v3210, %v3218
      %v3238 = vunpack.c.l.b16 %v3194
      %v3239 = vunpack.c.h.b16 %v3194
      %v3240 = vunpack.c.l.b16 %v3195
      %v3241 = vunpack.c.h.b16 %v3195
      %v3242 = vunpack.c.l.b16 %v3196
      %v3243 = vunpack.c.h.b16 %v3196
      %v3244 = vunpack.c.l.b16 %v3197
      %v3245 = vunpack.c.h.b16 %v3197
      %v3246 = vunpack.c.l.b16 %v3198
      %v3247 = vunpack.c.h.b16 %v3198
      %v3248 = vunpack.c.l.b16 %v3199
      %v3249 = vunpack.c.h.b16 %v3199
      %v3250 = vunpack.c.l.b16 %v3200
      %v3251 = vunpack.c.h.b16 %v3200
      %v3252 = vunpack.c.l.b16 %v3201
      %v3253 = vunpack.c.h.b16 %v3201
      %v3254 = vunpack.c.l.b16 %v3202
      %v3255 = vunpack.c.h.b16 %v3202
      %v3256 = vunpack.c.l.b16 %v3203
      %v3257 = vunpack.c.h.b16 %v3203
      %v3258 = vunpack.c.l.b16 %v3204
      %v3259 = vunpack.c.h.b16 %v3204
      %v3260 = vunpack.c.l.b16 %v3205
      %v3261 = vunpack.c.h.b16 %v3205
      %v3262 = vunpack.c.l.b16 %v3206
      %v3263 = vunpack.c.h.b16 %v3206
      %v3264 = vunpack.c.l.b16 %v3207
      %v3265 = vunpack.c.h.b16 %v3207
      %v3266 = vunpack.c.l.b16 %v3208
      %v3267 = vunpack.c.h.b16 %v3208
      %v3268 = vunpack.c.l.b16 %v3209
      %v3269 = vunpack.c.h.b16 %v3209
      %v3270 = vpack.c.b16 %v3240, %v3238
      %v3271 = vpack.c.b16 %v3241, %v3239
      %v3272 = vpack.c.b16 %v3244, %v3242
      %v3273 = vpack.c.b16 %v3245, %v3243
      %v3274 = vpack.c.b16 %v3248, %v3246
      %v3275 = vpack.c.b16 %v3249, %v3247
      %v3276 = vpack.c.b16 %v3252, %v3250
      %v3277 = vpack.c.b16 %v3253, %v3251
      %v3278 = vpack.c.b16 %v3256, %v3254
      %v3279 = vpack.c.b16 %v3257, %v3255
      %v3280 = vpack.c.b16 %v3260, %v3258
      %v3281 = vpack.c.b16 %v3261, %v3259
      %v3282 = vpack.c.b16 %v3264, %v3262
      %v3283 = vpack.c.b16 %v3265, %v3263
      %v3284 = vpack.c.b16 %v3268, %v3266
      %v3285 = vpack.c.b16 %v3269, %v3267
      %3302 = vmatprep.subr.bf16.mxu0 %v3271
      %3303 = vmatpush1.bf16.msra.mxu0 %v3270
      %3304 = vmatprep.subr.bf16.mxu0 %v3273
      %3305 = vmatpush1.bf16.msra.mxu0 %v3272
      %3306 = vmatprep.subr.bf16.mxu0 %v3275
      %3307 = vmatpush1.bf16.msra.mxu0 %v3274
      %3308 = vmatprep.subr.bf16.mxu0 %v3277
      %3309 = vmatpush1.bf16.msra.mxu0 %v3276
      %3310 = vmatprep.subr.bf16.mxu0 %v3279
      %3311 = vmatpush1.bf16.msra.mxu0 %v3278
      %3312 = vmatprep.subr.bf16.mxu0 %v3281
      %3313 = vmatpush1.bf16.msra.mxu0 %v3280
      %3314 = vmatprep.subr.bf16.mxu0 %v3283
      %3315 = vmatpush1.bf16.msra.mxu0 %v3282
      %3316 = vmatprep.subr.bf16.mxu0 %v3285
      %3317 = vmatpush1.bf16.msra.mxu0 %v3284
      %3318 = vmatprep.subr.bf16.mxu0 0
      %3319 = vmatpush1.bf16.msra.mxu0 0
      %3320 = vmatprep.subr.bf16.mxu0 0
      %3321 = vmatpush1.bf16.msra.mxu0 0
      %3322 = vmatprep.subr.bf16.mxu0 0
      %3323 = vmatpush1.bf16.msra.mxu0 0
      %3324 = vmatprep.subr.bf16.mxu0 0
      %3325 = vmatpush1.bf16.msra.mxu0 0
      %3326 = vmatprep.subr.bf16.mxu0 0
      %3327 = vmatpush1.bf16.msra.mxu0 0
      %3328 = vmatprep.subr.bf16.mxu0 0
      %3329 = vmatpush1.bf16.msra.mxu0 0
      %3330 = vmatprep.subr.bf16.mxu0 0
      %3331 = vmatpush1.bf16.msra.mxu0 0
      %3332 = vmatprep.subr.bf16.mxu0 0
      %3333 = vmatpush1.bf16.msra.mxu0 0
      %3334 = vmatprep.mubr.bf16.mxu0 0
      %3335 = vmatmul.mubr.bf16.gmra.mrb[0].mxu0 %v797
      %v3336 = vpop.f32.mrb[0].mxu0
      %v3337 = vadd.f32 %v3215, %v3336
      %v3338 = vpop.f32.mrb[0].mxu0
      %v3339 = vadd.f32 %v3219, %v3338
      %v3340 = vpop.f32.mrb[0].mxu0
      %v3341 = vadd.f32 %v3215, %v3340
      %v3342 = vpop.f32.mrb[0].mxu0
      %v3343 = vadd.f32 %v3219, %v3342
      %3344 = vmatprep.mubr.bf16.mxu0 0
      %3345 = vmatmul.mubr.bf16.gmra.mrb[0].mxu0 %v798
      %v3346 = vpop.f32.mrb[0].mxu0
      %v3347 = vadd.f32 %v3215, %v3346
      %v3348 = vpop.f32.mrb[0].mxu0
      %v3349 = vadd.f32 %v3219, %v3348
      %v3350 = vpop.f32.mrb[0].mxu0
      %v3351 = vadd.f32 %v3215, %v3350
      %v3352 = vpop.f32.mrb[0].mxu0
      %v3353 = vadd.f32 %v3219, %v3352
      %3354 = vmatprep.mubr.bf16.mxu0 0
      %3355 = vmatmul.mubr.bf16.gmra.mrb[0].mxu0 %v799
      %v3356 = vpop.f32.mrb[0].mxu0
      %v3357 = vadd.f32 %v3215, %v3356
      %v3358 = vpop.f32.mrb[0].mxu0
      %v3359 = vadd.f32 %v3219, %v3358
      %v3360 = vpop.f32.mrb[0].mxu0
      %v3361 = vadd.f32 %v3215, %v3360
      %v3362 = vpop.f32.mrb[0].mxu0
      %v3363 = vadd.f32 %v3219, %v3362
      %3364 = vmatprep.mubr.bf16.mxu0 0
      %3365 = vmatmul.mubr.bf16.gmra.mrb[0].mxu0 %v800
      %v3366 = vpop.f32.mrb[0].mxu0
      %v3367 = vadd.f32 %v3215, %v3366
      %v3368 = vpop.f32.mrb[0].mxu0
      %v3369 = vadd.f32 %v3219, %v3368
      %v3370 = vpop.f32.mrb[0].mxu0
      %v3371 = vadd.f32 %v3215, %v3370
      %v3372 = vpop.f32.mrb[0].mxu0
      %v3373 = vadd.f32 %v3219, %v3372
      %3374 = vmatprep.mubr.bf16.mxu0 0
      %3375 = vmatmul.mubr.bf16.gmra.mrb[0].mxu0 %v801
      %v3376 = vpop.f32.mrb[0].mxu0
      %v3377 = vadd.f32 %v3215, %v3376
      %v3378 = vpop.f32.mrb[0].mxu0
      %v3379 = vadd.f32 %v3219, %v3378
      %v3380 = vpop.f32.mrb[0].mxu0
      %v3381 = vadd.f32 %v3215, %v3380
      %v3382 = vpop.f32.mrb[0].mxu0
      %v3383 = vadd.f32 %v3219, %v3382
      %3384 = vmatprep.mubr.bf16.mxu0 0
      %3385 = vmatmul.mubr.bf16.gmra.mrb[0].mxu0 %v802
      %v3386 = vpop.f32.mrb[0].mxu0
      %v3387 = vadd.f32 %v3215, %v3386
      %v3388 = vpop.f32.mrb[0].mxu0
      %v3389 = vadd.f32 %v3219, %v3388
      %v3390 = vpop.f32.mrb[0].mxu0
      %v3391 = vadd.f32 %v3215, %v3390
      %v3392 = vpop.f32.mrb[0].mxu0
      %v3393 = vadd.f32 %v3219, %v3392
      %3394 = vmatprep.mubr.bf16.mxu0 0
      %3395 = vmatmul.mubr.bf16.gmra.mrb[0].mxu0 %v803
      %v3396 = vpop.f32.mrb[0].mxu0
      %v3397 = vadd.f32 %v3215, %v3396
      %v3398 = vpop.f32.mrb[0].mxu0
      %v3399 = vadd.f32 %v3219, %v3398
      %v3400 = vpop.f32.mrb[0].mxu0
      %v3401 = vadd.f32 %v3215, %v3400
      %v3402 = vpop.f32.mrb[0].mxu0
      %v3403 = vadd.f32 %v3219, %v3402
      %3404 = vmatprep.mubr.bf16.mxu0 0
      %3405 = vmatmul.mubr.bf16.gmra.mrb[0].mxu0 %v804
      %v3406 = vpop.f32.mrb[0].mxu0
      %v3407 = vadd.f32 %v3215, %v3406
      %v3408 = vpop.f32.mrb[0].mxu0
      %v3409 = vadd.f32 %v3219, %v3408
      %v3410 = vpop.f32.mrb[0].mxu0
      %v3411 = vadd.f32 %v3215, %v3410
      %v3412 = vpop.f32.mrb[0].mxu0
      %v3413 = vadd.f32 %v3219, %v3412
      %3414 = vmatprep.mubr.bf16.mxu0 0
      %3415 = vmatmul.mubr.bf16.gmra.mrb[0].mxu0 %v805
      %v3416 = vpop.f32.mrb[0].mxu0
      %v3417 = vadd.f32 %v3215, %v3416
      %v3418 = vpop.f32.mrb[0].mxu0
      %v3419 = vadd.f32 %v3219, %v3418
      %v3420 = vpop.f32.mrb[0].mxu0
      %v3421 = vadd.f32 %v3215, %v3420
      %v3422 = vpop.f32.mrb[0].mxu0
      %v3423 = vadd.f32 %v3219, %v3422
      %3424 = vmatprep.mubr.bf16.mxu0 0
      %3425 = vmatmul.mubr.bf16.gmra.mrb[0].mxu0 %v806
      %v3426 = vpop.f32.mrb[0].mxu0
      %v3427 = vadd.f32 %v3215, %v3426
      %v3428 = vpop.f32.mrb[0].mxu0
      %v3429 = vadd.f32 %v3219, %v3428
      %v3430 = vpop.f32.mrb[0].mxu0
      %v3431 = vadd.f32 %v3215, %v3430
      %v3432 = vpop.f32.mrb[0].mxu0
      %v3433 = vadd.f32 %v3219, %v3432
      %3434 = vmatprep.mubr.bf16.mxu0 0
      %3435 = vmatmul.mubr.bf16.gmra.mrb[0].mxu0 %v807
      %v3436 = vpop.f32.mrb[0].mxu0
      %v3437 = vadd.f32 %v3215, %v3436
      %v3438 = vpop.f32.mrb[0].mxu0
      %v3439 = vadd.f32 %v3219, %v3438
      %v3440 = vpop.f32.mrb[0].mxu0
      %v3441 = vadd.f32 %v3215, %v3440
      %v3442 = vpop.f32.mrb[0].mxu0
      %v3443 = vadd.f32 %v3219, %v3442
      %3444 = vmatprep.mubr.bf16.mxu0 0
      %3445 = vmatmul.mubr.bf16.gmra.mrb[0].mxu0 %v808
      %v3446 = vpop.f32.mrb[0].mxu0
      %v3447 = vadd.f32 %v3215, %v3446
      %v3448 = vpop.f32.mrb[0].mxu0
      %v3449 = vadd.f32 %v3219, %v3448
      %v3450 = vpop.f32.mrb[0].mxu0
      %v3451 = vadd.f32 %v3215, %v3450
      %v3452 = vpop.f32.mrb[0].mxu0
      %v3453 = vadd.f32 %v3219, %v3452
      %3454 = vmatprep.mubr.bf16.mxu0 0
      %3455 = vmatmul.mubr.bf16.gmra.mrb[0].mxu0 %v809
      %v3456 = vpop.f32.mrb[0].mxu0
      %v3457 = vadd.f32 %v3215, %v3456
      %v3458 = vpop.f32.mrb[0].mxu0
      %v3459 = vadd.f32 %v3219, %v3458
      %v3460 = vpop.f32.mrb[0].mxu0
      %v3461 = vadd.f32 %v3215, %v3460
      %v3462 = vpop.f32.mrb[0].mxu0
      %v3463 = vadd.f32 %v3219, %v3462
      %3464 = vmatprep.mubr.bf16.mxu0 0
      %3465 = vmatmul.mubr.bf16.gmra.mrb[0].mxu0 %v810
      %v3466 = vpop.f32.mrb[0].mxu0
      %v3467 = vadd.f32 %v3215, %v3466
      %v3468 = vpop.f32.mrb[0].mxu0
      %v3469 = vadd.f32 %v3219, %v3468
      %v3470 = vpop.f32.mrb[0].mxu0
      %v3471 = vadd.f32 %v3215, %v3470
      %v3472 = vpop.f32.mrb[0].mxu0
      %v3473 = vadd.f32 %v3219, %v3472
      %3474 = vmatprep.mubr.bf16.mxu0 0
      %3475 = vmatmul.mubr.bf16.gmra.mrb[0].mxu0 %v811
      %v3476 = vpop.f32.mrb[0].mxu0
      %v3477 = vadd.f32 %v3215, %v3476
      %v3478 = vpop.f32.mrb[0].mxu0
      %v3479 = vadd.f32 %v3219, %v3478
      %v3480 = vpop.f32.mrb[0].mxu0
      %v3481 = vadd.f32 %v3215, %v3480
      %v3482 = vpop.f32.mrb[0].mxu0
      %v3483 = vadd.f32 %v3219, %v3482
      %3484 = vmatprep.mubr.bf16.mxu0 0
      %3485 = vmatmul.mubr.bf16.gmra.mrb[0].mxu0 %v812
      %v3486 = vpop.f32.mrb[0].mxu0
      %v3487 = vadd.f32 %v3215, %v3486
      %v3488 = vpop.f32.mrb[0].mxu0
      %v3489 = vadd.f32 %v3219, %v3488
      %v3490 = vpop.f32.mrb[0].mxu0
      %v3491 = vadd.f32 %v3215, %v3490
      %v3492 = vpop.f32.mrb[0].mxu0
      %v3493 = vadd.f32 %v3219, %v3492
      %3494 = vmatprep.mubr.bf16.mxu0 0
      %3495 = vmatmul.mubr.bf16.gmra.mrb[0].mxu0 %v813
      %v3496 = vpop.f32.mrb[0].mxu0
      %v3497 = vadd.f32 %v3215, %v3496
      %v3498 = vpop.f32.mrb[0].mxu0
      %v3499 = vadd.f32 %v3219, %v3498
      %v3500 = vpop.f32.mrb[0].mxu0
      %v3501 = vadd.f32 %v3215, %v3500
      %v3502 = vpop.f32.mrb[0].mxu0
      %v3503 = vadd.f32 %v3219, %v3502
      %3504 = vmatprep.mubr.bf16.mxu0 0
      %3505 = vmatmul.mubr.bf16.gmra.mrb[0].mxu0 %v814
      %v3506 = vpop.f32.mrb[0].mxu0
      %v3507 = vadd.f32 %v3215, %v3506
      %v3508 = vpop.f32.mrb[0].mxu0
      %v3509 = vadd.f32 %v3219, %v3508
      %v3510 = vpop.f32.mrb[0].mxu0
      %v3511 = vadd.f32 %v3215, %v3510
      %v3512 = vpop.f32.mrb[0].mxu0
      %v3513 = vadd.f32 %v3219, %v3512
      %3514 = vmatprep.mubr.bf16.mxu0 0
      %3515 = vmatmul.mubr.bf16.gmra.mrb[0].mxu0 %v815
      %v3516 = vpop.f32.mrb[0].mxu0
      %v3517 = vadd.f32 %v3215, %v3516
      %v3518 = vpop.f32.mrb[0].mxu0
      %v3519 = vadd.f32 %v3219, %v3518
      %v3520 = vpop.f32.mrb[0].mxu0
      %v3521 = vadd.f32 %v3215, %v3520
      %v3522 = vpop.f32.mrb[0].mxu0
      %v3523 = vadd.f32 %v3219, %v3522
      %3524 = vmatprep.mubr.bf16.mxu0 0
      %3525 = vmatmul.mubr.bf16.gmra.mrb[0].mxu0 %v816
      %v3526 = vpop.f32.mrb[0].mxu0
      %v3527 = vadd.f32 %v3215, %v3526
      %v3528 = vpop.f32.mrb[0].mxu0
      %v3529 = vadd.f32 %v3219, %v3528
      %v3530 = vpop.f32.mrb[0].mxu0
      %v3531 = vadd.f32 %v3215, %v3530
      %v3532 = vpop.f32.mrb[0].mxu0
      %v3533 = vadd.f32 %v3219, %v3532
      %3534 = vmatprep.mubr.bf16.mxu0 0
      %3535 = vmatmul.mubr.bf16.gmra.mrb[0].mxu0 %v817
      %v3536 = vpop.f32.mrb[0].mxu0
      %v3537 = vadd.f32 %v3215, %v3536
      %v3538 = vpop.f32.mrb[0].mxu0
      %v3539 = vadd.f32 %v3219, %v3538
      %v3540 = vpop.f32.mrb[0].mxu0
      %v3541 = vadd.f32 %v3215, %v3540
      %v3542 = vpop.f32.mrb[0].mxu0
      %v3543 = vadd.f32 %v3219, %v3542
      %3544 = vmatprep.mubr.bf16.mxu0 0
      %3545 = vmatmul.mubr.bf16.gmra.mrb[0].mxu0 %v818
      %v3546 = vpop.f32.mrb[0].mxu0
      %v3547 = vadd.f32 %v3215, %v3546
      %v3548 = vpop.f32.mrb[0].mxu0
      %v3549 = vadd.f32 %v3219, %v3548
      %v3550 = vpop.f32.mrb[0].mxu0
      %v3551 = vadd.f32 %v3215, %v3550
      %v3552 = vpop.f32.mrb[0].mxu0
      %v3553 = vadd.f32 %v3219, %v3552
      %3554 = vmatprep.mubr.bf16.mxu0 0
      %3555 = vmatmul.mubr.bf16.gmra.mrb[0].mxu0 %v819
      %v3556 = vpop.f32.mrb[0].mxu0
      %v3557 = vadd.f32 %v3215, %v3556
      %v3558 = vpop.f32.mrb[0].mxu0
      %v3559 = vadd.f32 %v3219, %v3558
      %v3560 = vpop.f32.mrb[0].mxu0
      %v3561 = vadd.f32 %v3215, %v3560
      %v3562 = vpop.f32.mrb[0].mxu0
      %v3563 = vadd.f32 %v3219, %v3562
      %3564 = vmatprep.mubr.bf16.mxu0 0
      %3565 = vmatmul.mubr.bf16.gmra.mrb[0].mxu0 %v820
      %v3566 = vpop.f32.mrb[0].mxu0
      %v3567 = vadd.f32 %v3215, %v3566
      %v3568 = vpop.f32.mrb[0].mxu0
      %v3569 = vadd.f32 %v3219, %v3568
      %v3570 = vpop.f32.mrb[0].mxu0
      %v3571 = vadd.f32 %v3215, %v3570
      %v3572 = vpop.f32.mrb[0].mxu0
      %v3573 = vadd.f32 %v3219, %v3572
      %3574 = vmatprep.mubr.bf16.mxu0 0
      %3575 = vmatmul.mubr.bf16.gmra.mrb[0].mxu0 %v821
      %v3576 = vpop.f32.mrb[0].mxu0
      %v3577 = vadd.f32 %v3215, %v3576
      %v3578 = vpop.f32.mrb[0].mxu0
      %v3579 = vadd.f32 %v3219, %v3578
      %v3580 = vpop.f32.mrb[0].mxu0
      %v3581 = vadd.f32 %v3215, %v3580
      %v3582 = vpop.f32.mrb[0].mxu0
      %v3583 = vadd.f32 %v3219, %v3582
      %3584 = vmatprep.mubr.bf16.mxu0 0
      %3585 = vmatmul.mubr.bf16.gmra.mrb[0].mxu0 %v822
      %v3586 = vpop.f32.mrb[0].mxu0
      %v3587 = vadd.f32 %v3215, %v3586
      %v3588 = vpop.f32.mrb[0].mxu0
      %v3589 = vadd.f32 %v3219, %v3588
      %v3590 = vpop.f32.mrb[0].mxu0
      %v3591 = vadd.f32 %v3215, %v3590
      %v3592 = vpop.f32.mrb[0].mxu0
      %v3593 = vadd.f32 %v3219, %v3592
      %3594 = vmatprep.mubr.bf16.mxu0 0
      %3595 = vmatmul.mubr.bf16.gmra.mrb[0].mxu0 %v823
      %v3596 = vpop.f32.mrb[0].mxu0
      %v3597 = vadd.f32 %v3215, %v3596
      %v3598 = vpop.f32.mrb[0].mxu0
      %v3599 = vadd.f32 %v3219, %v3598
      %v3600 = vpop.f32.mrb[0].mxu0
      %v3601 = vadd.f32 %v3215, %v3600
      %v3602 = vpop.f32.mrb[0].mxu0
      %v3603 = vadd.f32 %v3219, %v3602
      %3604 = vmatprep.mubr.bf16.mxu0 0
      %3605 = vmatmul.mubr.bf16.gmra.mrb[0].mxu0 %v824
      %v3606 = vpop.f32.mrb[0].mxu0
      %v3607 = vadd.f32 %v3215, %v3606
      %v3608 = vpop.f32.mrb[0].mxu0
      %v3609 = vadd.f32 %v3219, %v3608
      %v3610 = vpop.f32.mrb[0].mxu0
      %v3611 = vadd.f32 %v3215, %v3610
      %v3612 = vpop.f32.mrb[0].mxu0
      %v3613 = vadd.f32 %v3219, %v3612
      %3614 = vmatprep.mubr.bf16.mxu0 0
      %3615 = vmatmul.mubr.bf16.gmra.mrb[0].mxu0 %v825
      %v3616 = vpop.f32.mrb[0].mxu0
      %v3617 = vadd.f32 %v3215, %v3616
      %v3618 = vpop.f32.mrb[0].mxu0
      %v3619 = vadd.f32 %v3219, %v3618
      %v3620 = vpop.f32.mrb[0].mxu0
      %v3621 = vadd.f32 %v3215, %v3620
      %v3622 = vpop.f32.mrb[0].mxu0
      %v3623 = vadd.f32 %v3219, %v3622
      %3624 = vmatprep.mubr.bf16.mxu0 0
      %3625 = vmatmul.mubr.bf16.gmra.mrb[0].mxu0 %v826
      %v3626 = vpop.f32.mrb[0].mxu0
      %v3627 = vadd.f32 %v3215, %v3626
      %v3628 = vpop.f32.mrb[0].mxu0
      %v3629 = vadd.f32 %v3219, %v3628
      %v3630 = vpop.f32.mrb[0].mxu0
      %v3631 = vadd.f32 %v3215, %v3630
      %v3632 = vpop.f32.mrb[0].mxu0
      %v3633 = vadd.f32 %v3219, %v3632
      %3634 = vmatprep.mubr.bf16.mxu0 0
      %3635 = vmatmul.mubr.bf16.gmra.mrb[0].mxu0 %v827
      %v3636 = vpop.f32.mrb[0].mxu0
      %v3637 = vadd.f32 %v3215, %v3636
      %v3638 = vpop.f32.mrb[0].mxu0
      %v3639 = vadd.f32 %v3219, %v3638
      %v3640 = vpop.f32.mrb[0].mxu0
      %v3641 = vadd.f32 %v3215, %v3640
      %v3642 = vpop.f32.mrb[0].mxu0
      %v3643 = vadd.f32 %v3219, %v3642
      %3644 = vmatprep.mubr.bf16.mxu0 0
      %3645 = vmatmul.mubr.bf16.gmra.mrb[0].mxu0 %v828
      %v3646 = vpop.f32.mrb[0].mxu0
      %v3647 = vadd.f32 %v3215, %v3646
      %v3648 = vpop.f32.mrb[0].mxu0
      %v3649 = vadd.f32 %v3219, %v3648
      %v3650 = vpop.f32.mrb[0].mxu0
      %v3651 = vadd.f32 %v3215, %v3650
      %v3652 = vpop.f32.mrb[0].mxu0
      %v3653 = vadd.f32 %v3219, %v3652
      %3654 = vdwg.mxu0
      %v3655 = vmul.f32 %v2876, %v3337
      %v3656 = vmul.f32 %v2878, %v3339
      %v3657 = vmul.f32 %v2880, %v3341
      %v3658 = vmul.f32 %v2882, %v3343
      %v3659 = vmul.f32 %v2886, %v3347
      %v3660 = vmul.f32 %v2888, %v3349
      %v3661 = vmul.f32 %v2890, %v3351
      %v3662 = vmul.f32 %v2892, %v3353
      %v3663 = vmul.f32 %v2896, %v3357
      %v3664 = vmul.f32 %v2898, %v3359
      %v3665 = vmul.f32 %v2900, %v3361
      %v3666 = vmul.f32 %v2902, %v3363
      %v3667 = vmul.f32 %v2906, %v3367
      %v3668 = vmul.f32 %v2908, %v3369
      %v3669 = vmul.f32 %v2910, %v3371
      %v3670 = vmul.f32 %v2912, %v3373
      %v3671 = vmul.f32 %v2916, %v3377
      %v3672 = vmul.f32 %v2918, %v3379
      %v3673 = vmul.f32 %v2920, %v3381
      %v3674 = vmul.f32 %v2922, %v3383
      %v3675 = vmul.f32 %v2926, %v3387
      %v3676 = vmul.f32 %v2928, %v3389
      %v3677 = vmul.f32 %v2930, %v3391
      %v3678 = vmul.f32 %v2932, %v3393
      %v3679 = vmul.f32 %v2936, %v3397
      %v3680 = vmul.f32 %v2938, %v3399
      %v3681 = vmul.f32 %v2940, %v3401
      %v3682 = vmul.f32 %v2942, %v3403
      %v3683 = vmul.f32 %v2946, %v3407
      %v3684 = vmul.f32 %v2948, %v3409
      %v3685 = vmul.f32 %v2950, %v3411
      %v3686 = vmul.f32 %v2952, %v3413
      %v3687 = vmul.f32 %v2956, %v3417
      %v3688 = vmul.f32 %v2958, %v3419
      %v3689 = vmul.f32 %v2960, %v3421
      %v3690 = vmul.f32 %v2962, %v3423
      %v3691 = vmul.f32 %v2966, %v3427
      %v3692 = vmul.f32 %v2968, %v3429
      %v3693 = vmul.f32 %v2970, %v3431
      %v3694 = vmul.f32 %v2972, %v3433
      %v3695 = vmul.f32 %v2976, %v3437
      %v3696 = vmul.f32 %v2978, %v3439
      %v3697 = vmul.f32 %v2980, %v3441
      %v3698 = vmul.f32 %v2982, %v3443
      %v3699 = vmul.f32 %v2986, %v3447
      %v3700 = vmul.f32 %v2988, %v3449
      %v3701 = vmul.f32 %v2990, %v3451
      %v3702 = vmul.f32 %v2992, %v3453
      %v3703 = vmul.f32 %v2996, %v3457
      %v3704 = vmul.f32 %v2998, %v3459
      %v3705 = vmul.f32 %v3000, %v3461
      %v3706 = vmul.f32 %v3002, %v3463
      %v3707 = vmul.f32 %v3006, %v3467
      %v3708 = vmul.f32 %v3008, %v3469
      %v3709 = vmul.f32 %v3010, %v3471
      %v3710 = vmul.f32 %v3012, %v3473
      %v3711 = vmul.f32 %v3016, %v3477
      %v3712 = vmul.f32 %v3018, %v3479
      %v3713 = vmul.f32 %v3020, %v3481
      %v3714 = vmul.f32 %v3022, %v3483
      %v3715 = vmul.f32 %v3026, %v3487
      %v3716 = vmul.f32 %v3028, %v3489
      %v3717 = vmul.f32 %v3030, %v3491
      %v3718 = vmul.f32 %v3032, %v3493
      %v3719 = vmul.f32 %v3036, %v3497
      %v3720 = vmul.f32 %v3038, %v3499
      %v3721 = vmul.f32 %v3040, %v3501
      %v3722 = vmul.f32 %v3042, %v3503
      %v3723 = vmul.f32 %v3046, %v3507
      %v3724 = vmul.f32 %v3048, %v3509
      %v3725 = vmul.f32 %v3050, %v3511
      %v3726 = vmul.f32 %v3052, %v3513
      %v3727 = vmul.f32 %v3056, %v3517
      %v3728 = vmul.f32 %v3058, %v3519
      %v3729 = vmul.f32 %v3060, %v3521
      %v3730 = vmul.f32 %v3062, %v3523
      %v3731 = vmul.f32 %v3066, %v3527
      %v3732 = vmul.f32 %v3068, %v3529
      %v3733 = vmul.f32 %v3070, %v3531
      %v3734 = vmul.f32 %v3072, %v3533
      %v3735 = vmul.f32 %v3076, %v3537
      %v3736 = vmul.f32 %v3078, %v3539
      %v3737 = vmul.f32 %v3080, %v3541
      %v3738 = vmul.f32 %v3082, %v3543
      %v3739 = vmul.f32 %v3086, %v3547
      %v3740 = vmul.f32 %v3088, %v3549
      %v3741 = vmul.f32 %v3090, %v3551
      %v3742 = vmul.f32 %v3092, %v3553
      %v3743 = vmul.f32 %v3096, %v3557
      %v3744 = vmul.f32 %v3098, %v3559
      %v3745 = vmul.f32 %v3100, %v3561
      %v3746 = vmul.f32 %v3102, %v3563
      %v3747 = vmul.f32 %v3106, %v3567
      %v3748 = vmul.f32 %v3108, %v3569
      %v3749 = vmul.f32 %v3110, %v3571
      %v3750 = vmul.f32 %v3112, %v3573
      %v3751 = vmul.f32 %v3116, %v3577
      %v3752 = vmul.f32 %v3118, %v3579
      %v3753 = vmul.f32 %v3120, %v3581
      %v3754 = vmul.f32 %v3122, %v3583
      %v3755 = vmul.f32 %v3126, %v3587
      %v3756 = vmul.f32 %v3128, %v3589
      %v3757 = vmul.f32 %v3130, %v3591
      %v3758 = vmul.f32 %v3132, %v3593
      %v3759 = vmul.f32 %v3136, %v3597
      %v3760 = vmul.f32 %v3138, %v3599
      %v3761 = vmul.f32 %v3140, %v3601
      %v3762 = vmul.f32 %v3142, %v3603
      %v3763 = vmul.f32 %v3146, %v3607
      %v3764 = vmul.f32 %v3148, %v3609
      %v3765 = vmul.f32 %v3150, %v3611
      %v3766 = vmul.f32 %v3152, %v3613
      %v3767 = vmul.f32 %v3156, %v3617
      %v3768 = vmul.f32 %v3158, %v3619
      %v3769 = vmul.f32 %v3160, %v3621
      %v3770 = vmul.f32 %v3162, %v3623
      %v3771 = vmul.f32 %v3166, %v3627
      %v3772 = vmul.f32 %v3168, %v3629
      %v3773 = vmul.f32 %v3170, %v3631
      %v3774 = vmul.f32 %v3172, %v3633
      %v3775 = vmul.f32 %v3176, %v3637
      %v3776 = vmul.f32 %v3178, %v3639
      %v3777 = vmul.f32 %v3180, %v3641
      %v3778 = vmul.f32 %v3182, %v3643
      %v3779 = vmul.f32 %v3186, %v3647
      %v3780 = vmul.f32 %v3188, %v3649
      %v3781 = vmul.f32 %v3190, %v3651
      %v3782 = vmul.f32 %v3192, %v3653
      %v3783 = vpack.c.bf16 %v3657, %v3655
      %v3784 = vpack.c.bf16 %v3658, %v3656
      %v3785 = vpack.c.bf16 %v3661, %v3659
      %v3786 = vpack.c.bf16 %v3662, %v3660
      %v3787 = vpack.c.bf16 %v3665, %v3663
      %v3788 = vpack.c.bf16 %v3666, %v3664
      %v3789 = vpack.c.bf16 %v3669, %v3667
      %v3790 = vpack.c.bf16 %v3670, %v3668
      %v3791 = vpack.c.bf16 %v3673, %v3671
      %v3792 = vpack.c.bf16 %v3674, %v3672
      %v3793 = vpack.c.bf16 %v3677, %v3675
      %v3794 = vpack.c.bf16 %v3678, %v3676
      %v3795 = vpack.c.bf16 %v3681, %v3679
      %v3796 = vpack.c.bf16 %v3682, %v3680
      %v3797 = vpack.c.bf16 %v3685, %v3683
      %v3798 = vpack.c.bf16 %v3686, %v3684
      %v3799 = vpack.c.bf16 %v3689, %v3687
      %v3800 = vpack.c.bf16 %v3690, %v3688
      %v3801 = vpack.c.bf16 %v3693, %v3691
      %v3802 = vpack.c.bf16 %v3694, %v3692
      %v3803 = vpack.c.bf16 %v3697, %v3695
      %v3804 = vpack.c.bf16 %v3698, %v3696
      %v3805 = vpack.c.bf16 %v3701, %v3699
      %v3806 = vpack.c.bf16 %v3702, %v3700
      %v3807 = vpack.c.bf16 %v3705, %v3703
      %v3808 = vpack.c.bf16 %v3706, %v3704
      %v3809 = vpack.c.bf16 %v3709, %v3707
      %v3810 = vpack.c.bf16 %v3710, %v3708
      %v3811 = vpack.c.bf16 %v3713, %v3711
      %v3812 = vpack.c.bf16 %v3714, %v3712
      %v3813 = vpack.c.bf16 %v3717, %v3715
      %v3814 = vpack.c.bf16 %v3718, %v3716
      %v3815 = vpack.c.bf16 %v3721, %v3719
      %v3816 = vpack.c.bf16 %v3722, %v3720
      %v3817 = vpack.c.bf16 %v3725, %v3723
      %v3818 = vpack.c.bf16 %v3726, %v3724
      %v3819 = vpack.c.bf16 %v3729, %v3727
      %v3820 = vpack.c.bf16 %v3730, %v3728
      %v3821 = vpack.c.bf16 %v3733, %v3731
      %v3822 = vpack.c.bf16 %v3734, %v3732
      %v3823 = vpack.c.bf16 %v3737, %v3735
      %v3824 = vpack.c.bf16 %v3738, %v3736
      %v3825 = vpack.c.bf16 %v3741, %v3739
      %v3826 = vpack.c.bf16 %v3742, %v3740
      %v3827 = vpack.c.bf16 %v3745, %v3743
      %v3828 = vpack.c.bf16 %v3746, %v3744
      %v3829 = vpack.c.bf16 %v3749, %v3747
      %v3830 = vpack.c.bf16 %v3750, %v3748
      %v3831 = vpack.c.bf16 %v3753, %v3751
      %v3832 = vpack.c.bf16 %v3754, %v3752
      %v3833 = vpack.c.bf16 %v3757, %v3755
      %v3834 = vpack.c.bf16 %v3758, %v3756
      %v3835 = vpack.c.bf16 %v3761, %v3759
      %v3836 = vpack.c.bf16 %v3762, %v3760
      %v3837 = vpack.c.bf16 %v3765, %v3763
      %v3838 = vpack.c.bf16 %v3766, %v3764
      %v3839 = vpack.c.bf16 %v3769, %v3767
      %v3840 = vpack.c.bf16 %v3770, %v3768
      %v3841 = vpack.c.bf16 %v3773, %v3771
      %v3842 = vpack.c.bf16 %v3774, %v3772
      %v3843 = vpack.c.bf16 %v3777, %v3775
      %v3844 = vpack.c.bf16 %v3778, %v3776
      %v3845 = vpack.c.bf16 %v3781, %v3779
      %v3846 = vpack.c.bf16 %v3782, %v3780
      %v3847 = vld [vmem:[%s16] sm:$0xf]
      %v3848 = vld [vmem:[%s16 + $0x4] sm:$0xf]
      %v3849 = vld [vmem:[%s16 + $0x8] sm:$0xf]
      %v3850 = vld [vmem:[%s16 + $0xc] sm:$0xf]
      %v3851 = vld [vmem:[%s16 + $0x10] sm:$0xf]
      %v3852 = vld [vmem:[%s16 + $0x14] sm:$0xf]
      %v3853 = vld [vmem:[%s16 + $0x18] sm:$0xf]
      %v3854 = vld [vmem:[%s16 + $0x1c] sm:$0xf]
      %v3855 = vld [vmem:[%s16 + $0x20] sm:$0xf]
      %v3856 = vld [vmem:[%s16 + $0x24] sm:$0xf]
      %v3857 = vld [vmem:[%s16 + $0x28] sm:$0xf]
      %v3858 = vld [vmem:[%s16 + $0x2c] sm:$0xf]
      %v3859 = vld [vmem:[%s16 + $0x30] sm:$0xf]
      %v3860 = vld [vmem:[%s16 + $0x34] sm:$0xf]
      %v3861 = vld [vmem:[%s16 + $0x38] sm:$0xf]
      %v3862 = vld [vmem:[%s16 + $0x3c] sm:$0xf]
      %v3863 = vld [vmem:[%s16 + $0x40] sm:$0xf]
      %v3864 = vld [vmem:[%s16 + $0x44] sm:$0xf]
      %v3865 = vld [vmem:[%s16 + $0x48] sm:$0xf]
      %v3866 = vld [vmem:[%s16 + $0x4c] sm:$0xf]
      %v3867 = vld [vmem:[%s16 + $0x50] sm:$0xf]
      %v3868 = vld [vmem:[%s16 + $0x54] sm:$0xf]
      %v3869 = vld [vmem:[%s16 + $0x58] sm:$0xf]
      %v3870 = vld [vmem:[%s16 + $0x5c] sm:$0xf]
      %v3871 = vld [vmem:[%s16 + $0x60] sm:$0xf]
      %v3872 = vld [vmem:[%s16 + $0x64] sm:$0xf]
      %v3873 = vld [vmem:[%s16 + $0x68] sm:$0xf]
      %v3874 = vld [vmem:[%s16 + $0x6c] sm:$0xf]
      %v3875 = vld [vmem:[%s16 + $0x70] sm:$0xf]
      %v3876 = vld [vmem:[%s16 + $0x74] sm:$0xf]
      %v3877 = vld [vmem:[%s16 + $0x78] sm:$0xf]
      %v3878 = vld [vmem:[%s16 + $0x7c] sm:$0xf]
      %v3879 = vld [vmem:[%s8] sm:$0xf]
      %v3880 = vld [vmem:[%s8 + $0x4] sm:$0xf]
      %v3881 = vld [vmem:[%s8 + $0x8] sm:$0xf]
      %v3882 = vld [vmem:[%s8 + $0xc] sm:$0xf]
      %v3883 = vld [vmem:[%s8 + $0x10] sm:$0xf]
      %v3884 = vld [vmem:[%s8 + $0x14] sm:$0xf]
      %v3885 = vld [vmem:[%s8 + $0x18] sm:$0xf]
      %v3886 = vld [vmem:[%s8 + $0x1c] sm:$0xf]
      %v3887 = vld [vmem:[%s8 + $0x20] sm:$0xf]
      %v3888 = vld [vmem:[%s8 + $0x24] sm:$0xf]
      %v3889 = vld [vmem:[%s8 + $0x28] sm:$0xf]
      %v3890 = vld [vmem:[%s8 + $0x2c] sm:$0xf]
      %v3891 = vld [vmem:[%s8 + $0x30] sm:$0xf]
      %v3892 = vld [vmem:[%s8 + $0x34] sm:$0xf]
      %v3893 = vld [vmem:[%s8 + $0x38] sm:$0xf]
      %v3894 = vld [vmem:[%s8 + $0x3c] sm:$0xf]
      %v3895 = vld [vmem:[%s9] sm:$0x1]
      %v3897 = vlaneseq
      %v3898 = vshrl.u32 %v3897, 7
      %v3899 = vsub.s32 0, %v3898
      %v3900 = vrot.slane %v3895, %v3899
      %v3918 = vunpack.c.l.b16 %v3879
      %v3919 = vunpack.c.l.b16 %v3880
      %v3920 = vunpack.c.l.b16 %v3881
      %v3921 = vunpack.c.l.b16 %v3882
      %v3922 = vunpack.c.l.b16 %v3883
      %v3923 = vunpack.c.l.b16 %v3884
      %v3924 = vunpack.c.l.b16 %v3885
      %v3925 = vunpack.c.l.b16 %v3886
      %v3926 = vunpack.c.l.b16 %v3887
      %v3927 = vunpack.c.l.b16 %v3888
      %v3928 = vunpack.c.l.b16 %v3889
      %v3929 = vunpack.c.l.b16 %v3890
      %v3930 = vunpack.c.l.b16 %v3891
      %v3931 = vunpack.c.l.b16 %v3892
      %v3932 = vunpack.c.l.b16 %v3893
      %v3933 = vunpack.c.l.b16 %v3894
      %v3934 = vpack.c.b16 %v3919, %v3918
      %v3935 = vpack.c.b16 %v3921, %v3920
      %v3936 = vpack.c.b16 %v3923, %v3922
      %v3937 = vpack.c.b16 %v3925, %v3924
      %v3938 = vpack.c.b16 %v3927, %v3926
      %v3939 = vpack.c.b16 %v3929, %v3928
      %v3940 = vpack.c.b16 %v3931, %v3930
      %v3941 = vpack.c.b16 %v3933, %v3932
      %3950 = vmatprep.subr.bf16.mxu0 0
      %3951 = vmatpush1.bf16.msra.mxu0 %v3934
      %3952 = vmatprep.subr.bf16.mxu0 0
      %3953 = vmatpush1.bf16.msra.mxu0 %v3935
      %3954 = vmatprep.subr.bf16.mxu0 0
      %3955 = vmatpush1.bf16.msra.mxu0 %v3936
      %3956 = vmatprep.subr.bf16.mxu0 0
      %3957 = vmatpush1.bf16.msra.mxu0 %v3937
      %3958 = vmatprep.subr.bf16.mxu0 0
      %3959 = vmatpush1.bf16.msra.mxu0 %v3938
      %3960 = vmatprep.subr.bf16.mxu0 0
      %3961 = vmatpush1.bf16.msra.mxu0 %v3939
      %3962 = vmatprep.subr.bf16.mxu0 0
      %3963 = vmatpush1.bf16.msra.mxu0 %v3940
      %3964 = vmatprep.subr.bf16.mxu0 0
      %3965 = vmatpush1.bf16.msra.mxu0 %v3941
      %3966 = vmatprep.subr.bf16.mxu0 0
      %3967 = vmatpush1.bf16.msra.mxu0 0
      %3968 = vmatprep.subr.bf16.mxu0 0
      %3969 = vmatpush1.bf16.msra.mxu0 0
      %3970 = vmatprep.subr.bf16.mxu0 0
      %3971 = vmatpush1.bf16.msra.mxu0 0
      %3972 = vmatprep.subr.bf16.mxu0 0
      %3973 = vmatpush1.bf16.msra.mxu0 0
      %3974 = vmatprep.subr.bf16.mxu0 0
      %3975 = vmatpush1.bf16.msra.mxu0 0
      %3976 = vmatprep.subr.bf16.mxu0 0
      %3977 = vmatpush1.bf16.msra.mxu0 0
      %3978 = vmatprep.subr.bf16.mxu0 0
      %3979 = vmatpush1.bf16.msra.mxu0 0
      %3980 = vmatprep.subr.bf16.mxu0 0
      %3981 = vmatpush1.bf16.msra.mxu0 0
      %3982 = vmatprep.mubr.bf16.mxu0 0
      %3983 = vmatmul.mubr.bf16.gmra.mrb[0].mxu0 %v797
      %v3984 = vpop.f32.mrb[0].mxu0
      %v3985 = vadd.f32 %v3900, %v3984
      %v3986 = vpop.f32.mrb[0].mxu0
      %v3987 = vpop.f32.mrb[0].mxu0
      %v3988 = vadd.f32 %v3900, %v3987
      %v3989 = vpop.f32.mrb[0].mxu0
      %3990 = vmatprep.mubr.bf16.mxu0 0
      %3991 = vmatmul.mubr.bf16.gmra.mrb[0].mxu0 %v798
      %v3992 = vpop.f32.mrb[0].mxu0
      %v3993 = vadd.f32 %v3900, %v3992
      %v3994 = vpop.f32.mrb[0].mxu0
      %v3995 = vpop.f32.mrb[0].mxu0
      %v3996 = vadd.f32 %v3900, %v3995
      %v3997 = vpop.f32.mrb[0].mxu0
      %3998 = vmatprep.mubr.bf16.mxu0 0
      %3999 = vmatmul.mubr.bf16.gmra.mrb[0].mxu0 %v799
      %v4000 = vpop.f32.mrb[0].mxu0
      %v4001 = vadd.f32 %v3900, %v4000
      %v4002 = vpop.f32.mrb[0].mxu0
      %v4003 = vpop.f32.mrb[0].mxu0
      %v4004 = vadd.f32 %v3900, %v4003
      %v4005 = vpop.f32.mrb[0].mxu0
      %4006 = vmatprep.mubr.bf16.mxu0 0
      %4007 = vmatmul.mubr.bf16.gmra.mrb[0].mxu0 %v800
      %v4008 = vpop.f32.mrb[0].mxu0
      %v4009 = vadd.f32 %v3900, %v4008
      %v4010 = vpop.f32.mrb[0].mxu0
      %v4011 = vpop.f32.mrb[0].mxu0
      %v4012 = vadd.f32 %v3900, %v4011
      %v4013 = vpop.f32.mrb[0].mxu0
      %4014 = vmatprep.mubr.bf16.mxu0 0
      %4015 = vmatmul.mubr.bf16.gmra.mrb[0].mxu0 %v801
      %v4016 = vpop.f32.mrb[0].mxu0
      %v4017 = vadd.f32 %v3900, %v4016
      %v4018 = vpop.f32.mrb[0].mxu0
      %v4019 = vpop.f32.mrb[0].mxu0
      %v4020 = vadd.f32 %v3900, %v4019
      %v4021 = vpop.f32.mrb[0].mxu0
      %4022 = vmatprep.mubr.bf16.mxu0 0
      %4023 = vmatmul.mubr.bf16.gmra.mrb[0].mxu0 %v802
      %v4024 = vpop.f32.mrb[0].mxu0
      %v4025 = vadd.f32 %v3900, %v4024
      %v4026 = vpop.f32.mrb[0].mxu0
      %v4027 = vpop.f32.mrb[0].mxu0
      %v4028 = vadd.f32 %v3900, %v4027
      %v4029 = vpop.f32.mrb[0].mxu0
      %4030 = vmatprep.mubr.bf16.mxu0 0
      %4031 = vmatmul.mubr.bf16.gmra.mrb[0].mxu0 %v803
      %v4032 = vpop.f32.mrb[0].mxu0
      %v4033 = vadd.f32 %v3900, %v4032
      %v4034 = vpop.f32.mrb[0].mxu0
      %v4035 = vpop.f32.mrb[0].mxu0
      %v4036 = vadd.f32 %v3900, %v4035
      %v4037 = vpop.f32.mrb[0].mxu0
      %4038 = vmatprep.mubr.bf16.mxu0 0
      %4039 = vmatmul.mubr.bf16.gmra.mrb[0].mxu0 %v804
      %v4040 = vpop.f32.mrb[0].mxu0
      %v4041 = vadd.f32 %v3900, %v4040
      %v4042 = vpop.f32.mrb[0].mxu0
      %v4043 = vpop.f32.mrb[0].mxu0
      %v4044 = vadd.f32 %v3900, %v4043
      %v4045 = vpop.f32.mrb[0].mxu0
      %4046 = vmatprep.mubr.bf16.mxu0 0
      %4047 = vmatmul.mubr.bf16.gmra.mrb[0].mxu0 %v805
      %v4048 = vpop.f32.mrb[0].mxu0
      %v4049 = vadd.f32 %v3900, %v4048
      %v4050 = vpop.f32.mrb[0].mxu0
      %v4051 = vpop.f32.mrb[0].mxu0
      %v4052 = vadd.f32 %v3900, %v4051
      %v4053 = vpop.f32.mrb[0].mxu0
      %4054 = vmatprep.mubr.bf16.mxu0 0
      %4055 = vmatmul.mubr.bf16.gmra.mrb[0].mxu0 %v806
      %v4056 = vpop.f32.mrb[0].mxu0
      %v4057 = vadd.f32 %v3900, %v4056
      %v4058 = vpop.f32.mrb[0].mxu0
      %v4059 = vpop.f32.mrb[0].mxu0
      %v4060 = vadd.f32 %v3900, %v4059
      %v4061 = vpop.f32.mrb[0].mxu0
      %4062 = vmatprep.mubr.bf16.mxu0 0
      %4063 = vmatmul.mubr.bf16.gmra.mrb[0].mxu0 %v807
      %v4064 = vpop.f32.mrb[0].mxu0
      %v4065 = vadd.f32 %v3900, %v4064
      %v4066 = vpop.f32.mrb[0].mxu0
      %v4067 = vpop.f32.mrb[0].mxu0
      %v4068 = vadd.f32 %v3900, %v4067
      %v4069 = vpop.f32.mrb[0].mxu0
      %4070 = vmatprep.mubr.bf16.mxu0 0
      %4071 = vmatmul.mubr.bf16.gmra.mrb[0].mxu0 %v808
      %v4072 = vpop.f32.mrb[0].mxu0
      %v4073 = vadd.f32 %v3900, %v4072
      %v4074 = vpop.f32.mrb[0].mxu0
      %v4075 = vpop.f32.mrb[0].mxu0
      %v4076 = vadd.f32 %v3900, %v4075
      %v4077 = vpop.f32.mrb[0].mxu0
      %4078 = vmatprep.mubr.bf16.mxu0 0
      %4079 = vmatmul.mubr.bf16.gmra.mrb[0].mxu0 %v809
      %v4080 = vpop.f32.mrb[0].mxu0
      %v4081 = vadd.f32 %v3900, %v4080
      %v4082 = vpop.f32.mrb[0].mxu0
      %v4083 = vpop.f32.mrb[0].mxu0
      %v4084 = vadd.f32 %v3900, %v4083
      %v4085 = vpop.f32.mrb[0].mxu0
      %4086 = vmatprep.mubr.bf16.mxu0 0
      %4087 = vmatmul.mubr.bf16.gmra.mrb[0].mxu0 %v810
      %v4088 = vpop.f32.mrb[0].mxu0
      %v4089 = vadd.f32 %v3900, %v4088
      %v4090 = vpop.f32.mrb[0].mxu0
      %v4091 = vpop.f32.mrb[0].mxu0
      %v4092 = vadd.f32 %v3900, %v4091
      %v4093 = vpop.f32.mrb[0].mxu0
      %4094 = vmatprep.mubr.bf16.mxu0 0
      %4095 = vmatmul.mubr.bf16.gmra.mrb[0].mxu0 %v811
      %v4096 = vpop.f32.mrb[0].mxu0
      %v4097 = vadd.f32 %v3900, %v4096
      %v4098 = vpop.f32.mrb[0].mxu0
      %v4099 = vpop.f32.mrb[0].mxu0
      %v4100 = vadd.f32 %v3900, %v4099
      %v4101 = vpop.f32.mrb[0].mxu0
      %4102 = vmatprep.mubr.bf16.mxu0 0
      %4103 = vmatmul.mubr.bf16.gmra.mrb[0].mxu0 %v812
      %v4104 = vpop.f32.mrb[0].mxu0
      %v4105 = vadd.f32 %v3900, %v4104
      %v4106 = vpop.f32.mrb[0].mxu0
      %v4107 = vpop.f32.mrb[0].mxu0
      %v4108 = vadd.f32 %v3900, %v4107
      %v4109 = vpop.f32.mrb[0].mxu0
      %4110 = vmatprep.mubr.bf16.mxu0 0
      %4111 = vmatmul.mubr.bf16.gmra.mrb[0].mxu0 %v813
      %v4112 = vpop.f32.mrb[0].mxu0
      %v4113 = vadd.f32 %v3900, %v4112
      %v4114 = vpop.f32.mrb[0].mxu0
      %v4115 = vpop.f32.mrb[0].mxu0
      %v4116 = vadd.f32 %v3900, %v4115
      %v4117 = vpop.f32.mrb[0].mxu0
      %4118 = vmatprep.mubr.bf16.mxu0 0
      %4119 = vmatmul.mubr.bf16.gmra.mrb[0].mxu0 %v814
      %v4120 = vpop.f32.mrb[0].mxu0
      %v4121 = vadd.f32 %v3900, %v4120
      %v4122 = vpop.f32.mrb[0].mxu0
      %v4123 = vpop.f32.mrb[0].mxu0
      %v4124 = vadd.f32 %v3900, %v4123
      %v4125 = vpop.f32.mrb[0].mxu0
      %4126 = vmatprep.mubr.bf16.mxu0 0
      %4127 = vmatmul.mubr.bf16.gmra.mrb[0].mxu0 %v815
      %v4128 = vpop.f32.mrb[0].mxu0
      %v4129 = vadd.f32 %v3900, %v4128
      %v4130 = vpop.f32.mrb[0].mxu0
      %v4131 = vpop.f32.mrb[0].mxu0
      %v4132 = vadd.f32 %v3900, %v4131
      %v4133 = vpop.f32.mrb[0].mxu0
      %4134 = vmatprep.mubr.bf16.mxu0 0
      %4135 = vmatmul.mubr.bf16.gmra.mrb[0].mxu0 %v816
      %v4136 = vpop.f32.mrb[0].mxu0
      %v4137 = vadd.f32 %v3900, %v4136
      %v4138 = vpop.f32.mrb[0].mxu0
      %v4139 = vpop.f32.mrb[0].mxu0
      %v4140 = vadd.f32 %v3900, %v4139
      %v4141 = vpop.f32.mrb[0].mxu0
      %4142 = vmatprep.mubr.bf16.mxu0 0
      %4143 = vmatmul.mubr.bf16.gmra.mrb[0].mxu0 %v817
      %v4144 = vpop.f32.mrb[0].mxu0
      %v4145 = vadd.f32 %v3900, %v4144
      %v4146 = vpop.f32.mrb[0].mxu0
      %v4147 = vpop.f32.mrb[0].mxu0
      %v4148 = vadd.f32 %v3900, %v4147
      %v4149 = vpop.f32.mrb[0].mxu0
      %4150 = vmatprep.mubr.bf16.mxu0 0
      %4151 = vmatmul.mubr.bf16.gmra.mrb[0].mxu0 %v818
      %v4152 = vpop.f32.mrb[0].mxu0
      %v4153 = vadd.f32 %v3900, %v4152
      %v4154 = vpop.f32.mrb[0].mxu0
      %v4155 = vpop.f32.mrb[0].mxu0
      %v4156 = vadd.f32 %v3900, %v4155
      %v4157 = vpop.f32.mrb[0].mxu0
      %4158 = vmatprep.mubr.bf16.mxu0 0
      %4159 = vmatmul.mubr.bf16.gmra.mrb[0].mxu0 %v819
      %v4160 = vpop.f32.mrb[0].mxu0
      %v4161 = vadd.f32 %v3900, %v4160
      %v4162 = vpop.f32.mrb[0].mxu0
      %v4163 = vpop.f32.mrb[0].mxu0
      %v4164 = vadd.f32 %v3900, %v4163
      %v4165 = vpop.f32.mrb[0].mxu0
      %4166 = vmatprep.mubr.bf16.mxu0 0
      %4167 = vmatmul.mubr.bf16.gmra.mrb[0].mxu0 %v820
      %v4168 = vpop.f32.mrb[0].mxu0
      %v4169 = vadd.f32 %v3900, %v4168
      %v4170 = vpop.f32.mrb[0].mxu0
      %v4171 = vpop.f32.mrb[0].mxu0
      %v4172 = vadd.f32 %v3900, %v4171
      %v4173 = vpop.f32.mrb[0].mxu0
      %4174 = vmatprep.mubr.bf16.mxu0 0
      %4175 = vmatmul.mubr.bf16.gmra.mrb[0].mxu0 %v821
      %v4176 = vpop.f32.mrb[0].mxu0
      %v4177 = vadd.f32 %v3900, %v4176
      %v4178 = vpop.f32.mrb[0].mxu0
      %v4179 = vpop.f32.mrb[0].mxu0
      %v4180 = vadd.f32 %v3900, %v4179
      %v4181 = vpop.f32.mrb[0].mxu0
      %4182 = vmatprep.mubr.bf16.mxu0 0
      %4183 = vmatmul.mubr.bf16.gmra.mrb[0].mxu0 %v822
      %v4184 = vpop.f32.mrb[0].mxu0
      %v4185 = vadd.f32 %v3900, %v4184
      %v4186 = vpop.f32.mrb[0].mxu0
      %v4187 = vpop.f32.mrb[0].mxu0
      %v4188 = vadd.f32 %v3900, %v4187
      %v4189 = vpop.f32.mrb[0].mxu0
      %4190 = vmatprep.mubr.bf16.mxu0 0
      %4191 = vmatmul.mubr.bf16.gmra.mrb[0].mxu0 %v823
      %v4192 = vpop.f32.mrb[0].mxu0
      %v4193 = vadd.f32 %v3900, %v4192
      %v4194 = vpop.f32.mrb[0].mxu0
      %v4195 = vpop.f32.mrb[0].mxu0
      %v4196 = vadd.f32 %v3900, %v4195
      %v4197 = vpop.f32.mrb[0].mxu0
      %4198 = vmatprep.mubr.bf16.mxu0 0
      %4199 = vmatmul.mubr.bf16.gmra.mrb[0].mxu0 %v824
      %v4200 = vpop.f32.mrb[0].mxu0
      %v4201 = vadd.f32 %v3900, %v4200
      %v4202 = vpop.f32.mrb[0].mxu0
      %v4203 = vpop.f32.mrb[0].mxu0
      %v4204 = vadd.f32 %v3900, %v4203
      %v4205 = vpop.f32.mrb[0].mxu0
      %4206 = vmatprep.mubr.bf16.mxu0 0
      %4207 = vmatmul.mubr.bf16.gmra.mrb[0].mxu0 %v825
      %v4208 = vpop.f32.mrb[0].mxu0
      %v4209 = vadd.f32 %v3900, %v4208
      %v4210 = vpop.f32.mrb[0].mxu0
      %v4211 = vpop.f32.mrb[0].mxu0
      %v4212 = vadd.f32 %v3900, %v4211
      %v4213 = vpop.f32.mrb[0].mxu0
      %4214 = vmatprep.mubr.bf16.mxu0 0
      %4215 = vmatmul.mubr.bf16.gmra.mrb[0].mxu0 %v826
      %v4216 = vpop.f32.mrb[0].mxu0
      %v4217 = vadd.f32 %v3900, %v4216
      %v4218 = vpop.f32.mrb[0].mxu0
      %v4219 = vpop.f32.mrb[0].mxu0
      %v4220 = vadd.f32 %v3900, %v4219
      %v4221 = vpop.f32.mrb[0].mxu0
      %4222 = vmatprep.mubr.bf16.mxu0 0
      %4223 = vmatmul.mubr.bf16.gmra.mrb[0].mxu0 %v827
      %v4224 = vpop.f32.mrb[0].mxu0
      %v4225 = vadd.f32 %v3900, %v4224
      %v4226 = vpop.f32.mrb[0].mxu0
      %v4227 = vpop.f32.mrb[0].mxu0
      %v4228 = vadd.f32 %v3900, %v4227
      %v4229 = vpop.f32.mrb[0].mxu0
      %4230 = vmatprep.mubr.bf16.mxu0 0
      %4231 = vmatmul.mubr.bf16.gmra.mrb[0].mxu0 %v828
      %v4232 = vpop.f32.mrb[0].mxu0
      %v4233 = vadd.f32 %v3900, %v4232
      %v4234 = vpop.f32.mrb[0].mxu0
      %v4235 = vpop.f32.mrb[0].mxu0
      %v4236 = vadd.f32 %v3900, %v4235
      %v4237 = vpop.f32.mrb[0].mxu0
      %4238 = vdwg.mxu0
      %v4239 = vld [vmem:[%s10] sm:$0xf]
      %v4240 = vld [vmem:[%s10 + $0x4] sm:$0xf]
      %v4241 = vld [vmem:[%s10 + $0x8] sm:$0xf]
      %v4242 = vld [vmem:[%s10 + $0xc] sm:$0xf]
      %v4243 = vld [vmem:[%s10 + $0x10] sm:$0xf]
      %v4244 = vld [vmem:[%s10 + $0x14] sm:$0xf]
      %v4245 = vld [vmem:[%s10 + $0x18] sm:$0xf]
      %v4246 = vld [vmem:[%s10 + $0x1c] sm:$0xf]
      %v4247 = vld [vmem:[%s10 + $0x20] sm:$0xf]
      %v4248 = vld [vmem:[%s10 + $0x24] sm:$0xf]
      %v4249 = vld [vmem:[%s10 + $0x28] sm:$0xf]
      %v4250 = vld [vmem:[%s10 + $0x2c] sm:$0xf]
      %v4251 = vld [vmem:[%s10 + $0x30] sm:$0xf]
      %v4252 = vld [vmem:[%s10 + $0x34] sm:$0xf]
      %v4253 = vld [vmem:[%s10 + $0x38] sm:$0xf]
      %v4254 = vld [vmem:[%s10 + $0x3c] sm:$0xf]
      %v4255 = vld [vmem:[%s11] sm:$0x1]
      %v4257 = vlaneseq
      %v4258 = vshrl.u32 %v4257, 7
      %v4259 = vsub.s32 0, %v4258
      %v4260 = vrot.slane %v4255, %v4259
      %v4278 = vunpack.c.l.b16 %v4239
      %v4279 = vunpack.c.l.b16 %v4240
      %v4280 = vunpack.c.l.b16 %v4241
      %v4281 = vunpack.c.l.b16 %v4242
      %v4282 = vunpack.c.l.b16 %v4243
      %v4283 = vunpack.c.l.b16 %v4244
      %v4284 = vunpack.c.l.b16 %v4245
      %v4285 = vunpack.c.l.b16 %v4246
      %v4286 = vunpack.c.l.b16 %v4247
      %v4287 = vunpack.c.l.b16 %v4248
      %v4288 = vunpack.c.l.b16 %v4249
      %v4289 = vunpack.c.l.b16 %v4250
      %v4290 = vunpack.c.l.b16 %v4251
      %v4291 = vunpack.c.l.b16 %v4252
      %v4292 = vunpack.c.l.b16 %v4253
      %v4293 = vunpack.c.l.b16 %v4254
      %v4294 = vpack.c.b16 %v4279, %v4278
      %v4295 = vpack.c.b16 %v4281, %v4280
      %v4296 = vpack.c.b16 %v4283, %v4282
      %v4297 = vpack.c.b16 %v4285, %v4284
      %v4298 = vpack.c.b16 %v4287, %v4286
      %v4299 = vpack.c.b16 %v4289, %v4288
      %v4300 = vpack.c.b16 %v4291, %v4290
      %v4301 = vpack.c.b16 %v4293, %v4292
      %4310 = vmatprep.subr.bf16.mxu0 0
      %4311 = vmatpush1.bf16.msra.mxu0 %v4294
      %4312 = vmatprep.subr.bf16.mxu0 0
      %4313 = vmatpush1.bf16.msra.mxu0 %v4295
      %4314 = vmatprep.subr.bf16.mxu0 0
      %4315 = vmatpush1.bf16.msra.mxu0 %v4296
      %4316 = vmatprep.subr.bf16.mxu0 0
      %4317 = vmatpush1.bf16.msra.mxu0 %v4297
      %4318 = vmatprep.subr.bf16.mxu0 0
      %4319 = vmatpush1.bf16.msra.mxu0 %v4298
      %4320 = vmatprep.subr.bf16.mxu0 0
      %4321 = vmatpush1.bf16.msra.mxu0 %v4299
      %4322 = vmatprep.subr.bf16.mxu0 0
      %4323 = vmatpush1.bf16.msra.mxu0 %v4300
      %4324 = vmatprep.subr.bf16.mxu0 0
      %4325 = vmatpush1.bf16.msra.mxu0 %v4301
      %4326 = vmatprep.subr.bf16.mxu0 0
      %4327 = vmatpush1.bf16.msra.mxu0 0
      %4328 = vmatprep.subr.bf16.mxu0 0
      %4329 = vmatpush1.bf16.msra.mxu0 0
      %4330 = vmatprep.subr.bf16.mxu0 0
      %4331 = vmatpush1.bf16.msra.mxu0 0
      %4332 = vmatprep.subr.bf16.mxu0 0
      %4333 = vmatpush1.bf16.msra.mxu0 0
      %4334 = vmatprep.subr.bf16.mxu0 0
      %4335 = vmatpush1.bf16.msra.mxu0 0
      %4336 = vmatprep.subr.bf16.mxu0 0
      %4337 = vmatpush1.bf16.msra.mxu0 0
      %4338 = vmatprep.subr.bf16.mxu0 0
      %4339 = vmatpush1.bf16.msra.mxu0 0
      %4340 = vmatprep.subr.bf16.mxu0 0
      %4341 = vmatpush1.bf16.msra.mxu0 0
      %4342 = vmatprep.mubr.bf16.mxu0 0
      %4343 = vmatmul.mubr.bf16.gmra.mrb[0].mxu0 %v797
      %v4344 = vpop.f32.mrb[0].mxu0
      %v4345 = vadd.f32 %v4260, %v4344
      %v4346 = vpop.f32.mrb[0].mxu0
      %v4347 = vpop.f32.mrb[0].mxu0
      %v4348 = vadd.f32 %v4260, %v4347
      %v4349 = vpop.f32.mrb[0].mxu0
      %4350 = vmatprep.mubr.bf16.mxu0 0
      %4351 = vmatmul.mubr.bf16.gmra.mrb[0].mxu0 %v798
      %v4352 = vpop.f32.mrb[0].mxu0
      %v4353 = vadd.f32 %v4260, %v4352
      %v4354 = vpop.f32.mrb[0].mxu0
      %v4355 = vpop.f32.mrb[0].mxu0
      %v4356 = vadd.f32 %v4260, %v4355
      %v4357 = vpop.f32.mrb[0].mxu0
      %4358 = vmatprep.mubr.bf16.mxu0 0
      %4359 = vmatmul.mubr.bf16.gmra.mrb[0].mxu0 %v799
      %v4360 = vpop.f32.mrb[0].mxu0
      %v4361 = vadd.f32 %v4260, %v4360
      %v4362 = vpop.f32.mrb[0].mxu0
      %v4363 = vpop.f32.mrb[0].mxu0
      %v4364 = vadd.f32 %v4260, %v4363
      %v4365 = vpop.f32.mrb[0].mxu0
      %4366 = vmatprep.mubr.bf16.mxu0 0
      %4367 = vmatmul.mubr.bf16.gmra.mrb[0].mxu0 %v800
      %v4368 = vpop.f32.mrb[0].mxu0
      %v4369 = vadd.f32 %v4260, %v4368
      %v4370 = vpop.f32.mrb[0].mxu0
      %v4371 = vpop.f32.mrb[0].mxu0
      %v4372 = vadd.f32 %v4260, %v4371
      %v4373 = vpop.f32.mrb[0].mxu0
      %4374 = vmatprep.mubr.bf16.mxu0 0
      %4375 = vmatmul.mubr.bf16.gmra.mrb[0].mxu0 %v801
      %v4376 = vpop.f32.mrb[0].mxu0
      %v4377 = vadd.f32 %v4260, %v4376
      %v4378 = vpop.f32.mrb[0].mxu0
      %v4379 = vpop.f32.mrb[0].mxu0
      %v4380 = vadd.f32 %v4260, %v4379
      %v4381 = vpop.f32.mrb[0].mxu0
      %4382 = vmatprep.mubr.bf16.mxu0 0
      %4383 = vmatmul.mubr.bf16.gmra.mrb[0].mxu0 %v802
      %v4384 = vpop.f32.mrb[0].mxu0
      %v4385 = vadd.f32 %v4260, %v4384
      %v4386 = vpop.f32.mrb[0].mxu0
      %v4387 = vpop.f32.mrb[0].mxu0
      %v4388 = vadd.f32 %v4260, %v4387
      %v4389 = vpop.f32.mrb[0].mxu0
      %4390 = vmatprep.mubr.bf16.mxu0 0
      %4391 = vmatmul.mubr.bf16.gmra.mrb[0].mxu0 %v803
      %v4392 = vpop.f32.mrb[0].mxu0
      %v4393 = vadd.f32 %v4260, %v4392
      %v4394 = vpop.f32.mrb[0].mxu0
      %v4395 = vpop.f32.mrb[0].mxu0
      %v4396 = vadd.f32 %v4260, %v4395
      %v4397 = vpop.f32.mrb[0].mxu0
      %4398 = vmatprep.mubr.bf16.mxu0 0
      %4399 = vmatmul.mubr.bf16.gmra.mrb[0].mxu0 %v804
      %v4400 = vpop.f32.mrb[0].mxu0
      %v4401 = vadd.f32 %v4260, %v4400
      %v4402 = vpop.f32.mrb[0].mxu0
      %v4403 = vpop.f32.mrb[0].mxu0
      %v4404 = vadd.f32 %v4260, %v4403
      %v4405 = vpop.f32.mrb[0].mxu0
      %4406 = vmatprep.mubr.bf16.mxu0 0
      %4407 = vmatmul.mubr.bf16.gmra.mrb[0].mxu0 %v805
      %v4408 = vpop.f32.mrb[0].mxu0
      %v4409 = vadd.f32 %v4260, %v4408
      %v4410 = vpop.f32.mrb[0].mxu0
      %v4411 = vpop.f32.mrb[0].mxu0
      %v4412 = vadd.f32 %v4260, %v4411
      %v4413 = vpop.f32.mrb[0].mxu0
      %4414 = vmatprep.mubr.bf16.mxu0 0
      %4415 = vmatmul.mubr.bf16.gmra.mrb[0].mxu0 %v806
      %v4416 = vpop.f32.mrb[0].mxu0
      %v4417 = vadd.f32 %v4260, %v4416
      %v4418 = vpop.f32.mrb[0].mxu0
      %v4419 = vpop.f32.mrb[0].mxu0
      %v4420 = vadd.f32 %v4260, %v4419
      %v4421 = vpop.f32.mrb[0].mxu0
      %4422 = vmatprep.mubr.bf16.mxu0 0
      %4423 = vmatmul.mubr.bf16.gmra.mrb[0].mxu0 %v807
      %v4424 = vpop.f32.mrb[0].mxu0
      %v4425 = vadd.f32 %v4260, %v4424
      %v4426 = vpop.f32.mrb[0].mxu0
      %v4427 = vpop.f32.mrb[0].mxu0
      %v4428 = vadd.f32 %v4260, %v4427
      %v4429 = vpop.f32.mrb[0].mxu0
      %4430 = vmatprep.mubr.bf16.mxu0 0
      %4431 = vmatmul.mubr.bf16.gmra.mrb[0].mxu0 %v808
      %v4432 = vpop.f32.mrb[0].mxu0
      %v4433 = vadd.f32 %v4260, %v4432
      %v4434 = vpop.f32.mrb[0].mxu0
      %v4435 = vpop.f32.mrb[0].mxu0
      %v4436 = vadd.f32 %v4260, %v4435
      %v4437 = vpop.f32.mrb[0].mxu0
      %4438 = vmatprep.mubr.bf16.mxu0 0
      %4439 = vmatmul.mubr.bf16.gmra.mrb[0].mxu0 %v809
      %v4440 = vpop.f32.mrb[0].mxu0
      %v4441 = vadd.f32 %v4260, %v4440
      %v4442 = vpop.f32.mrb[0].mxu0
      %v4443 = vpop.f32.mrb[0].mxu0
      %v4444 = vadd.f32 %v4260, %v4443
      %v4445 = vpop.f32.mrb[0].mxu0
      %4446 = vmatprep.mubr.bf16.mxu0 0
      %4447 = vmatmul.mubr.bf16.gmra.mrb[0].mxu0 %v810
      %v4448 = vpop.f32.mrb[0].mxu0
      %v4449 = vadd.f32 %v4260, %v4448
      %v4450 = vpop.f32.mrb[0].mxu0
      %v4451 = vpop.f32.mrb[0].mxu0
      %v4452 = vadd.f32 %v4260, %v4451
      %v4453 = vpop.f32.mrb[0].mxu0
      %4454 = vmatprep.mubr.bf16.mxu0 0
      %4455 = vmatmul.mubr.bf16.gmra.mrb[0].mxu0 %v811
      %v4456 = vpop.f32.mrb[0].mxu0
      %v4457 = vadd.f32 %v4260, %v4456
      %v4458 = vpop.f32.mrb[0].mxu0
      %v4459 = vpop.f32.mrb[0].mxu0
      %v4460 = vadd.f32 %v4260, %v4459
      %v4461 = vpop.f32.mrb[0].mxu0
      %4462 = vmatprep.mubr.bf16.mxu0 0
      %4463 = vmatmul.mubr.bf16.gmra.mrb[0].mxu0 %v812
      %v4464 = vpop.f32.mrb[0].mxu0
      %v4465 = vadd.f32 %v4260, %v4464
      %v4466 = vpop.f32.mrb[0].mxu0
      %v4467 = vpop.f32.mrb[0].mxu0
      %v4468 = vadd.f32 %v4260, %v4467
      %v4469 = vpop.f32.mrb[0].mxu0
      %4470 = vmatprep.mubr.bf16.mxu0 0
      %4471 = vmatmul.mubr.bf16.gmra.mrb[0].mxu0 %v813
      %v4472 = vpop.f32.mrb[0].mxu0
      %v4473 = vadd.f32 %v4260, %v4472
      %v4474 = vpop.f32.mrb[0].mxu0
      %v4475 = vpop.f32.mrb[0].mxu0
      %v4476 = vadd.f32 %v4260, %v4475
      %v4477 = vpop.f32.mrb[0].mxu0
      %4478 = vmatprep.mubr.bf16.mxu0 0
      %4479 = vmatmul.mubr.bf16.gmra.mrb[0].mxu0 %v814
      %v4480 = vpop.f32.mrb[0].mxu0
      %v4481 = vadd.f32 %v4260, %v4480
      %v4482 = vpop.f32.mrb[0].mxu0
      %v4483 = vpop.f32.mrb[0].mxu0
      %v4484 = vadd.f32 %v4260, %v4483
      %v4485 = vpop.f32.mrb[0].mxu0
      %4486 = vmatprep.mubr.bf16.mxu0 0
      %4487 = vmatmul.mubr.bf16.gmra.mrb[0].mxu0 %v815
      %v4488 = vpop.f32.mrb[0].mxu0
      %v4489 = vadd.f32 %v4260, %v4488
      %v4490 = vpop.f32.mrb[0].mxu0
      %v4491 = vpop.f32.mrb[0].mxu0
      %v4492 = vadd.f32 %v4260, %v4491
      %v4493 = vpop.f32.mrb[0].mxu0
      %4494 = vmatprep.mubr.bf16.mxu0 0
      %4495 = vmatmul.mubr.bf16.gmra.mrb[0].mxu0 %v816
      %v4496 = vpop.f32.mrb[0].mxu0
      %v4497 = vadd.f32 %v4260, %v4496
      %v4498 = vpop.f32.mrb[0].mxu0
      %v4499 = vpop.f32.mrb[0].mxu0
      %v4500 = vadd.f32 %v4260, %v4499
      %v4501 = vpop.f32.mrb[0].mxu0
      %4502 = vmatprep.mubr.bf16.mxu0 0
      %4503 = vmatmul.mubr.bf16.gmra.mrb[0].mxu0 %v817
      %v4504 = vpop.f32.mrb[0].mxu0
      %v4505 = vadd.f32 %v4260, %v4504
      %v4506 = vpop.f32.mrb[0].mxu0
      %v4507 = vpop.f32.mrb[0].mxu0
      %v4508 = vadd.f32 %v4260, %v4507
      %v4509 = vpop.f32.mrb[0].mxu0
      %4510 = vmatprep.mubr.bf16.mxu0 0
      %4511 = vmatmul.mubr.bf16.gmra.mrb[0].mxu0 %v818
      %v4512 = vpop.f32.mrb[0].mxu0
      %v4513 = vadd.f32 %v4260, %v4512
      %v4514 = vpop.f32.mrb[0].mxu0
      %v4515 = vpop.f32.mrb[0].mxu0
      %v4516 = vadd.f32 %v4260, %v4515
      %v4517 = vpop.f32.mrb[0].mxu0
      %4518 = vmatprep.mubr.bf16.mxu0 0
      %4519 = vmatmul.mubr.bf16.gmra.mrb[0].mxu0 %v819
      %v4520 = vpop.f32.mrb[0].mxu0
      %v4521 = vadd.f32 %v4260, %v4520
      %v4522 = vpop.f32.mrb[0].mxu0
      %v4523 = vpop.f32.mrb[0].mxu0
      %v4524 = vadd.f32 %v4260, %v4523
      %v4525 = vpop.f32.mrb[0].mxu0
      %4526 = vmatprep.mubr.bf16.mxu0 0
      %4527 = vmatmul.mubr.bf16.gmra.mrb[0].mxu0 %v820
      %v4528 = vpop.f32.mrb[0].mxu0
      %v4529 = vadd.f32 %v4260, %v4528
      %v4530 = vpop.f32.mrb[0].mxu0
      %v4531 = vpop.f32.mrb[0].mxu0
      %v4532 = vadd.f32 %v4260, %v4531
      %v4533 = vpop.f32.mrb[0].mxu0
      %4534 = vmatprep.mubr.bf16.mxu0 0
      %4535 = vmatmul.mubr.bf16.gmra.mrb[0].mxu0 %v821
      %v4536 = vpop.f32.mrb[0].mxu0
      %v4537 = vadd.f32 %v4260, %v4536
      %v4538 = vpop.f32.mrb[0].mxu0
      %v4539 = vpop.f32.mrb[0].mxu0
      %v4540 = vadd.f32 %v4260, %v4539
      %v4541 = vpop.f32.mrb[0].mxu0
      %4542 = vmatprep.mubr.bf16.mxu0 0
      %4543 = vmatmul.mubr.bf16.gmra.mrb[0].mxu0 %v822
      %v4544 = vpop.f32.mrb[0].mxu0
      %v4545 = vadd.f32 %v4260, %v4544
      %v4546 = vpop.f32.mrb[0].mxu0
      %v4547 = vpop.f32.mrb[0].mxu0
      %v4548 = vadd.f32 %v4260, %v4547
      %v4549 = vpop.f32.mrb[0].mxu0
      %4550 = vmatprep.mubr.bf16.mxu0 0
      %4551 = vmatmul.mubr.bf16.gmra.mrb[0].mxu0 %v823
      %v4552 = vpop.f32.mrb[0].mxu0
      %v4553 = vadd.f32 %v4260, %v4552
      %v4554 = vpop.f32.mrb[0].mxu0
      %v4555 = vpop.f32.mrb[0].mxu0
      %v4556 = vadd.f32 %v4260, %v4555
      %v4557 = vpop.f32.mrb[0].mxu0
      %4558 = vmatprep.mubr.bf16.mxu0 0
      %4559 = vmatmul.mubr.bf16.gmra.mrb[0].mxu0 %v824
      %v4560 = vpop.f32.mrb[0].mxu0
      %v4561 = vadd.f32 %v4260, %v4560
      %v4562 = vpop.f32.mrb[0].mxu0
      %v4563 = vpop.f32.mrb[0].mxu0
      %v4564 = vadd.f32 %v4260, %v4563
      %v4565 = vpop.f32.mrb[0].mxu0
      %4566 = vmatprep.mubr.bf16.mxu0 0
      %4567 = vmatmul.mubr.bf16.gmra.mrb[0].mxu0 %v825
      %v4568 = vpop.f32.mrb[0].mxu0
      %v4569 = vadd.f32 %v4260, %v4568
      %v4570 = vpop.f32.mrb[0].mxu0
      %v4571 = vpop.f32.mrb[0].mxu0
      %v4572 = vadd.f32 %v4260, %v4571
      %v4573 = vpop.f32.mrb[0].mxu0
      %4574 = vmatprep.mubr.bf16.mxu0 0
      %4575 = vmatmul.mubr.bf16.gmra.mrb[0].mxu0 %v826
      %v4576 = vpop.f32.mrb[0].mxu0
      %v4577 = vadd.f32 %v4260, %v4576
      %v4578 = vpop.f32.mrb[0].mxu0
      %v4579 = vpop.f32.mrb[0].mxu0
      %v4580 = vadd.f32 %v4260, %v4579
      %v4581 = vpop.f32.mrb[0].mxu0
      %4582 = vmatprep.mubr.bf16.mxu0 0
      %4583 = vmatmul.mubr.bf16.gmra.mrb[0].mxu0 %v827
      %v4584 = vpop.f32.mrb[0].mxu0
      %v4585 = vadd.f32 %v4260, %v4584
      %v4586 = vpop.f32.mrb[0].mxu0
      %v4587 = vpop.f32.mrb[0].mxu0
      %v4588 = vadd.f32 %v4260, %v4587
      %v4589 = vpop.f32.mrb[0].mxu0
      %4590 = vmatprep.mubr.bf16.mxu0 0
      %4591 = vmatmul.mubr.bf16.gmra.mrb[0].mxu0 %v828
      %v4592 = vpop.f32.mrb[0].mxu0
      %v4593 = vadd.f32 %v4260, %v4592
      %v4594 = vpop.f32.mrb[0].mxu0
      %v4595 = vpop.f32.mrb[0].mxu0
      %v4596 = vadd.f32 %v4260, %v4595
      %v4597 = vpop.f32.mrb[0].mxu0
      %4598 = vdwg.mxu0
      %v4599 = vld [vmem:[%s12] sm:$0xf]
      %v4600 = vld [vmem:[%s12 + $0x4] sm:$0xf]
      %v4601 = vld [vmem:[%s12 + $0x8] sm:$0xf]
      %v4602 = vld [vmem:[%s12 + $0xc] sm:$0xf]
      %v4603 = vld [vmem:[%s12 + $0x10] sm:$0xf]
      %v4604 = vld [vmem:[%s12 + $0x14] sm:$0xf]
      %v4605 = vld [vmem:[%s12 + $0x18] sm:$0xf]
      %v4606 = vld [vmem:[%s12 + $0x1c] sm:$0xf]
      %v4607 = vld [vmem:[%s12 + $0x20] sm:$0xf]
      %v4608 = vld [vmem:[%s12 + $0x24] sm:$0xf]
      %v4609 = vld [vmem:[%s12 + $0x28] sm:$0xf]
      %v4610 = vld [vmem:[%s12 + $0x2c] sm:$0xf]
      %v4611 = vld [vmem:[%s12 + $0x30] sm:$0xf]
      %v4612 = vld [vmem:[%s12 + $0x34] sm:$0xf]
      %v4613 = vld [vmem:[%s12 + $0x38] sm:$0xf]
      %v4614 = vld [vmem:[%s12 + $0x3c] sm:$0xf]
      %v4615 = vld [vmem:[#allocation2] sm:$0x1]
      %v4617 = vlaneseq
      %v4618 = vshrl.u32 %v4617, 7
      %v4619 = vsub.s32 0, %v4618
      %v4620 = vrot.slane %v4615, %v4619
      %v4638 = vunpack.c.l.b16 %v4599
      %v4639 = vunpack.c.l.b16 %v4600
      %v4640 = vunpack.c.l.b16 %v4601
      %v4641 = vunpack.c.l.b16 %v4602
      %v4642 = vunpack.c.l.b16 %v4603
      %v4643 = vunpack.c.l.b16 %v4604
      %v4644 = vunpack.c.l.b16 %v4605
      %v4645 = vunpack.c.l.b16 %v4606
      %v4646 = vunpack.c.l.b16 %v4607
      %v4647 = vunpack.c.l.b16 %v4608
      %v4648 = vunpack.c.l.b16 %v4609
      %v4649 = vunpack.c.l.b16 %v4610
      %v4650 = vunpack.c.l.b16 %v4611
      %v4651 = vunpack.c.l.b16 %v4612
      %v4652 = vunpack.c.l.b16 %v4613
      %v4653 = vunpack.c.l.b16 %v4614
      %v4654 = vpack.c.b16 %v4639, %v4638
      %v4655 = vpack.c.b16 %v4641, %v4640
      %v4656 = vpack.c.b16 %v4643, %v4642
      %v4657 = vpack.c.b16 %v4645, %v4644
      %v4658 = vpack.c.b16 %v4647, %v4646
      %v4659 = vpack.c.b16 %v4649, %v4648
      %v4660 = vpack.c.b16 %v4651, %v4650
      %v4661 = vpack.c.b16 %v4653, %v4652
      %4670 = vmatprep.subr.bf16.mxu0 0
      %4671 = vmatpush1.bf16.msra.mxu0 %v4654
      %4672 = vmatprep.subr.bf16.mxu0 0
      %4673 = vmatpush1.bf16.msra.mxu0 %v4655
      %4674 = vmatprep.subr.bf16.mxu0 0
      %4675 = vmatpush1.bf16.msra.mxu0 %v4656
      %4676 = vmatprep.subr.bf16.mxu0 0
      %4677 = vmatpush1.bf16.msra.mxu0 %v4657
      %4678 = vmatprep.subr.bf16.mxu0 0
      %4679 = vmatpush1.bf16.msra.mxu0 %v4658
      %4680 = vmatprep.subr.bf16.mxu0 0
      %4681 = vmatpush1.bf16.msra.mxu0 %v4659
      %4682 = vmatprep.subr.bf16.mxu0 0
      %4683 = vmatpush1.bf16.msra.mxu0 %v4660
      %4684 = vmatprep.subr.bf16.mxu0 0
      %4685 = vmatpush1.bf16.msra.mxu0 %v4661
      %4686 = vmatprep.subr.bf16.mxu0 0
      %4687 = vmatpush1.bf16.msra.mxu0 0
      %4688 = vmatprep.subr.bf16.mxu0 0
      %4689 = vmatpush1.bf16.msra.mxu0 0
      %4690 = vmatprep.subr.bf16.mxu0 0
      %4691 = vmatpush1.bf16.msra.mxu0 0
      %4692 = vmatprep.subr.bf16.mxu0 0
      %4693 = vmatpush1.bf16.msra.mxu0 0
      %4694 = vmatprep.subr.bf16.mxu0 0
      %4695 = vmatpush1.bf16.msra.mxu0 0
      %4696 = vmatprep.subr.bf16.mxu0 0
      %4697 = vmatpush1.bf16.msra.mxu0 0
      %4698 = vmatprep.subr.bf16.mxu0 0
      %4699 = vmatpush1.bf16.msra.mxu0 0
      %4700 = vmatprep.subr.bf16.mxu0 0
      %4701 = vmatpush1.bf16.msra.mxu0 0
      %4702 = vmatprep.mubr.bf16.mxu0 0
      %4703 = vmatmul.mubr.bf16.gmra.mrb[0].mxu0 %v797
      %v4704 = vpop.f32.mrb[0].mxu0
      %v4705 = vadd.f32 %v4620, %v4704
      %v4706 = vpop.f32.mrb[0].mxu0
      %v4707 = vpop.f32.mrb[0].mxu0
      %v4708 = vadd.f32 %v4620, %v4707
      %v4709 = vpop.f32.mrb[0].mxu0
      %4710 = vmatprep.mubr.bf16.mxu0 0
      %4711 = vmatmul.mubr.bf16.gmra.mrb[0].mxu0 %v798
      %v4712 = vpop.f32.mrb[0].mxu0
      %v4713 = vadd.f32 %v4620, %v4712
      %v4714 = vpop.f32.mrb[0].mxu0
      %v4715 = vpop.f32.mrb[0].mxu0
      %v4716 = vadd.f32 %v4620, %v4715
      %v4717 = vpop.f32.mrb[0].mxu0
      %4718 = vmatprep.mubr.bf16.mxu0 0
      %4719 = vmatmul.mubr.bf16.gmra.mrb[0].mxu0 %v799
      %v4720 = vpop.f32.mrb[0].mxu0
      %v4721 = vadd.f32 %v4620, %v4720
      %v4722 = vpop.f32.mrb[0].mxu0
      %v4723 = vpop.f32.mrb[0].mxu0
      %v4724 = vadd.f32 %v4620, %v4723
      %v4725 = vpop.f32.mrb[0].mxu0
      %4726 = vmatprep.mubr.bf16.mxu0 0
      %4727 = vmatmul.mubr.bf16.gmra.mrb[0].mxu0 %v800
      %v4728 = vpop.f32.mrb[0].mxu0
      %v4729 = vadd.f32 %v4620, %v4728
      %v4730 = vpop.f32.mrb[0].mxu0
      %v4731 = vpop.f32.mrb[0].mxu0
      %v4732 = vadd.f32 %v4620, %v4731
      %v4733 = vpop.f32.mrb[0].mxu0
      %4734 = vmatprep.mubr.bf16.mxu0 0
      %4735 = vmatmul.mubr.bf16.gmra.mrb[0].mxu0 %v801
      %v4736 = vpop.f32.mrb[0].mxu0
      %v4737 = vadd.f32 %v4620, %v4736
      %v4738 = vpop.f32.mrb[0].mxu0
      %v4739 = vpop.f32.mrb[0].mxu0
      %v4740 = vadd.f32 %v4620, %v4739
      %v4741 = vpop.f32.mrb[0].mxu0
      %4742 = vmatprep.mubr.bf16.mxu0 0
      %4743 = vmatmul.mubr.bf16.gmra.mrb[0].mxu0 %v802
      %v4744 = vpop.f32.mrb[0].mxu0
      %v4745 = vadd.f32 %v4620, %v4744
      %v4746 = vpop.f32.mrb[0].mxu0
      %v4747 = vpop.f32.mrb[0].mxu0
      %v4748 = vadd.f32 %v4620, %v4747
      %v4749 = vpop.f32.mrb[0].mxu0
      %4750 = vmatprep.mubr.bf16.mxu0 0
      %4751 = vmatmul.mubr.bf16.gmra.mrb[0].mxu0 %v803
      %v4752 = vpop.f32.mrb[0].mxu0
      %v4753 = vadd.f32 %v4620, %v4752
      %v4754 = vpop.f32.mrb[0].mxu0
      %v4755 = vpop.f32.mrb[0].mxu0
      %v4756 = vadd.f32 %v4620, %v4755
      %v4757 = vpop.f32.mrb[0].mxu0
      %4758 = vmatprep.mubr.bf16.mxu0 0
      %4759 = vmatmul.mubr.bf16.gmra.mrb[0].mxu0 %v804
      %v4760 = vpop.f32.mrb[0].mxu0
      %v4761 = vadd.f32 %v4620, %v4760
      %v4762 = vpop.f32.mrb[0].mxu0
      %v4763 = vpop.f32.mrb[0].mxu0
      %v4764 = vadd.f32 %v4620, %v4763
      %v4765 = vpop.f32.mrb[0].mxu0
      %4766 = vmatprep.mubr.bf16.mxu0 0
      %4767 = vmatmul.mubr.bf16.gmra.mrb[0].mxu0 %v805
      %v4768 = vpop.f32.mrb[0].mxu0
      %v4769 = vadd.f32 %v4620, %v4768
      %v4770 = vpop.f32.mrb[0].mxu0
      %v4771 = vpop.f32.mrb[0].mxu0
      %v4772 = vadd.f32 %v4620, %v4771
      %v4773 = vpop.f32.mrb[0].mxu0
      %4774 = vmatprep.mubr.bf16.mxu0 0
      %4775 = vmatmul.mubr.bf16.gmra.mrb[0].mxu0 %v806
      %v4776 = vpop.f32.mrb[0].mxu0
      %v4777 = vadd.f32 %v4620, %v4776
      %v4778 = vpop.f32.mrb[0].mxu0
      %v4779 = vpop.f32.mrb[0].mxu0
      %v4780 = vadd.f32 %v4620, %v4779
      %v4781 = vpop.f32.mrb[0].mxu0
      %4782 = vmatprep.mubr.bf16.mxu0 0
      %4783 = vmatmul.mubr.bf16.gmra.mrb[0].mxu0 %v807
      %v4784 = vpop.f32.mrb[0].mxu0
      %v4785 = vadd.f32 %v4620, %v4784
      %v4786 = vpop.f32.mrb[0].mxu0
      %v4787 = vpop.f32.mrb[0].mxu0
      %v4788 = vadd.f32 %v4620, %v4787
      %v4789 = vpop.f32.mrb[0].mxu0
      %4790 = vmatprep.mubr.bf16.mxu0 0
      %4791 = vmatmul.mubr.bf16.gmra.mrb[0].mxu0 %v808
      %v4792 = vpop.f32.mrb[0].mxu0
      %v4793 = vadd.f32 %v4620, %v4792
      %v4794 = vpop.f32.mrb[0].mxu0
      %v4795 = vpop.f32.mrb[0].mxu0
      %v4796 = vadd.f32 %v4620, %v4795
      %v4797 = vpop.f32.mrb[0].mxu0
      %4798 = vmatprep.mubr.bf16.mxu0 0
      %4799 = vmatmul.mubr.bf16.gmra.mrb[0].mxu0 %v809
      %v4800 = vpop.f32.mrb[0].mxu0
      %v4801 = vadd.f32 %v4620, %v4800
      %v4802 = vpop.f32.mrb[0].mxu0
      %v4803 = vpop.f32.mrb[0].mxu0
      %v4804 = vadd.f32 %v4620, %v4803
      %v4805 = vpop.f32.mrb[0].mxu0
      %4806 = vmatprep.mubr.bf16.mxu0 0
      %4807 = vmatmul.mubr.bf16.gmra.mrb[0].mxu0 %v810
      %v4808 = vpop.f32.mrb[0].mxu0
      %v4809 = vadd.f32 %v4620, %v4808
      %v4810 = vpop.f32.mrb[0].mxu0
      %v4811 = vpop.f32.mrb[0].mxu0
      %v4812 = vadd.f32 %v4620, %v4811
      %v4813 = vpop.f32.mrb[0].mxu0
      %4814 = vmatprep.mubr.bf16.mxu0 0
      %4815 = vmatmul.mubr.bf16.gmra.mrb[0].mxu0 %v811
      %v4816 = vpop.f32.mrb[0].mxu0
      %v4817 = vadd.f32 %v4620, %v4816
      %v4818 = vpop.f32.mrb[0].mxu0
      %v4819 = vpop.f32.mrb[0].mxu0
      %v4820 = vadd.f32 %v4620, %v4819
      %v4821 = vpop.f32.mrb[0].mxu0
      %4822 = vmatprep.mubr.bf16.mxu0 0
      %4823 = vmatmul.mubr.bf16.gmra.mrb[0].mxu0 %v812
      %v4824 = vpop.f32.mrb[0].mxu0
      %v4825 = vadd.f32 %v4620, %v4824
      %v4826 = vpop.f32.mrb[0].mxu0
      %v4827 = vpop.f32.mrb[0].mxu0
      %v4828 = vadd.f32 %v4620, %v4827
      %v4829 = vpop.f32.mrb[0].mxu0
      %4830 = vmatprep.mubr.bf16.mxu0 0
      %4831 = vmatmul.mubr.bf16.gmra.mrb[0].mxu0 %v813
      %v4832 = vpop.f32.mrb[0].mxu0
      %v4833 = vadd.f32 %v4620, %v4832
      %v4834 = vpop.f32.mrb[0].mxu0
      %v4835 = vpop.f32.mrb[0].mxu0
      %v4836 = vadd.f32 %v4620, %v4835
      %v4837 = vpop.f32.mrb[0].mxu0
      %4838 = vmatprep.mubr.bf16.mxu0 0
      %4839 = vmatmul.mubr.bf16.gmra.mrb[0].mxu0 %v814
      %v4840 = vpop.f32.mrb[0].mxu0
      %v4841 = vadd.f32 %v4620, %v4840
      %v4842 = vpop.f32.mrb[0].mxu0
      %v4843 = vpop.f32.mrb[0].mxu0
      %v4844 = vadd.f32 %v4620, %v4843
      %v4845 = vpop.f32.mrb[0].mxu0
      %4846 = vmatprep.mubr.bf16.mxu0 0
      %4847 = vmatmul.mubr.bf16.gmra.mrb[0].mxu0 %v815
      %v4848 = vpop.f32.mrb[0].mxu0
      %v4849 = vadd.f32 %v4620, %v4848
      %v4850 = vpop.f32.mrb[0].mxu0
      %v4851 = vpop.f32.mrb[0].mxu0
      %v4852 = vadd.f32 %v4620, %v4851
      %v4853 = vpop.f32.mrb[0].mxu0
      %4854 = vmatprep.mubr.bf16.mxu0 0
      %4855 = vmatmul.mubr.bf16.gmra.mrb[0].mxu0 %v816
      %v4856 = vpop.f32.mrb[0].mxu0
      %v4857 = vadd.f32 %v4620, %v4856
      %v4858 = vpop.f32.mrb[0].mxu0
      %v4859 = vpop.f32.mrb[0].mxu0
      %v4860 = vadd.f32 %v4620, %v4859
      %v4861 = vpop.f32.mrb[0].mxu0
      %4862 = vmatprep.mubr.bf16.mxu0 0
      %4863 = vmatmul.mubr.bf16.gmra.mrb[0].mxu0 %v817
      %v4864 = vpop.f32.mrb[0].mxu0
      %v4865 = vadd.f32 %v4620, %v4864
      %v4866 = vpop.f32.mrb[0].mxu0
      %v4867 = vpop.f32.mrb[0].mxu0
      %v4868 = vadd.f32 %v4620, %v4867
      %v4869 = vpop.f32.mrb[0].mxu0
      %4870 = vmatprep.mubr.bf16.mxu0 0
      %4871 = vmatmul.mubr.bf16.gmra.mrb[0].mxu0 %v818
      %v4872 = vpop.f32.mrb[0].mxu0
      %v4873 = vadd.f32 %v4620, %v4872
      %v4874 = vpop.f32.mrb[0].mxu0
      %v4875 = vpop.f32.mrb[0].mxu0
      %v4876 = vadd.f32 %v4620, %v4875
      %v4877 = vpop.f32.mrb[0].mxu0
      %4878 = vmatprep.mubr.bf16.mxu0 0
      %4879 = vmatmul.mubr.bf16.gmra.mrb[0].mxu0 %v819
      %v4880 = vpop.f32.mrb[0].mxu0
      %v4881 = vadd.f32 %v4620, %v4880
      %v4882 = vpop.f32.mrb[0].mxu0
      %v4883 = vpop.f32.mrb[0].mxu0
      %v4884 = vadd.f32 %v4620, %v4883
      %v4885 = vpop.f32.mrb[0].mxu0
      %4886 = vmatprep.mubr.bf16.mxu0 0
      %4887 = vmatmul.mubr.bf16.gmra.mrb[0].mxu0 %v820
      %v4888 = vpop.f32.mrb[0].mxu0
      %v4889 = vadd.f32 %v4620, %v4888
      %v4890 = vpop.f32.mrb[0].mxu0
      %v4891 = vpop.f32.mrb[0].mxu0
      %v4892 = vadd.f32 %v4620, %v4891
      %v4893 = vpop.f32.mrb[0].mxu0
      %4894 = vmatprep.mubr.bf16.mxu0 0
      %4895 = vmatmul.mubr.bf16.gmra.mrb[0].mxu0 %v821
      %v4896 = vpop.f32.mrb[0].mxu0
      %v4897 = vadd.f32 %v4620, %v4896
      %v4898 = vpop.f32.mrb[0].mxu0
      %v4899 = vpop.f32.mrb[0].mxu0
      %v4900 = vadd.f32 %v4620, %v4899
      %v4901 = vpop.f32.mrb[0].mxu0
      %4902 = vmatprep.mubr.bf16.mxu0 0
      %4903 = vmatmul.mubr.bf16.gmra.mrb[0].mxu0 %v822
      %v4904 = vpop.f32.mrb[0].mxu0
      %v4905 = vadd.f32 %v4620, %v4904
      %v4906 = vpop.f32.mrb[0].mxu0
      %v4907 = vpop.f32.mrb[0].mxu0
      %v4908 = vadd.f32 %v4620, %v4907
      %v4909 = vpop.f32.mrb[0].mxu0
      %4910 = vmatprep.mubr.bf16.mxu0 0
      %4911 = vmatmul.mubr.bf16.gmra.mrb[0].mxu0 %v823
      %v4912 = vpop.f32.mrb[0].mxu0
      %v4913 = vadd.f32 %v4620, %v4912
      %v4914 = vpop.f32.mrb[0].mxu0
      %v4915 = vpop.f32.mrb[0].mxu0
      %v4916 = vadd.f32 %v4620, %v4915
      %v4917 = vpop.f32.mrb[0].mxu0
      %4918 = vmatprep.mubr.bf16.mxu0 0
      %4919 = vmatmul.mubr.bf16.gmra.mrb[0].mxu0 %v824
      %v4920 = vpop.f32.mrb[0].mxu0
      %v4921 = vadd.f32 %v4620, %v4920
      %v4922 = vpop.f32.mrb[0].mxu0
      %v4923 = vpop.f32.mrb[0].mxu0
      %v4924 = vadd.f32 %v4620, %v4923
      %v4925 = vpop.f32.mrb[0].mxu0
      %4926 = vmatprep.mubr.bf16.mxu0 0
      %4927 = vmatmul.mubr.bf16.gmra.mrb[0].mxu0 %v825
      %v4928 = vpop.f32.mrb[0].mxu0
      %v4929 = vadd.f32 %v4620, %v4928
      %v4930 = vpop.f32.mrb[0].mxu0
      %v4931 = vpop.f32.mrb[0].mxu0
      %v4932 = vadd.f32 %v4620, %v4931
      %v4933 = vpop.f32.mrb[0].mxu0
      %4934 = vmatprep.mubr.bf16.mxu0 0
      %4935 = vmatmul.mubr.bf16.gmra.mrb[0].mxu0 %v826
      %v4936 = vpop.f32.mrb[0].mxu0
      %v4937 = vadd.f32 %v4620, %v4936
      %v4938 = vpop.f32.mrb[0].mxu0
      %v4939 = vpop.f32.mrb[0].mxu0
      %v4940 = vadd.f32 %v4620, %v4939
      %v4941 = vpop.f32.mrb[0].mxu0
      %4942 = vmatprep.mubr.bf16.mxu0 0
      %4943 = vmatmul.mubr.bf16.gmra.mrb[0].mxu0 %v827
      %v4944 = vpop.f32.mrb[0].mxu0
      %v4945 = vadd.f32 %v4620, %v4944
      %v4946 = vpop.f32.mrb[0].mxu0
      %v4947 = vpop.f32.mrb[0].mxu0
      %v4948 = vadd.f32 %v4620, %v4947
      %v4949 = vpop.f32.mrb[0].mxu0
      %4950 = vmatprep.mubr.bf16.mxu0 0
      %4951 = vmatmul.mubr.bf16.gmra.mrb[0].mxu0 %v828
      %v4952 = vpop.f32.mrb[0].mxu0
      %v4953 = vadd.f32 %v4620, %v4952
      %v4954 = vpop.f32.mrb[0].mxu0
      %v4955 = vpop.f32.mrb[0].mxu0
      %v4956 = vadd.f32 %v4620, %v4955
      %v4957 = vpop.f32.mrb[0].mxu0
      %4958 = vdwg.mxu0
      %v4991 = vunpack.c.l.b16 %v3847
      %v4992 = vunpack.c.l.b16 %v3848
      %v4993 = vunpack.c.l.b16 %v3849
      %v4994 = vunpack.c.l.b16 %v3850
      %v4995 = vunpack.c.l.b16 %v3851
      %v4996 = vunpack.c.l.b16 %v3852
      %v4997 = vunpack.c.l.b16 %v3853
      %v4998 = vunpack.c.l.b16 %v3854
      %v4999 = vunpack.c.l.b16 %v3855
      %v5000 = vunpack.c.l.b16 %v3856
      %v5001 = vunpack.c.l.b16 %v3857
      %v5002 = vunpack.c.l.b16 %v3858
      %v5003 = vunpack.c.l.b16 %v3859
      %v5004 = vunpack.c.l.b16 %v3860
      %v5005 = vunpack.c.l.b16 %v3861
      %v5006 = vunpack.c.l.b16 %v3862
      %v5007 = vunpack.c.l.b16 %v3863
      %v5008 = vunpack.c.l.b16 %v3864
      %v5009 = vunpack.c.l.b16 %v3865
      %v5010 = vunpack.c.l.b16 %v3866
      %v5011 = vunpack.c.l.b16 %v3867
      %v5012 = vunpack.c.l.b16 %v3868
      %v5013 = vunpack.c.l.b16 %v3869
      %v5014 = vunpack.c.l.b16 %v3870
      %v5015 = vunpack.c.l.b16 %v3871
      %v5016 = vunpack.c.l.b16 %v3872
      %v5017 = vunpack.c.l.b16 %v3873
      %v5018 = vunpack.c.l.b16 %v3874
      %v5019 = vunpack.c.l.b16 %v3875
      %v5020 = vunpack.c.l.b16 %v3876
      %v5021 = vunpack.c.l.b16 %v3877
      %v5022 = vunpack.c.l.b16 %v3878
      %v5023 = vpack.c.b16 %v4992, %v4991
      %v5024 = vpack.c.b16 %v4994, %v4993
      %v5025 = vpack.c.b16 %v4996, %v4995
      %v5026 = vpack.c.b16 %v4998, %v4997
      %v5027 = vpack.c.b16 %v5000, %v4999
      %v5028 = vpack.c.b16 %v5002, %v5001
      %v5029 = vpack.c.b16 %v5004, %v5003
      %v5030 = vpack.c.b16 %v5006, %v5005
      %v5031 = vpack.c.b16 %v5008, %v5007
      %v5032 = vpack.c.b16 %v5010, %v5009
      %v5033 = vpack.c.b16 %v5012, %v5011
      %v5034 = vpack.c.b16 %v5014, %v5013
      %v5035 = vpack.c.b16 %v5016, %v5015
      %v5036 = vpack.c.b16 %v5018, %v5017
      %v5037 = vpack.c.b16 %v5020, %v5019
      %v5038 = vpack.c.b16 %v5022, %v5021
      %5055 = vmatprep.subr.bf16.mxu0 0
      %5056 = vmatpush1.bf16.msra.mxu0 %v5023
      %5057 = vmatprep.subr.bf16.mxu0 0
      %5058 = vmatpush1.bf16.msra.mxu0 %v5024
      %5059 = vmatprep.subr.bf16.mxu0 0
      %5060 = vmatpush1.bf16.msra.mxu0 %v5025
      %5061 = vmatprep.subr.bf16.mxu0 0
      %5062 = vmatpush1.bf16.msra.mxu0 %v5026
      %5063 = vmatprep.subr.bf16.mxu0 0
      %5064 = vmatpush1.bf16.msra.mxu0 %v5027
      %5065 = vmatprep.subr.bf16.mxu0 0
      %5066 = vmatpush1.bf16.msra.mxu0 %v5028
      %5067 = vmatprep.subr.bf16.mxu0 0
      %5068 = vmatpush1.bf16.msra.mxu0 %v5029
      %5069 = vmatprep.subr.bf16.mxu0 0
      %5070 = vmatpush1.bf16.msra.mxu0 %v5030
      %5071 = vmatprep.subr.bf16.mxu0 0
      %5072 = vmatpush1.bf16.msra.mxu0 %v5031
      %5073 = vmatprep.subr.bf16.mxu0 0
      %5074 = vmatpush1.bf16.msra.mxu0 %v5032
      %5075 = vmatprep.subr.bf16.mxu0 0
      %5076 = vmatpush1.bf16.msra.mxu0 %v5033
      %5077 = vmatprep.subr.bf16.mxu0 0
      %5078 = vmatpush1.bf16.msra.mxu0 %v5034
      %5079 = vmatprep.subr.bf16.mxu0 0
      %5080 = vmatpush1.bf16.msra.mxu0 %v5035
      %5081 = vmatprep.subr.bf16.mxu0 0
      %5082 = vmatpush1.bf16.msra.mxu0 %v5036
      %5083 = vmatprep.subr.bf16.mxu0 0
      %5084 = vmatpush1.bf16.msra.mxu0 %v5037
      %5085 = vmatprep.subr.bf16.mxu0 0
      %5086 = vmatpush1.bf16.msra.mxu0 %v5038
      %5087 = vmatprep.mubr.bf16.mxu0 %v3784
      %5088 = vmatmul.mubr.bf16.gmra.mrb[0].mxu0 %v3783
      %v5089 = vpop.f32.mrb[0].mxu0
      %v5090 = vadd.f32 %v3985, %v5089
      %v5091 = vpop.f32.mrb[0].mxu0
      %v5092 = vpop.f32.mrb[0].mxu0
      %v5093 = vadd.f32 %v3988, %v5092
      %v5094 = vpop.f32.mrb[0].mxu0
      %5095 = vmatprep.mubr.bf16.mxu0 %v3786
      %5096 = vmatmul.mubr.bf16.gmra.mrb[0].mxu0 %v3785
      %v5097 = vpop.f32.mrb[0].mxu0
      %v5098 = vadd.f32 %v3993, %v5097
      %v5099 = vpop.f32.mrb[0].mxu0
      %v5100 = vpop.f32.mrb[0].mxu0
      %v5101 = vadd.f32 %v3996, %v5100
      %v5102 = vpop.f32.mrb[0].mxu0
      %5103 = vmatprep.mubr.bf16.mxu0 %v3788
      %5104 = vmatmul.mubr.bf16.gmra.mrb[0].mxu0 %v3787
      %v5105 = vpop.f32.mrb[0].mxu0
      %v5106 = vadd.f32 %v4001, %v5105
      %v5107 = vpop.f32.mrb[0].mxu0
      %v5108 = vpop.f32.mrb[0].mxu0
      %v5109 = vadd.f32 %v4004, %v5108
      %v5110 = vpop.f32.mrb[0].mxu0
      %5111 = vmatprep.mubr.bf16.mxu0 %v3790
      %5112 = vmatmul.mubr.bf16.gmra.mrb[0].mxu0 %v3789
      %v5113 = vpop.f32.mrb[0].mxu0
      %v5114 = vadd.f32 %v4009, %v5113
      %v5115 = vpop.f32.mrb[0].mxu0
      %v5116 = vpop.f32.mrb[0].mxu0
      %v5117 = vadd.f32 %v4012, %v5116
      %v5118 = vpop.f32.mrb[0].mxu0
      %5119 = vmatprep.mubr.bf16.mxu0 %v3792
      %5120 = vmatmul.mubr.bf16.gmra.mrb[0].mxu0 %v3791
      %v5121 = vpop.f32.mrb[0].mxu0
      %v5122 = vadd.f32 %v4017, %v5121
      %v5123 = vpop.f32.mrb[0].mxu0
      %v5124 = vpop.f32.mrb[0].mxu0
      %v5125 = vadd.f32 %v4020, %v5124
      %v5126 = vpop.f32.mrb[0].mxu0
      %5127 = vmatprep.mubr.bf16.mxu0 %v3794
      %5128 = vmatmul.mubr.bf16.gmra.mrb[0].mxu0 %v3793
      %v5129 = vpop.f32.mrb[0].mxu0
      %v5130 = vadd.f32 %v4025, %v5129
      %v5131 = vpop.f32.mrb[0].mxu0
      %v5132 = vpop.f32.mrb[0].mxu0
      %v5133 = vadd.f32 %v4028, %v5132
      %v5134 = vpop.f32.mrb[0].mxu0
      %5135 = vmatprep.mubr.bf16.mxu0 %v3796
      %5136 = vmatmul.mubr.bf16.gmra.mrb[0].mxu0 %v3795
      %v5137 = vpop.f32.mrb[0].mxu0
      %v5138 = vadd.f32 %v4033, %v5137
      %v5139 = vpop.f32.mrb[0].mxu0
      %v5140 = vpop.f32.mrb[0].mxu0
      %v5141 = vadd.f32 %v4036, %v5140
      %v5142 = vpop.f32.mrb[0].mxu0
      %5143 = vmatprep.mubr.bf16.mxu0 %v3798
      %5144 = vmatmul.mubr.bf16.gmra.mrb[0].mxu0 %v3797
      %v5145 = vpop.f32.mrb[0].mxu0
      %v5146 = vadd.f32 %v4041, %v5145
      %v5147 = vpop.f32.mrb[0].mxu0
      %v5148 = vpop.f32.mrb[0].mxu0
      %v5149 = vadd.f32 %v4044, %v5148
      %v5150 = vpop.f32.mrb[0].mxu0
      %5151 = vmatprep.mubr.bf16.mxu0 %v3800
      %5152 = vmatmul.mubr.bf16.gmra.mrb[0].mxu0 %v3799
      %v5153 = vpop.f32.mrb[0].mxu0
      %v5154 = vadd.f32 %v4049, %v5153
      %v5155 = vpop.f32.mrb[0].mxu0
      %v5156 = vpop.f32.mrb[0].mxu0
      %v5157 = vadd.f32 %v4052, %v5156
      %v5158 = vpop.f32.mrb[0].mxu0
      %5159 = vmatprep.mubr.bf16.mxu0 %v3802
      %5160 = vmatmul.mubr.bf16.gmra.mrb[0].mxu0 %v3801
      %v5161 = vpop.f32.mrb[0].mxu0
      %v5162 = vadd.f32 %v4057, %v5161
      %v5163 = vpop.f32.mrb[0].mxu0
      %v5164 = vpop.f32.mrb[0].mxu0
      %v5165 = vadd.f32 %v4060, %v5164
      %v5166 = vpop.f32.mrb[0].mxu0
      %5167 = vmatprep.mubr.bf16.mxu0 %v3804
      %5168 = vmatmul.mubr.bf16.gmra.mrb[0].mxu0 %v3803
      %v5169 = vpop.f32.mrb[0].mxu0
      %v5170 = vadd.f32 %v4065, %v5169
      %v5171 = vpop.f32.mrb[0].mxu0
      %v5172 = vpop.f32.mrb[0].mxu0
      %v5173 = vadd.f32 %v4068, %v5172
      %v5174 = vpop.f32.mrb[0].mxu0
      %5175 = vmatprep.mubr.bf16.mxu0 %v3806
      %5176 = vmatmul.mubr.bf16.gmra.mrb[0].mxu0 %v3805
      %v5177 = vpop.f32.mrb[0].mxu0
      %v5178 = vadd.f32 %v4073, %v5177
      %v5179 = vpop.f32.mrb[0].mxu0
      %v5180 = vpop.f32.mrb[0].mxu0
      %v5181 = vadd.f32 %v4076, %v5180
      %v5182 = vpop.f32.mrb[0].mxu0
      %5183 = vmatprep.mubr.bf16.mxu0 %v3808
      %5184 = vmatmul.mubr.bf16.gmra.mrb[0].mxu0 %v3807
      %v5185 = vpop.f32.mrb[0].mxu0
      %v5186 = vadd.f32 %v4081, %v5185
      %v5187 = vpop.f32.mrb[0].mxu0
      %v5188 = vpop.f32.mrb[0].mxu0
      %v5189 = vadd.f32 %v4084, %v5188
      %v5190 = vpop.f32.mrb[0].mxu0
      %5191 = vmatprep.mubr.bf16.mxu0 %v3810
      %5192 = vmatmul.mubr.bf16.gmra.mrb[0].mxu0 %v3809
      %v5193 = vpop.f32.mrb[0].mxu0
      %v5194 = vadd.f32 %v4089, %v5193
      %v5195 = vpop.f32.mrb[0].mxu0
      %v5196 = vpop.f32.mrb[0].mxu0
      %v5197 = vadd.f32 %v4092, %v5196
      %v5198 = vpop.f32.mrb[0].mxu0
      %5199 = vmatprep.mubr.bf16.mxu0 %v3812
      %5200 = vmatmul.mubr.bf16.gmra.mrb[0].mxu0 %v3811
      %v5201 = vpop.f32.mrb[0].mxu0
      %v5202 = vadd.f32 %v4097, %v5201
      %v5203 = vpop.f32.mrb[0].mxu0
      %v5204 = vpop.f32.mrb[0].mxu0
      %v5205 = vadd.f32 %v4100, %v5204
      %v5206 = vpop.f32.mrb[0].mxu0
      %5207 = vmatprep.mubr.bf16.mxu0 %v3814
      %5208 = vmatmul.mubr.bf16.gmra.mrb[0].mxu0 %v3813
      %v5209 = vpop.f32.mrb[0].mxu0
      %v5210 = vadd.f32 %v4105, %v5209
      %v5211 = vpop.f32.mrb[0].mxu0
      %v5212 = vpop.f32.mrb[0].mxu0
      %v5213 = vadd.f32 %v4108, %v5212
      %v5214 = vpop.f32.mrb[0].mxu0
      %5215 = vmatprep.mubr.bf16.mxu0 %v3816
      %5216 = vmatmul.mubr.bf16.gmra.mrb[0].mxu0 %v3815
      %v5217 = vpop.f32.mrb[0].mxu0
      %v5218 = vadd.f32 %v4113, %v5217
      %v5219 = vpop.f32.mrb[0].mxu0
      %v5220 = vpop.f32.mrb[0].mxu0
      %v5221 = vadd.f32 %v4116, %v5220
      %v5222 = vpop.f32.mrb[0].mxu0
      %5223 = vmatprep.mubr.bf16.mxu0 %v3818
      %5224 = vmatmul.mubr.bf16.gmra.mrb[0].mxu0 %v3817
      %v5225 = vpop.f32.mrb[0].mxu0
      %v5226 = vadd.f32 %v4121, %v5225
      %v5227 = vpop.f32.mrb[0].mxu0
      %v5228 = vpop.f32.mrb[0].mxu0
      %v5229 = vadd.f32 %v4124, %v5228
      %v5230 = vpop.f32.mrb[0].mxu0
      %5231 = vmatprep.mubr.bf16.mxu0 %v3820
      %5232 = vmatmul.mubr.bf16.gmra.mrb[0].mxu0 %v3819
      %v5233 = vpop.f32.mrb[0].mxu0
      %v5234 = vadd.f32 %v4129, %v5233
      %v5235 = vpop.f32.mrb[0].mxu0
      %v5236 = vpop.f32.mrb[0].mxu0
      %v5237 = vadd.f32 %v4132, %v5236
      %v5238 = vpop.f32.mrb[0].mxu0
      %5239 = vmatprep.mubr.bf16.mxu0 %v3822
      %5240 = vmatmul.mubr.bf16.gmra.mrb[0].mxu0 %v3821
      %v5241 = vpop.f32.mrb[0].mxu0
      %v5242 = vadd.f32 %v4137, %v5241
      %v5243 = vpop.f32.mrb[0].mxu0
      %v5244 = vpop.f32.mrb[0].mxu0
      %v5245 = vadd.f32 %v4140, %v5244
      %v5246 = vpop.f32.mrb[0].mxu0
      %5247 = vmatprep.mubr.bf16.mxu0 %v3824
      %5248 = vmatmul.mubr.bf16.gmra.mrb[0].mxu0 %v3823
      %v5249 = vpop.f32.mrb[0].mxu0
      %v5250 = vadd.f32 %v4145, %v5249
      %v5251 = vpop.f32.mrb[0].mxu0
      %v5252 = vpop.f32.mrb[0].mxu0
      %v5253 = vadd.f32 %v4148, %v5252
      %v5254 = vpop.f32.mrb[0].mxu0
      %5255 = vmatprep.mubr.bf16.mxu0 %v3826
      %5256 = vmatmul.mubr.bf16.gmra.mrb[0].mxu0 %v3825
      %v5257 = vpop.f32.mrb[0].mxu0
      %v5258 = vadd.f32 %v4153, %v5257
      %v5259 = vpop.f32.mrb[0].mxu0
      %v5260 = vpop.f32.mrb[0].mxu0
      %v5261 = vadd.f32 %v4156, %v5260
      %v5262 = vpop.f32.mrb[0].mxu0
      %5263 = vmatprep.mubr.bf16.mxu0 %v3828
      %5264 = vmatmul.mubr.bf16.gmra.mrb[0].mxu0 %v3827
      %v5265 = vpop.f32.mrb[0].mxu0
      %v5266 = vadd.f32 %v4161, %v5265
      %v5267 = vpop.f32.mrb[0].mxu0
      %v5268 = vpop.f32.mrb[0].mxu0
      %v5269 = vadd.f32 %v4164, %v5268
      %v5270 = vpop.f32.mrb[0].mxu0
      %5271 = vmatprep.mubr.bf16.mxu0 %v3830
      %5272 = vmatmul.mubr.bf16.gmra.mrb[0].mxu0 %v3829
      %v5273 = vpop.f32.mrb[0].mxu0
      %v5274 = vadd.f32 %v4169, %v5273
      %v5275 = vpop.f32.mrb[0].mxu0
      %v5276 = vpop.f32.mrb[0].mxu0
      %v5277 = vadd.f32 %v4172, %v5276
      %v5278 = vpop.f32.mrb[0].mxu0
      %5279 = vmatprep.mubr.bf16.mxu0 %v3832
      %5280 = vmatmul.mubr.bf16.gmra.mrb[0].mxu0 %v3831
      %v5281 = vpop.f32.mrb[0].mxu0
      %v5282 = vadd.f32 %v4177, %v5281
      %v5283 = vpop.f32.mrb[0].mxu0
      %v5284 = vpop.f32.mrb[0].mxu0
      %v5285 = vadd.f32 %v4180, %v5284
      %v5286 = vpop.f32.mrb[0].mxu0
      %5287 = vmatprep.mubr.bf16.mxu0 %v3834
      %5288 = vmatmul.mubr.bf16.gmra.mrb[0].mxu0 %v3833
      %v5289 = vpop.f32.mrb[0].mxu0
      %v5290 = vadd.f32 %v4185, %v5289
      %v5291 = vpop.f32.mrb[0].mxu0
      %v5292 = vpop.f32.mrb[0].mxu0
      %v5293 = vadd.f32 %v4188, %v5292
      %v5294 = vpop.f32.mrb[0].mxu0
      %5295 = vmatprep.mubr.bf16.mxu0 %v3836
      %5296 = vmatmul.mubr.bf16.gmra.mrb[0].mxu0 %v3835
      %v5297 = vpop.f32.mrb[0].mxu0
      %v5298 = vadd.f32 %v4193, %v5297
      %v5299 = vpop.f32.mrb[0].mxu0
      %v5300 = vpop.f32.mrb[0].mxu0
      %v5301 = vadd.f32 %v4196, %v5300
      %v5302 = vpop.f32.mrb[0].mxu0
      %5303 = vmatprep.mubr.bf16.mxu0 %v3838
      %5304 = vmatmul.mubr.bf16.gmra.mrb[0].mxu0 %v3837
      %v5305 = vpop.f32.mrb[0].mxu0
      %v5306 = vadd.f32 %v4201, %v5305
      %v5307 = vpop.f32.mrb[0].mxu0
      %v5308 = vpop.f32.mrb[0].mxu0
      %v5309 = vadd.f32 %v4204, %v5308
      %v5310 = vpop.f32.mrb[0].mxu0
      %5311 = vmatprep.mubr.bf16.mxu0 %v3840
      %5312 = vmatmul.mubr.bf16.gmra.mrb[0].mxu0 %v3839
      %v5313 = vpop.f32.mrb[0].mxu0
      %v5314 = vadd.f32 %v4209, %v5313
      %v5315 = vpop.f32.mrb[0].mxu0
      %v5316 = vpop.f32.mrb[0].mxu0
      %v5317 = vadd.f32 %v4212, %v5316
      %v5318 = vpop.f32.mrb[0].mxu0
      %5319 = vmatprep.mubr.bf16.mxu0 %v3842
      %5320 = vmatmul.mubr.bf16.gmra.mrb[0].mxu0 %v3841
      %v5321 = vpop.f32.mrb[0].mxu0
      %v5322 = vadd.f32 %v4217, %v5321
      %v5323 = vpop.f32.mrb[0].mxu0
      %v5324 = vpop.f32.mrb[0].mxu0
      %v5325 = vadd.f32 %v4220, %v5324
      %v5326 = vpop.f32.mrb[0].mxu0
      %5327 = vmatprep.mubr.bf16.mxu0 %v3844
      %5328 = vmatmul.mubr.bf16.gmra.mrb[0].mxu0 %v3843
      %v5329 = vpop.f32.mrb[0].mxu0
      %v5330 = vadd.f32 %v4225, %v5329
      %v5331 = vpop.f32.mrb[0].mxu0
      %v5332 = vpop.f32.mrb[0].mxu0
      %v5333 = vadd.f32 %v4228, %v5332
      %v5334 = vpop.f32.mrb[0].mxu0
      %5335 = vmatprep.mubr.bf16.mxu0 %v3846
      %5336 = vmatmul.mubr.bf16.gmra.mrb[0].mxu0 %v3845
      %v5337 = vpop.f32.mrb[0].mxu0
      %v5338 = vadd.f32 %v4233, %v5337
      %v5339 = vpop.f32.mrb[0].mxu0
      %v5340 = vpop.f32.mrb[0].mxu0
      %v5341 = vadd.f32 %v4236, %v5340
      %v5342 = vpop.f32.mrb[0].mxu0
      %5343 = vdwg.mxu0
      %v5344 = vtanh.pop %v5090
      %v5345 = vtanh.pop %v5093
      %v5346 = vtanh.pop %v5098
      %v5347 = vtanh.pop %v5101
      %v5348 = vtanh.pop %v5106
      %v5349 = vtanh.pop %v5109
      %v5350 = vtanh.pop %v5114
      %v5351 = vtanh.pop %v5117
      %v5352 = vtanh.pop %v5122
      %v5353 = vtanh.pop %v5125
      %v5354 = vtanh.pop %v5130
      %v5355 = vtanh.pop %v5133
      %v5356 = vtanh.pop %v5138
      %v5357 = vtanh.pop %v5141
      %v5358 = vtanh.pop %v5146
      %v5359 = vtanh.pop %v5149
      %v5360 = vtanh.pop %v5154
      %v5361 = vtanh.pop %v5157
      %v5362 = vtanh.pop %v5162
      %v5363 = vtanh.pop %v5165
      %v5364 = vtanh.pop %v5170
      %v5365 = vtanh.pop %v5173
      %v5366 = vtanh.pop %v5178
      %v5367 = vtanh.pop %v5181
      %v5368 = vtanh.pop %v5186
      %v5369 = vtanh.pop %v5189
      %v5370 = vtanh.pop %v5194
      %v5371 = vtanh.pop %v5197
      %v5372 = vtanh.pop %v5202
      %v5373 = vtanh.pop %v5205
      %v5374 = vtanh.pop %v5210
      %v5375 = vtanh.pop %v5213
      %v5376 = vtanh.pop %v5218
      %v5377 = vtanh.pop %v5221
      %v5378 = vtanh.pop %v5226
      %v5379 = vtanh.pop %v5229
      %v5380 = vtanh.pop %v5234
      %v5381 = vtanh.pop %v5237
      %v5382 = vtanh.pop %v5242
      %v5383 = vtanh.pop %v5245
      %v5384 = vtanh.pop %v5250
      %v5385 = vtanh.pop %v5253
      %v5386 = vtanh.pop %v5258
      %v5387 = vtanh.pop %v5261
      %v5388 = vtanh.pop %v5266
      %v5389 = vtanh.pop %v5269
      %v5390 = vtanh.pop %v5274
      %v5391 = vtanh.pop %v5277
      %v5392 = vtanh.pop %v5282
      %v5393 = vtanh.pop %v5285
      %v5394 = vtanh.pop %v5290
      %v5395 = vtanh.pop %v5293
      %v5396 = vtanh.pop %v5298
      %v5397 = vtanh.pop %v5301
      %v5398 = vtanh.pop %v5306
      %v5399 = vtanh.pop %v5309
      %v5400 = vtanh.pop %v5314
      %v5401 = vtanh.pop %v5317
      %v5402 = vtanh.pop %v5322
      %v5403 = vtanh.pop %v5325
      %v5404 = vtanh.pop %v5330
      %v5405 = vtanh.pop %v5333
      %v5406 = vtanh.pop %v5338
      %v5407 = vtanh.pop %v5341
      %v5408 = vmul.f32 %v5344, %v4345
      %v5409 = vmul.f32 %v5345, %v4348
      %v5410 = vmul.f32 %v5346, %v4353
      %v5411 = vmul.f32 %v5347, %v4356
      %v5412 = vmul.f32 %v5348, %v4361
      %v5413 = vmul.f32 %v5349, %v4364
      %v5414 = vmul.f32 %v5350, %v4369
      %v5415 = vmul.f32 %v5351, %v4372
      %v5416 = vmul.f32 %v5352, %v4377
      %v5417 = vmul.f32 %v5353, %v4380
      %v5418 = vmul.f32 %v5354, %v4385
      %v5419 = vmul.f32 %v5355, %v4388
      %v5420 = vmul.f32 %v5356, %v4393
      %v5421 = vmul.f32 %v5357, %v4396
      %v5422 = vmul.f32 %v5358, %v4401
      %v5423 = vmul.f32 %v5359, %v4404
      %v5424 = vmul.f32 %v5360, %v4409
      %v5425 = vmul.f32 %v5361, %v4412
      %v5426 = vmul.f32 %v5362, %v4417
      %v5427 = vmul.f32 %v5363, %v4420
      %v5428 = vmul.f32 %v5364, %v4425
      %v5429 = vmul.f32 %v5365, %v4428
      %v5430 = vmul.f32 %v5366, %v4433
      %v5431 = vmul.f32 %v5367, %v4436
      %v5432 = vmul.f32 %v5368, %v4441
      %v5433 = vmul.f32 %v5369, %v4444
      %v5434 = vmul.f32 %v5370, %v4449
      %v5435 = vmul.f32 %v5371, %v4452
      %v5436 = vmul.f32 %v5372, %v4457
      %v5437 = vmul.f32 %v5373, %v4460
      %v5438 = vmul.f32 %v5374, %v4465
      %v5439 = vmul.f32 %v5375, %v4468
      %v5440 = vmul.f32 %v5376, %v4473
      %v5441 = vmul.f32 %v5377, %v4476
      %v5442 = vmul.f32 %v5378, %v4481
      %v5443 = vmul.f32 %v5379, %v4484
      %v5444 = vmul.f32 %v5380, %v4489
      %v5445 = vmul.f32 %v5381, %v4492
      %v5446 = vmul.f32 %v5382, %v4497
      %v5447 = vmul.f32 %v5383, %v4500
      %v5448 = vmul.f32 %v5384, %v4505
      %v5449 = vmul.f32 %v5385, %v4508
      %v5450 = vmul.f32 %v5386, %v4513
      %v5451 = vmul.f32 %v5387, %v4516
      %v5452 = vmul.f32 %v5388, %v4521
      %v5453 = vmul.f32 %v5389, %v4524
      %v5454 = vmul.f32 %v5390, %v4529
      %v5455 = vmul.f32 %v5391, %v4532
      %v5456 = vmul.f32 %v5392, %v4537
      %v5457 = vmul.f32 %v5393, %v4540
      %v5458 = vmul.f32 %v5394, %v4545
      %v5459 = vmul.f32 %v5395, %v4548
      %v5460 = vmul.f32 %v5396, %v4553
      %v5461 = vmul.f32 %v5397, %v4556
      %v5462 = vmul.f32 %v5398, %v4561
      %v5463 = vmul.f32 %v5399, %v4564
      %v5464 = vmul.f32 %v5400, %v4569
      %v5465 = vmul.f32 %v5401, %v4572
      %v5466 = vmul.f32 %v5402, %v4577
      %v5467 = vmul.f32 %v5403, %v4580
      %v5468 = vmul.f32 %v5404, %v4585
      %v5469 = vmul.f32 %v5405, %v4588
      %v5470 = vmul.f32 %v5406, %v4593
      %v5471 = vmul.f32 %v5407, %v4596
      %vm5472 = vcmask 523264
      %v5473 = vsel %vm5472, %v5408, 0.0
      %5474 = vadd.xlane.f32.xlu0 %v5473
      %v5475 = vpop.xlane.xlu0 %5474
      %v5476 = vsel %vm5472, %v5409, 0.0
      %5477 = vadd.xlane.f32.xlu0 %v5476
      %v5478 = vpop.xlane.xlu0 %5477
      %v5479 = vsel %vm5472, %v5410, 0.0
      %5480 = vadd.xlane.f32.xlu0 %v5479
      %v5481 = vpop.xlane.xlu0 %5480
      %v5482 = vsel %vm5472, %v5411, 0.0
      %5483 = vadd.xlane.f32.xlu0 %v5482
      %v5484 = vpop.xlane.xlu0 %5483
      %v5485 = vsel %vm5472, %v5412, 0.0
      %5486 = vadd.xlane.f32.xlu0 %v5485
      %v5487 = vpop.xlane.xlu0 %5486
      %v5488 = vsel %vm5472, %v5413, 0.0
      %5489 = vadd.xlane.f32.xlu0 %v5488
      %v5490 = vpop.xlane.xlu0 %5489
      %v5491 = vsel %vm5472, %v5414, 0.0
      %5492 = vadd.xlane.f32.xlu0 %v5491
      %v5493 = vpop.xlane.xlu0 %5492
      %v5494 = vsel %vm5472, %v5415, 0.0
      %5495 = vadd.xlane.f32.xlu0 %v5494
      %v5496 = vpop.xlane.xlu0 %5495
      %v5497 = vsel %vm5472, %v5416, 0.0
      %5498 = vadd.xlane.f32.xlu0 %v5497
      %v5499 = vpop.xlane.xlu0 %5498
      %v5500 = vsel %vm5472, %v5417, 0.0
      %5501 = vadd.xlane.f32.xlu0 %v5500
      %v5502 = vpop.xlane.xlu0 %5501
      %v5503 = vsel %vm5472, %v5418, 0.0
      %5504 = vadd.xlane.f32.xlu0 %v5503
      %v5505 = vpop.xlane.xlu0 %5504
      %v5506 = vsel %vm5472, %v5419, 0.0
      %5507 = vadd.xlane.f32.xlu0 %v5506
      %v5508 = vpop.xlane.xlu0 %5507
      %v5509 = vsel %vm5472, %v5420, 0.0
      %5510 = vadd.xlane.f32.xlu0 %v5509
      %v5511 = vpop.xlane.xlu0 %5510
      %v5512 = vsel %vm5472, %v5421, 0.0
      %5513 = vadd.xlane.f32.xlu0 %v5512
      %v5514 = vpop.xlane.xlu0 %5513
      %v5515 = vsel %vm5472, %v5422, 0.0
      %5516 = vadd.xlane.f32.xlu0 %v5515
      %v5517 = vpop.xlane.xlu0 %5516
      %v5518 = vsel %vm5472, %v5423, 0.0
      %5519 = vadd.xlane.f32.xlu0 %v5518
      %v5520 = vpop.xlane.xlu0 %5519
      %v5521 = vsel %vm5472, %v5424, 0.0
      %5522 = vadd.xlane.f32.xlu0 %v5521
      %v5523 = vpop.xlane.xlu0 %5522
      %v5524 = vsel %vm5472, %v5425, 0.0
      %5525 = vadd.xlane.f32.xlu0 %v5524
      %v5526 = vpop.xlane.xlu0 %5525
      %v5527 = vsel %vm5472, %v5426, 0.0
      %5528 = vadd.xlane.f32.xlu0 %v5527
      %v5529 = vpop.xlane.xlu0 %5528
      %v5530 = vsel %vm5472, %v5427, 0.0
      %5531 = vadd.xlane.f32.xlu0 %v5530
      %v5532 = vpop.xlane.xlu0 %5531
      %v5533 = vsel %vm5472, %v5428, 0.0
      %5534 = vadd.xlane.f32.xlu0 %v5533
      %v5535 = vpop.xlane.xlu0 %5534
      %v5536 = vsel %vm5472, %v5429, 0.0
      %5537 = vadd.xlane.f32.xlu0 %v5536
      %v5538 = vpop.xlane.xlu0 %5537
      %v5539 = vsel %vm5472, %v5430, 0.0
      %5540 = vadd.xlane.f32.xlu0 %v5539
      %v5541 = vpop.xlane.xlu0 %5540
      %v5542 = vsel %vm5472, %v5431, 0.0
      %5543 = vadd.xlane.f32.xlu0 %v5542
      %v5544 = vpop.xlane.xlu0 %5543
      %v5545 = vsel %vm5472, %v5432, 0.0
      %5546 = vadd.xlane.f32.xlu0 %v5545
      %v5547 = vpop.xlane.xlu0 %5546
      %v5548 = vsel %vm5472, %v5433, 0.0
      %5549 = vadd.xlane.f32.xlu0 %v5548
      %v5550 = vpop.xlane.xlu0 %5549
      %v5551 = vsel %vm5472, %v5434, 0.0
      %5552 = vadd.xlane.f32.xlu0 %v5551
      %v5553 = vpop.xlane.xlu0 %5552
      %v5554 = vsel %vm5472, %v5435, 0.0
      %5555 = vadd.xlane.f32.xlu0 %v5554
      %v5556 = vpop.xlane.xlu0 %5555
      %v5557 = vsel %vm5472, %v5436, 0.0
      %5558 = vadd.xlane.f32.xlu0 %v5557
      %v5559 = vpop.xlane.xlu0 %5558
      %v5560 = vsel %vm5472, %v5437, 0.0
      %5561 = vadd.xlane.f32.xlu0 %v5560
      %v5562 = vpop.xlane.xlu0 %5561
      %v5563 = vsel %vm5472, %v5438, 0.0
      %5564 = vadd.xlane.f32.xlu0 %v5563
      %v5565 = vpop.xlane.xlu0 %5564
      %v5566 = vsel %vm5472, %v5439, 0.0
      %5567 = vadd.xlane.f32.xlu0 %v5566
      %v5568 = vpop.xlane.xlu0 %5567
      %v5569 = vsel %vm5472, %v5440, 0.0
      %5570 = vadd.xlane.f32.xlu0 %v5569
      %v5571 = vpop.xlane.xlu0 %5570
      %v5572 = vsel %vm5472, %v5441, 0.0
      %5573 = vadd.xlane.f32.xlu0 %v5572
      %v5574 = vpop.xlane.xlu0 %5573
      %v5575 = vsel %vm5472, %v5442, 0.0
      %5576 = vadd.xlane.f32.xlu0 %v5575
      %v5577 = vpop.xlane.xlu0 %5576
      %v5578 = vsel %vm5472, %v5443, 0.0
      %5579 = vadd.xlane.f32.xlu0 %v5578
      %v5580 = vpop.xlane.xlu0 %5579
      %v5581 = vsel %vm5472, %v5444, 0.0
      %5582 = vadd.xlane.f32.xlu0 %v5581
      %v5583 = vpop.xlane.xlu0 %5582
      %v5584 = vsel %vm5472, %v5445, 0.0
      %5585 = vadd.xlane.f32.xlu0 %v5584
      %v5586 = vpop.xlane.xlu0 %5585
      %v5587 = vsel %vm5472, %v5446, 0.0
      %5588 = vadd.xlane.f32.xlu0 %v5587
      %v5589 = vpop.xlane.xlu0 %5588
      %v5590 = vsel %vm5472, %v5447, 0.0
      %5591 = vadd.xlane.f32.xlu0 %v5590
      %v5592 = vpop.xlane.xlu0 %5591
      %v5593 = vsel %vm5472, %v5448, 0.0
      %5594 = vadd.xlane.f32.xlu0 %v5593
      %v5595 = vpop.xlane.xlu0 %5594
      %v5596 = vsel %vm5472, %v5449, 0.0
      %5597 = vadd.xlane.f32.xlu0 %v5596
      %v5598 = vpop.xlane.xlu0 %5597
      %v5599 = vsel %vm5472, %v5450, 0.0
      %5600 = vadd.xlane.f32.xlu0 %v5599
      %v5601 = vpop.xlane.xlu0 %5600
      %v5602 = vsel %vm5472, %v5451, 0.0
      %5603 = vadd.xlane.f32.xlu0 %v5602
      %v5604 = vpop.xlane.xlu0 %5603
      %v5605 = vsel %vm5472, %v5452, 0.0
      %5606 = vadd.xlane.f32.xlu0 %v5605
      %v5607 = vpop.xlane.xlu0 %5606
      %v5608 = vsel %vm5472, %v5453, 0.0
      %5609 = vadd.xlane.f32.xlu0 %v5608
      %v5610 = vpop.xlane.xlu0 %5609
      %v5611 = vsel %vm5472, %v5454, 0.0
      %5612 = vadd.xlane.f32.xlu0 %v5611
      %v5613 = vpop.xlane.xlu0 %5612
      %v5614 = vsel %vm5472, %v5455, 0.0
      %5615 = vadd.xlane.f32.xlu0 %v5614
      %v5616 = vpop.xlane.xlu0 %5615
      %v5617 = vsel %vm5472, %v5456, 0.0
      %5618 = vadd.xlane.f32.xlu0 %v5617
      %v5619 = vpop.xlane.xlu0 %5618
      %v5620 = vsel %vm5472, %v5457, 0.0
      %5621 = vadd.xlane.f32.xlu0 %v5620
      %v5622 = vpop.xlane.xlu0 %5621
      %v5623 = vsel %vm5472, %v5458, 0.0
      %5624 = vadd.xlane.f32.xlu0 %v5623
      %v5625 = vpop.xlane.xlu0 %5624
      %v5626 = vsel %vm5472, %v5459, 0.0
      %5627 = vadd.xlane.f32.xlu0 %v5626
      %v5628 = vpop.xlane.xlu0 %5627
      %v5629 = vsel %vm5472, %v5460, 0.0
      %5630 = vadd.xlane.f32.xlu0 %v5629
      %v5631 = vpop.xlane.xlu0 %5630
      %v5632 = vsel %vm5472, %v5461, 0.0
      %5633 = vadd.xlane.f32.xlu0 %v5632
      %v5634 = vpop.xlane.xlu0 %5633
      %v5635 = vsel %vm5472, %v5462, 0.0
      %5636 = vadd.xlane.f32.xlu0 %v5635
      %v5637 = vpop.xlane.xlu0 %5636
      %v5638 = vsel %vm5472, %v5463, 0.0
      %5639 = vadd.xlane.f32.xlu0 %v5638
      %v5640 = vpop.xlane.xlu0 %5639
      %v5641 = vsel %vm5472, %v5464, 0.0
      %5642 = vadd.xlane.f32.xlu0 %v5641
      %v5643 = vpop.xlane.xlu0 %5642
      %v5644 = vsel %vm5472, %v5465, 0.0
      %5645 = vadd.xlane.f32.xlu0 %v5644
      %v5646 = vpop.xlane.xlu0 %5645
      %v5647 = vsel %vm5472, %v5466, 0.0
      %5648 = vadd.xlane.f32.xlu0 %v5647
      %v5649 = vpop.xlane.xlu0 %5648
      %v5650 = vsel %vm5472, %v5467, 0.0
      %5651 = vadd.xlane.f32.xlu0 %v5650
      %v5652 = vpop.xlane.xlu0 %5651
      %v5653 = vsel %vm5472, %v5468, 0.0
      %5654 = vadd.xlane.f32.xlu0 %v5653
      %v5655 = vpop.xlane.xlu0 %5654
      %v5656 = vsel %vm5472, %v5469, 0.0
      %5657 = vadd.xlane.f32.xlu0 %v5656
      %v5658 = vpop.xlane.xlu0 %5657
      %v5659 = vsel %vm5472, %v5470, 0.0
      %5660 = vadd.xlane.f32.xlu0 %v5659
      %v5661 = vpop.xlane.xlu0 %5660
      %v5662 = vsel %vm5472, %v5471, 0.0
      %5663 = vadd.xlane.f32.xlu0 %v5662
      %v5664 = vpop.xlane.xlu0 %5663
      %v5665 = vadd.f32 %v5475, %v4705
      %v5666 = vadd.f32 %v5478, %v4708
      %v5667 = vadd.f32 %v5481, %v4713
      %v5668 = vadd.f32 %v5484, %v4716
      %v5669 = vadd.f32 %v5487, %v4721
      %v5670 = vadd.f32 %v5490, %v4724
      %v5671 = vadd.f32 %v5493, %v4729
      %v5672 = vadd.f32 %v5496, %v4732
      %v5673 = vadd.f32 %v5499, %v4737
      %v5674 = vadd.f32 %v5502, %v4740
      %v5675 = vadd.f32 %v5505, %v4745
      %v5676 = vadd.f32 %v5508, %v4748
      %v5677 = vadd.f32 %v5511, %v4753
      %v5678 = vadd.f32 %v5514, %v4756
      %v5679 = vadd.f32 %v5517, %v4761
      %v5680 = vadd.f32 %v5520, %v4764
      %v5681 = vadd.f32 %v5523, %v4769
      %v5682 = vadd.f32 %v5526, %v4772
      %v5683 = vadd.f32 %v5529, %v4777
      %v5684 = vadd.f32 %v5532, %v4780
      %v5685 = vadd.f32 %v5535, %v4785
      %v5686 = vadd.f32 %v5538, %v4788
      %v5687 = vadd.f32 %v5541, %v4793
      %v5688 = vadd.f32 %v5544, %v4796
      %v5689 = vadd.f32 %v5547, %v4801
      %v5690 = vadd.f32 %v5550, %v4804
      %v5691 = vadd.f32 %v5553, %v4809
      %v5692 = vadd.f32 %v5556, %v4812
      %v5693 = vadd.f32 %v5559, %v4817
      %v5694 = vadd.f32 %v5562, %v4820
      %v5695 = vadd.f32 %v5565, %v4825
      %v5696 = vadd.f32 %v5568, %v4828
      %v5697 = vadd.f32 %v5571, %v4833
      %v5698 = vadd.f32 %v5574, %v4836
      %v5699 = vadd.f32 %v5577, %v4841
      %v5700 = vadd.f32 %v5580, %v4844
      %v5701 = vadd.f32 %v5583, %v4849
      %v5702 = vadd.f32 %v5586, %v4852
      %v5703 = vadd.f32 %v5589, %v4857
      %v5704 = vadd.f32 %v5592, %v4860
      %v5705 = vadd.f32 %v5595, %v4865
      %v5706 = vadd.f32 %v5598, %v4868
      %v5707 = vadd.f32 %v5601, %v4873
      %v5708 = vadd.f32 %v5604, %v4876
      %v5709 = vadd.f32 %v5607, %v4881
      %v5710 = vadd.f32 %v5610, %v4884
      %v5711 = vadd.f32 %v5613, %v4889
      %v5712 = vadd.f32 %v5616, %v4892
      %v5713 = vadd.f32 %v5619, %v4897
      %v5714 = vadd.f32 %v5622, %v4900
      %v5715 = vadd.f32 %v5625, %v4905
      %v5716 = vadd.f32 %v5628, %v4908
      %v5717 = vadd.f32 %v5631, %v4913
      %v5718 = vadd.f32 %v5634, %v4916
      %v5719 = vadd.f32 %v5637, %v4921
      %v5720 = vadd.f32 %v5640, %v4924
      %v5721 = vadd.f32 %v5643, %v4929
      %v5722 = vadd.f32 %v5646, %v4932
      %v5723 = vadd.f32 %v5649, %v4937
      %v5724 = vadd.f32 %v5652, %v4940
      %v5725 = vadd.f32 %v5655, %v4945
      %v5726 = vadd.f32 %v5658, %v4948
      %v5727 = vadd.f32 %v5661, %v4953
      %v5728 = vadd.f32 %v5664, %v4956
      %vm5729 = vcmask 7168
      %5730 = vst.msk [vmem:[%s574] sm:$0xff] %vm5729, %v5665
      %5731 = vst.msk [vmem:[%s574 + $0x8] sm:$0xff] %vm5729, %v5666
      %5732 = vst.msk [vmem:[%s574 + $0x10] sm:$0xff] %vm5729, %v5667
      %5733 = vst.msk [vmem:[%s574 + $0x18] sm:$0xff] %vm5729, %v5668
      %5734 = vst.msk [vmem:[%s574 + $0x20] sm:$0xff] %vm5729, %v5669
      %5735 = vst.msk [vmem:[%s574 + $0x28] sm:$0xff] %vm5729, %v5670
      %5736 = vst.msk [vmem:[%s574 + $0x30] sm:$0xff] %vm5729, %v5671
      %5737 = vst.msk [vmem:[%s574 + $0x38] sm:$0xff] %vm5729, %v5672
      %5738 = vst.msk [vmem:[%s574 + $0x40] sm:$0xff] %vm5729, %v5673
      %5739 = vst.msk [vmem:[%s574 + $0x48] sm:$0xff] %vm5729, %v5674
      %5740 = vst.msk [vmem:[%s574 + $0x50] sm:$0xff] %vm5729, %v5675
      %5741 = vst.msk [vmem:[%s574 + $0x58] sm:$0xff] %vm5729, %v5676
      %5742 = vst.msk [vmem:[%s574 + $0x60] sm:$0xff] %vm5729, %v5677
      %5743 = vst.msk [vmem:[%s574 + $0x68] sm:$0xff] %vm5729, %v5678
      %5744 = vst.msk [vmem:[%s574 + $0x70] sm:$0xff] %vm5729, %v5679
      %5745 = vst.msk [vmem:[%s574 + $0x78] sm:$0xff] %vm5729, %v5680
      %5746 = vst.msk [vmem:[%s574 + $0x80] sm:$0xff] %vm5729, %v5681
      %5747 = vst.msk [vmem:[%s574 + $0x88] sm:$0xff] %vm5729, %v5682
      %5748 = vst.msk [vmem:[%s574 + $0x90] sm:$0xff] %vm5729, %v5683
      %5749 = vst.msk [vmem:[%s574 + $0x98] sm:$0xff] %vm5729, %v5684
      %5750 = vst.msk [vmem:[%s574 + $0xa0] sm:$0xff] %vm5729, %v5685
      %5751 = vst.msk [vmem:[%s574 + $0xa8] sm:$0xff] %vm5729, %v5686
      %5752 = vst.msk [vmem:[%s574 + $0xb0] sm:$0xff] %vm5729, %v5687
      %5753 = vst.msk [vmem:[%s574 + $0xb8] sm:$0xff] %vm5729, %v5688
      %5754 = vst.msk [vmem:[%s574 + $0xc0] sm:$0xff] %vm5729, %v5689
      %5755 = vst.msk [vmem:[%s574 + $0xc8] sm:$0xff] %vm5729, %v5690
      %5756 = vst.msk [vmem:[%s574 + $0xd0] sm:$0xff] %vm5729, %v5691
      %5757 = vst.msk [vmem:[%s574 + $0xd8] sm:$0xff] %vm5729, %v5692
      %5758 = vst.msk [vmem:[%s574 + $0xe0] sm:$0xff] %vm5729, %v5693
      %5759 = vst.msk [vmem:[%s574 + $0xe8] sm:$0xff] %vm5729, %v5694
      %5760 = vst.msk [vmem:[%s574 + $0xf0] sm:$0xff] %vm5729, %v5695
      %5761 = vst.msk [vmem:[%s574 + $0xf8] sm:$0xff] %vm5729, %v5696
      %5762 = vst.msk [vmem:[%s574 + $0x100] sm:$0xff] %vm5729, %v5697
      %5763 = vst.msk [vmem:[%s574 + $0x108] sm:$0xff] %vm5729, %v5698
      %5764 = vst.msk [vmem:[%s574 + $0x110] sm:$0xff] %vm5729, %v5699
      %5765 = vst.msk [vmem:[%s574 + $0x118] sm:$0xff] %vm5729, %v5700
      %5766 = vst.msk [vmem:[%s574 + $0x120] sm:$0xff] %vm5729, %v5701
      %5767 = vst.msk [vmem:[%s574 + $0x128] sm:$0xff] %vm5729, %v5702
      %5768 = vst.msk [vmem:[%s574 + $0x130] sm:$0xff] %vm5729, %v5703
      %5769 = vst.msk [vmem:[%s574 + $0x138] sm:$0xff] %vm5729, %v5704
      %5770 = vst.msk [vmem:[%s574 + $0x140] sm:$0xff] %vm5729, %v5705
      %5771 = vst.msk [vmem:[%s574 + $0x148] sm:$0xff] %vm5729, %v5706
      %5772 = vst.msk [vmem:[%s574 + $0x150] sm:$0xff] %vm5729, %v5707
      %5773 = vst.msk [vmem:[%s574 + $0x158] sm:$0xff] %vm5729, %v5708
      %5774 = vst.msk [vmem:[%s574 + $0x160] sm:$0xff] %vm5729, %v5709
      %5775 = vst.msk [vmem:[%s574 + $0x168] sm:$0xff] %vm5729, %v5710
      %5776 = vst.msk [vmem:[%s574 + $0x170] sm:$0xff] %vm5729, %v5711
      %5777 = vst.msk [vmem:[%s574 + $0x178] sm:$0xff] %vm5729, %v5712
      %5778 = vst.msk [vmem:[%s574 + $0x180] sm:$0xff] %vm5729, %v5713
      %5779 = vst.msk [vmem:[%s574 + $0x188] sm:$0xff] %vm5729, %v5714
      %5780 = vst.msk [vmem:[%s574 + $0x190] sm:$0xff] %vm5729, %v5715
      %5781 = vst.msk [vmem:[%s574 + $0x198] sm:$0xff] %vm5729, %v5716
      %5782 = vst.msk [vmem:[%s574 + $0x1a0] sm:$0xff] %vm5729, %v5717
      %5783 = vst.msk [vmem:[%s574 + $0x1a8] sm:$0xff] %vm5729, %v5718
      %5784 = vst.msk [vmem:[%s574 + $0x1b0] sm:$0xff] %vm5729, %v5719
      %5785 = vst.msk [vmem:[%s574 + $0x1b8] sm:$0xff] %vm5729, %v5720
      %5786 = vst.msk [vmem:[%s574 + $0x1c0] sm:$0xff] %vm5729, %v5721
      %5787 = vst.msk [vmem:[%s574 + $0x1c8] sm:$0xff] %vm5729, %v5722
      %5788 = vst.msk [vmem:[%s574 + $0x1d0] sm:$0xff] %vm5729, %v5723
      %5789 = vst.msk [vmem:[%s574 + $0x1d8] sm:$0xff] %vm5729, %v5724
      %5790 = vst.msk [vmem:[%s574 + $0x1e0] sm:$0xff] %vm5729, %v5725
      %5791 = vst.msk [vmem:[%s574 + $0x1e8] sm:$0xff] %vm5729, %v5726
      %5792 = vst.msk [vmem:[%s574 + $0x1f0] sm:$0xff] %vm5729, %v5727
      %5793 = vst.msk [vmem:[%s574 + $0x1f8] sm:$0xff] %vm5729, %v5728
      %s5794 = smul.u32 64, %s30
      %p5795 = scmp.lt.s32.totalorder %s5794, 127
      %s5796 = scalar_select %p5795, %s5794, 127
      %s5797 = smul.addr %s5796, 8
      %s5798 = scalar_lea.vmem %s17, %s5797
      // Predicated region
      $region89: #{tpu_custom_call.1} parent=87 // pred_check
        %p5799 = pneg %p415
      $region90: #{tpu_custom_call.1} parent=87 // pred_check_branch
        %5801 = sbr.rel (%p5799) target = $region92
      $region91: #{tpu_custom_call.1} parent=87 // pred_region
        %s5802 = smul.u32 64, %s30
      $region92: #{tpu_custom_call.1} parent=87 // pred_fallthru
        _
    $region88: #{tpu_custom_call.1} parent=5 // pred_fallthru
      _
    %p5803 = scmp.le.s32.totalorder 2, %s25
    // Predicated region
    $region93: #{tpu_custom_call.1} parent=5 // pred_check
      %p5804 = pneg %p5803
    $region94: #{tpu_custom_call.1} parent=5 // pred_check_branch
      %5806 = sbr.rel (%p5804) target = $region96
    $region95: #{tpu_custom_call.1} parent=5 // pred_region
      %s5807 = ssub.s32 %s25, 2
      // Predicated region
      $region97: #{tpu_custom_call.1} parent=95 // pred_check
        %p5808 = pneg %p421
      $region98: #{tpu_custom_call.1} parent=95 // pred_check_branch
        %5810 = sbr.rel (%p5808) target = $region100
      $region99: #{tpu_custom_call.1} parent=95 // pred_region
        %s5811 = smul.u32 64, %s31
        %p5812 = scmp.lt.s32.totalorder %s5811, 127
        %s5813 = scalar_select %p5812, %s5811, 127
        %s5814 = smul.addr %s5813, 8
        %s5815 = scalar_lea.vmem %s17, %s5814
      $region100: #{tpu_custom_call.1} parent=95 // pred_fallthru
        _
    $region96: #{tpu_custom_call.1} parent=5 // pred_fallthru
      _
  $region6: #{tpu_custom_call.1} parent=0 // loop_footer
    %s29 = sadd.s32 1, %s25
  $region7: #{tpu_custom_call.1} parent=0 // loop_footer_branch
    %24 = sbr.rel target = $region3
  $region8: #{tpu_custom_call.1} parent=0 // loop_exit
    _

</llo_original>
